<compile_context>
chip_gen: v7x
topology: tpu7x:2x2x1
jax: 0.10.0
libtpu: 0.0.40
codegen_flags: <defaults>
</compile_context>

<pallas_src>
import functools

import jax
import jax.numpy as jnp
from jax import lax
from jax.experimental import pallas as pl
from jax.experimental.pallas import tpu as pltpu


def _shvit_kernel(x_q_ref, x_kv_ref, scale_ref,
                  wq_ref, bq_ref, wk_ref, bk_ref, wv_ref, bv_ref,
                  wp_ref, bp_ref,
                  wf1a_ref, wf1b_ref, bf1_ref, wf2_ref, bf2_ref,
                  o_ref,
                  m_scr, l_scr, acc_scr, q_scr, xq_scr,
                  *, attn_scale):
    kv = pl.program_id(2)
    last_kv = pl.num_programs(2) - 1

    ch_scale = scale_ref[0]                                        # (1, C) f32

    # ---- once per (b, q-tile): init flash state, cache scaled-Q + Q proj ----
    @pl.when(kv == 0)
    def _():
        m_scr[...] = jnp.full_like(m_scr, -jnp.inf)
        l_scr[...] = jnp.zeros_like(l_scr)
        acc_scr[...] = jnp.zeros_like(acc_scr)
        xq_b = (x_q_ref[0].astype(jnp.float32) * ch_scale).astype(jnp.bfloat16)
        xq_scr[...] = xq_b                                         # (TQ, C) bf16
        q_t = jnp.dot(xq_b, wq_ref[...],
                      preferred_element_type=jnp.float32) + bq_ref[...]  # (TQ, A)
        # Fold the 1/sqrt(attn_dim) score scale into Q (saves a per-step
        # (TQ, TK) VPU multiply).
        q_scr[...] = (q_t * attn_scale).astype(jnp.bfloat16)

    # ---- KV side: channel-scale then project to k / v.  The zero-padded
    #      weights stand in for the attn-channel slice (rows >= Cs are 0). ----
    xk_b = (x_kv_ref[0].astype(jnp.float32) * ch_scale).astype(jnp.bfloat16)
    k_t = jnp.dot(xk_b, wk_ref[...],
                  preferred_element_type=jnp.float32) + bk_ref[...]    # (TK, A)
    v_t = jnp.dot(xk_b, wv_ref[...],
                  preferred_element_type=jnp.float32) + bv_ref[...]    # (TK, Cs)

    # ---- online-softmax attention over this KV tile ----
    s = lax.dot_general(q_scr[...], k_t.astype(jnp.bfloat16),
                        (((1,), (1,)), ((), ())),
                        preferred_element_type=jnp.float32)            # (TQ, TK)
    m_prev = m_scr[...]
    m_new = jnp.maximum(m_prev, jnp.max(s, axis=-1, keepdims=True))
    alpha = jnp.exp(m_prev - m_new)
    p = jnp.exp(s - m_new)
    l_scr[...] = alpha * l_scr[...] + jnp.sum(p, axis=-1, keepdims=True)
    acc_scr[...] = alpha * acc_scr[...] + jnp.dot(
        p.astype(jnp.bfloat16), v_t.astype(jnp.bfloat16),
        preferred_element_type=jnp.float32)
    m_scr[...] = m_new

    # ---- epilogue at the last KV tile: proj + FFN, fused into the kernel ----
    @pl.when(kv == last_kv)
    def _():
        inv_l = pl.reciprocal(l_scr[...], approx=True)             # EUP, ~free
        attn_out = acc_scr[...] * inv_l                            # (TQ, Cs)
        attn_proj = jnp.dot(attn_out.astype(jnp.bfloat16), wp_ref[...],
                            preferred_element_type=jnp.float32) + bp_ref[...]
        # concat([attn_proj, non_attn]) @ w_f1
        #   == attn_proj @ w_f1[:Cs]  +  x_scaled @ w_f1_pad   (rows < Cs zeroed)
        h = (jnp.dot(attn_proj.astype(jnp.bfloat16), wf1a_ref[...],
                     preferred_element_type=jnp.float32)
             + jnp.dot(xq_scr[...], wf1b_ref[...],
                       preferred_element_type=jnp.float32)
             + bf1_ref[...])
        h = jnp.maximum(h, 0.0)
        o = jnp.dot(h.astype(jnp.bfloat16), wf2_ref[...],
                    preferred_element_type=jnp.float32) + bf2_ref[...]
        # TODO(synk): for C < 128 this store is a masked vst; real SHViT configs
        # with C >= 128 are lane-dense, and packing (TQ, C) -> (TQ*C/128, 128)
        # here would require an in-kernel sublane->lane repack.
        o_ref[0] = o.astype(o_ref.dtype)


def _pick_tile(n, pref):
    t = min(pref, n)
    while t >= 8 and n % t != 0:
        t //= 2
    if t < 8 or n % t != 0:
        return n
    return t


def shvit_block_pallas(x_bnc, params, *, attn_dim, select_channels,
                       tile_q=256, tile_k=256):
    """x_bnc: (B, N, C) float32.  params: 12 matmul-form weights / biases."""
    (w_fc1, b_fc1, w_fc2, b_fc2,
     w_qkv, b_qkv, w_proj, b_proj,
     w_f1, b_f1, w_f2, b_f2) = params
    B, N, C = x_bnc.shape
    A, Cs = attn_dim, select_channels

    # -- DynamicChannelSelect scale: O(B*C) work, hoisted out of the kernel --
    pooled = jnp.mean(x_bnc, axis=1, keepdims=True)                # (B, 1, C)
    hid = jnp.maximum(pooled @ w_fc1 + b_fc1, 0.0)
    scale = jax.nn.sigmoid(hid @ w_fc2 + b_fc2)                    # (B, 1, C)

    # -- split / zero-pad weights so the kernel never slices the channel axis --
    def pad_rows(w):             # (Cs, X) -> (C, X); non-selected rows are zero
        return jnp.concatenate(
            [w, jnp.zeros((C - Cs, w.shape[1]), w.dtype)], axis=0)

    bf = jnp.bfloat16
    w_q = pad_rows(w_qkv[:, :A]).astype(bf)                        # (C, A)
    w_k = pad_rows(w_qkv[:, A:2 * A]).astype(bf)                   # (C, A)
    w_v = pad_rows(w_qkv[:, 2 * A:]).astype(bf)                    # (C, Cs)
    b_q, b_k, b_v = b_qkv[:, :A], b_qkv[:, A:2 * A], b_qkv[:, 2 * A:]
    w_f1a = w_f1[:Cs, :].astype(bf)                                # (Cs, 4C)
    w_f1b = jnp.concatenate(
        [jnp.zeros((Cs, w_f1.shape[1]), w_f1.dtype), w_f1[Cs:, :]],
        axis=0).astype(bf)                                         # (C, 4C)

    mat_params = [w_q, b_q, w_k, b_k, w_v, b_v,
                  w_proj.astype(bf), b_proj,
                  w_f1a, w_f1b, b_f1, w_f2.astype(bf), b_f2]

    tq = _pick_tile(N, tile_q)
    tk = _pick_tile(N, tile_k)
    grid = (B, N // tq, N // tk)

    x_q_spec = pl.BlockSpec((1, tq, C), lambda b, i, k: (b, i, 0))
    x_kv_spec = pl.BlockSpec((1, tk, C), lambda b, i, k: (b, k, 0))
    scale_spec = pl.BlockSpec((1, 1, C), lambda b, i, k: (b, 0, 0))
    param_specs = [pl.BlockSpec(p.shape, lambda b, i, k: (0, 0))
                   for p in mat_params]
    out_spec = pl.BlockSpec((1, tq, C), lambda b, i, k: (b, i, 0))

    kernel = functools.partial(_shvit_kernel, attn_scale=A ** -0.5)

    return pl.pallas_call(
        kernel,
        out_shape=jax.ShapeDtypeStruct((B, N, C), jnp.float32),
        grid_spec=pltpu.PrefetchScalarGridSpec(
            num_scalar_prefetch=0,
            grid=grid,
            in_specs=[x_q_spec, x_kv_spec, scale_spec] + param_specs,
            out_specs=out_spec,
            scratch_shapes=[pltpu.VMEM((tq, 1), jnp.float32),     # running max
                            pltpu.VMEM((tq, 1), jnp.float32),     # running sum
                            pltpu.VMEM((tq, Cs), jnp.float32),    # accumulator
                            pltpu.VMEM((tq, A), jnp.bfloat16),    # cached q*scale
                            pltpu.VMEM((tq, C), jnp.bfloat16)]),  # cached scaled x
        compiler_params=pltpu.CompilerParams(
            # B and Q-tile axes are independent (megacore-shardable on v7x);
            # the KV axis is the online-softmax reduction.
            dimension_semantics=("parallel", "parallel", "arbitrary"),
            # Blocks are small; 32 MiB fits every generation (v7x only has
            # 64 MiB physical VMEM per TC, so never request close to all of it).
            vmem_limit_bytes=32 * 1024 * 1024),
    )(x_bnc, x_bnc, scale, *mat_params)


def shvit_block_ref(x_bnc, params, *, attn_dim, select_channels):
    """Pure-JAX f32 reference (same layout) for correctness checking."""
    (w_fc1, b_fc1, w_fc2, b_fc2,
     w_qkv, b_qkv, w_proj, b_proj,
     w_f1, b_f1, w_f2, b_f2) = params
    A, Cs = attn_dim, select_channels

    pooled = jnp.mean(x_bnc, axis=1, keepdims=True)                # (B, 1, C)
    h = jnp.maximum(pooled @ w_fc1 + b_fc1, 0.0)
    scale = jax.nn.sigmoid(h @ w_fc2 + b_fc2)                      # (B, 1, C)
    xs = x_bnc * scale
    attn_part, non_attn = xs[..., :Cs], xs[..., Cs:]

    qkv = attn_part @ w_qkv + b_qkv
    q, k, v = qkv[..., :A], qkv[..., A:2 * A], qkv[..., 2 * A:]
    s = jnp.einsum("bia,bja->bij", q, k) * (A ** -0.5)
    p = jax.nn.softmax(s, axis=-1)
    out = jnp.einsum("bij,bjc->bic", p, v) @ w_proj + b_proj

    y = jnp.concatenate([out, non_attn], axis=-1)
    h2 = jnp.maximum(y @ w_f1 + b_f1, 0.0)
    return h2 @ w_f2 + b_f2


if __name__ == "__main__":
    # Small shapes consistent with the module (select_channels <= dim).
    B, C, H, W = 2, 64, 16, 16
    attn_dim = 16
    select_channels = 32
    reduction_ratio = 4
    N = H * W
    Cr = C // reduction_ratio

    key = jax.random.PRNGKey(0)
    keys = jax.random.split(key, 13)

    def init(k, shape, fan_in):
        return jax.random.normal(k, shape, jnp.float32) / jnp.sqrt(float(fan_in))

    # PyTorch 1x1 conv weight (out, in, 1, 1) is stored here as (in, out) matmul weight.
    params = [
        init(keys[0], (C, Cr), C),                                   # dyn_select.fc[0] w
        init(keys[1], (1, Cr), C),                                   # dyn_select.fc[0] b
        init(keys[2], (Cr, C), Cr),                                  # dyn_select.fc[2] w
        init(keys[3], (1, C), Cr),                                   # dyn_select.fc[2] b
        init(keys[4], (select_channels, 2 * attn_dim + select_channels),
             select_channels),                                       # shsa.qkv w
        init(keys[5], (1, 2 * attn_dim + select_channels), select_channels),  # shsa.qkv b
        init(keys[6], (select_channels, select_channels), select_channels),   # shsa.proj w
        init(keys[7], (1, select_channels), select_channels),                 # shsa.proj b
        init(keys[8], (C, 4 * C), C),                                # ffn[0] w
        init(keys[9], (1, 4 * C), C),                                # ffn[0] b
        init(keys[10], (4 * C, C), 4 * C),                           # ffn[2] w
        init(keys[11], (1, C), 4 * C),                               # ffn[2] b
    ]

    # Input in PyTorch NCHW convention, converted to kernel layout (B, N, C).
    x_nchw = jax.random.normal(keys[12], (B, C, H, W), jnp.float32)
    x_bnc = jnp.transpose(x_nchw, (0, 2, 3, 1)).reshape(B, N, C)

    out = shvit_block_pallas(x_bnc, params,
                             attn_dim=attn_dim, select_channels=select_channels,
                             tile_q=128, tile_k=128)   # exercises the (2,2,2) grid
    out = jax.block_until_ready(out)

    ref = shvit_block_ref(x_bnc, params,
                          attn_dim=attn_dim, select_channels=select_channels)
    assert out.shape == (B, N, C)
    # bf16 MXU operands + f32 accumulation vs. the pure-f32 reference.
    err = float(jnp.max(jnp.abs(out - ref)))
    assert jnp.allclose(out, ref, atol=3e-2, rtol=3e-2), err

    # (If NCHW output is needed: out.reshape(B, H, W, C).transpose(0, 3, 1, 2))
    print("KERNEL_OK")
</pallas_src>

<mosaic_0001>
module attributes {stable_mosaic.version = 11 : i64} {
  func.func @_shvit_kernel(%arg0: i32, %arg1: i32, %arg2: i32, %arg3: memref<1x128x64xf32, #tpu.memory_space<vmem>>, %arg4: memref<1x128x64xf32, #tpu.memory_space<vmem>>, %arg5: memref<1x1x64xf32, #tpu.memory_space<vmem>>, %arg6: memref<64x16xbf16, #tpu.memory_space<vmem>>, %arg7: memref<1x16xf32, #tpu.memory_space<vmem>>, %arg8: memref<64x16xbf16, #tpu.memory_space<vmem>>, %arg9: memref<1x16xf32, #tpu.memory_space<vmem>>, %arg10: memref<64x32xbf16, #tpu.memory_space<vmem>>, %arg11: memref<1x32xf32, #tpu.memory_space<vmem>>, %arg12: memref<32x32xbf16, #tpu.memory_space<vmem>>, %arg13: memref<1x32xf32, #tpu.memory_space<vmem>>, %arg14: memref<32x256xbf16, #tpu.memory_space<vmem>>, %arg15: memref<64x256xbf16, #tpu.memory_space<vmem>>, %arg16: memref<1x256xf32, #tpu.memory_space<vmem>>, %arg17: memref<256x64xbf16, #tpu.memory_space<vmem>>, %arg18: memref<1x64xf32, #tpu.memory_space<vmem>>, %arg19: memref<1x128x64xf32, #tpu.memory_space<vmem>>, %arg20: memref<128x1xf32, #tpu.memory_space<vmem>>, %arg21: memref<128x1xf32, #tpu.memory_space<vmem>>, %arg22: memref<128x32xf32, #tpu.memory_space<vmem>>, %arg23: memref<128x16xbf16, #tpu.memory_space<vmem>>, %arg24: memref<128x64xbf16, #tpu.memory_space<vmem>>) attributes {dimension_semantics = [#tpu.dimension_semantics<parallel>, #tpu.dimension_semantics<parallel>, #tpu.dimension_semantics<arbitrary>], iteration_bounds = array<i64: 2, 2, 2>, scalar_prefetch = 0 : i64, scratch_operands = 5 : i64, tpu.core_type = #tpu.core_type<tc>, window_params = [{transform_indices = @transform_0, window_bounds = array<i64: 1, 128, 64>}, {transform_indices = @transform_1, window_bounds = array<i64: 1, 128, 64>}, {transform_indices = @transform_2, window_bounds = array<i64: 1, 1, 64>}, {pipeline_mode = #tpu.pipeline_mode<synchronous>, transform_indices = @transform_3, window_bounds = array<i64: 64, 16>}, {pipeline_mode = #tpu.pipeline_mode<synchronous>, transform_indices = @transform_4, window_bounds = array<i64: 1, 16>}, {pipeline_mode = #tpu.pipeline_mode<synchronous>, transform_indices = @transform_5, window_bounds = array<i64: 64, 16>}, {pipeline_mode = #tpu.pipeline_mode<synchronous>, transform_indices = @transform_6, window_bounds = array<i64: 1, 16>}, {pipeline_mode = #tpu.pipeline_mode<synchronous>, transform_indices = @transform_7, window_bounds = array<i64: 64, 32>}, {pipeline_mode = #tpu.pipeline_mode<synchronous>, transform_indices = @transform_8, window_bounds = array<i64: 1, 32>}, {pipeline_mode = #tpu.pipeline_mode<synchronous>, transform_indices = @transform_9, window_bounds = array<i64: 32, 32>}, {pipeline_mode = #tpu.pipeline_mode<synchronous>, transform_indices = @transform_10, window_bounds = array<i64: 1, 32>}, {pipeline_mode = #tpu.pipeline_mode<synchronous>, transform_indices = @transform_11, window_bounds = array<i64: 32, 256>}, {pipeline_mode = #tpu.pipeline_mode<synchronous>, transform_indices = @transform_12, window_bounds = array<i64: 64, 256>}, {pipeline_mode = #tpu.pipeline_mode<synchronous>, transform_indices = @transform_13, window_bounds = array<i64: 1, 256>}, {pipeline_mode = #tpu.pipeline_mode<synchronous>, transform_indices = @transform_14, window_bounds = array<i64: 256, 64>}, {pipeline_mode = #tpu.pipeline_mode<synchronous>, transform_indices = @transform_15, window_bounds = array<i64: 1, 64>}, {transform_indices = @transform_16, window_bounds = array<i64: 1, 128, 64>}]} {
    %c0 = arith.constant 0 : index
    %c0_0 = arith.constant 0 : index
    %c0_1 = arith.constant 0 : index
    %0 = vector.load %arg5[%c0, %c0_0, %c0_1] : memref<1x1x64xf32, #tpu.memory_space<vmem>>, vector<1x1x64xf32>
    %1 = vector.shape_cast %0 : vector<1x1x64xf32> to vector<1x64xf32>
    %c0_i32 = arith.constant 0 : i32
    %2 = arith.cmpi eq, %arg2, %c0_i32 : i32
    %3 = arith.extui %2 : i1 to i32
    %c0_i32_2 = arith.constant 0 : i32
    %4 = arith.cmpi ne, %3, %c0_i32_2 : i32
    scf.if %4 {
      %cst_34 = arith.constant 0xFF800000 : f32
      %50 = vector.broadcast %cst_34 : f32 to vector<128x1xf32>
      %c0_35 = arith.constant 0 : index
      %c0_36 = arith.constant 0 : index
      %51 = vector.load %arg20[%c0_35, %c0_36] : memref<128x1xf32, #tpu.memory_space<vmem>>, vector<128x1xf32>
      tpu.vector_store %arg20[%c0_35, %c0_36], %50 {strides = array<i32>} : memref<128x1xf32, #tpu.memory_space<vmem>>, vector<128x1xf32>,
      %cst_37 = arith.constant 0.000000e+00 : f32
      %52 = vector.broadcast %cst_37 : f32 to vector<128x1xf32>
      %c0_38 = arith.constant 0 : index
      %c0_39 = arith.constant 0 : index
      %53 = vector.load %arg21[%c0_38, %c0_39] : memref<128x1xf32, #tpu.memory_space<vmem>>, vector<128x1xf32>
      tpu.vector_store %arg21[%c0_38, %c0_39], %52 {strides = array<i32>} : memref<128x1xf32, #tpu.memory_space<vmem>>, vector<128x1xf32>,
      %cst_40 = arith.constant 0.000000e+00 : f32
      %54 = vector.broadcast %cst_40 : f32 to vector<128x32xf32>
      %c0_41 = arith.constant 0 : index
      %c0_42 = arith.constant 0 : index
      %55 = vector.load %arg22[%c0_41, %c0_42] : memref<128x32xf32, #tpu.memory_space<vmem>>, vector<128x32xf32>
      tpu.vector_store %arg22[%c0_41, %c0_42], %54 {strides = array<i32>} : memref<128x32xf32, #tpu.memory_space<vmem>>, vector<128x32xf32>,
      %c0_43 = arith.constant 0 : index
      %c0_44 = arith.constant 0 : index
      %c0_45 = arith.constant 0 : index
      %56 = vector.load %arg3[%c0_43, %c0_44, %c0_45] : memref<1x128x64xf32, #tpu.memory_space<vmem>>, vector<1x128x64xf32>
      %57 = vector.shape_cast %56 : vector<1x128x64xf32> to vector<128x64xf32>
      %58 = vector.broadcast %1 : vector<1x64xf32> to vector<128x64xf32>
      %59 = arith.mulf %57, %58 : vector<128x64xf32>
      %60 = arith.truncf %59 : vector<128x64xf32> to vector<128x64xbf16>
      %c0_46 = arith.constant 0 : index
      %c0_47 = arith.constant 0 : index
      %61 = vector.load %arg24[%c0_46, %c0_47] : memref<128x64xbf16, #tpu.memory_space<vmem>>, vector<128x64xbf16>
      tpu.vector_store %arg24[%c0_46, %c0_47], %60 {strides = array<i32>} : memref<128x64xbf16, #tpu.memory_space<vmem>>, vector<128x64xbf16>,
      %c0_48 = arith.constant 0 : index
      %c0_49 = arith.constant 0 : index
      %62 = vector.load %arg6[%c0_48, %c0_49] : memref<64x16xbf16, #tpu.memory_space<vmem>>, vector<64x16xbf16>
      %cst_50 = arith.constant dense<0.000000e+00> : vector<128x16xf32>
      %63 = tpu.matmul %60, %62, %cst_50 {dimension_numbers = #tpu.dot_dimension_numbers<[1], [0], [0], [1], [0, 0, 1, 1], [], []>} : vector<128x64xbf16>, vector<64x16xbf16>, vector<128x16xf32> -> vector<128x16xf32>
      %c0_51 = arith.constant 0 : index
      %c0_52 = arith.constant 0 : index
      %64 = vector.load %arg7[%c0_51, %c0_52] : memref<1x16xf32, #tpu.memory_space<vmem>>, vector<1x16xf32>
      %65 = vector.broadcast %64 : vector<1x16xf32> to vector<128x16xf32>
      %66 = arith.addf %63, %65 : vector<128x16xf32>
      %cst_53 = arith.constant 2.500000e-01 : f32
      %67 = vector.broadcast %cst_53 : f32 to vector<128x16xf32>
      %68 = arith.mulf %66, %67 : vector<128x16xf32>
      %69 = arith.truncf %68 : vector<128x16xf32> to vector<128x16xbf16>
      %c0_54 = arith.constant 0 : index
      %c0_55 = arith.constant 0 : index
      %70 = vector.load %arg23[%c0_54, %c0_55] : memref<128x16xbf16, #tpu.memory_space<vmem>>, vector<128x16xbf16>
      tpu.vector_store %arg23[%c0_54, %c0_55], %69 {strides = array<i32>} : memref<128x16xbf16, #tpu.memory_space<vmem>>, vector<128x16xbf16>,
    } else {
    }
    %c0_3 = arith.constant 0 : index
    %c0_4 = arith.constant 0 : index
    %c0_5 = arith.constant 0 : index
    %5 = vector.load %arg4[%c0_3, %c0_4, %c0_5] : memref<1x128x64xf32, #tpu.memory_space<vmem>>, vector<1x128x64xf32>
    %6 = vector.shape_cast %5 : vector<1x128x64xf32> to vector<128x64xf32>
    %7 = vector.broadcast %1 : vector<1x64xf32> to vector<128x64xf32>
    %8 = arith.mulf %6, %7 : vector<128x64xf32>
    %9 = arith.truncf %8 : vector<128x64xf32> to vector<128x64xbf16>
    %c0_6 = arith.constant 0 : index
    %c0_7 = arith.constant 0 : index
    %10 = vector.load %arg8[%c0_6, %c0_7] : memref<64x16xbf16, #tpu.memory_space<vmem>>, vector<64x16xbf16>
    %cst = arith.constant dense<0.000000e+00> : vector<128x16xf32>
    %11 = tpu.matmul %9, %10, %cst {dimension_numbers = #tpu.dot_dimension_numbers<[1], [0], [0], [1], [0, 0, 1, 1], [], []>} : vector<128x64xbf16>, vector<64x16xbf16>, vector<128x16xf32> -> vector<128x16xf32>
    %c0_8 = arith.constant 0 : index
    %c0_9 = arith.constant 0 : index
    %12 = vector.load %arg9[%c0_8, %c0_9] : memref<1x16xf32, #tpu.memory_space<vmem>>, vector<1x16xf32>
    %13 = vector.broadcast %12 : vector<1x16xf32> to vector<128x16xf32>
    %14 = arith.addf %11, %13 : vector<128x16xf32>
    %c0_10 = arith.constant 0 : index
    %c0_11 = arith.constant 0 : index
    %15 = vector.load %arg10[%c0_10, %c0_11] : memref<64x32xbf16, #tpu.memory_space<vmem>>, vector<64x32xbf16>
    %cst_12 = arith.constant dense<0.000000e+00> : vector<128x32xf32>
    %16 = tpu.matmul %9, %15, %cst_12 {dimension_numbers = #tpu.dot_dimension_numbers<[1], [0], [0], [1], [0, 0, 1, 1], [], []>} : vector<128x64xbf16>, vector<64x32xbf16>, vector<128x32xf32> -> vector<128x32xf32>
    %c0_13 = arith.constant 0 : index
    %c0_14 = arith.constant 0 : index
    %17 = vector.load %arg11[%c0_13, %c0_14] : memref<1x32xf32, #tpu.memory_space<vmem>>, vector<1x32xf32>
    %18 = vector.broadcast %17 : vector<1x32xf32> to vector<128x32xf32>
    %19 = arith.addf %16, %18 : vector<128x32xf32>
    %c0_15 = arith.constant 0 : index
    %c0_16 = arith.constant 0 : index
    %20 = vector.load %arg23[%c0_15, %c0_16] : memref<128x16xbf16, #tpu.memory_space<vmem>>, vector<128x16xbf16>
    %21 = arith.truncf %14 : vector<128x16xf32> to vector<128x16xbf16>
    %cst_17 = arith.constant dense<0.000000e+00> : vector<128x128xf32>
    %22 = tpu.matmul %20, %21, %cst_17 {dimension_numbers = #tpu.dot_dimension_numbers<[1], [1], [0], [0], [0, 0, 1, 0], [], []>} : vector<128x16xbf16>, vector<128x16xbf16>, vector<128x128xf32> -> vector<128x128xf32>
    %c0_18 = arith.constant 0 : index
    %c0_19 = arith.constant 0 : index
    %23 = vector.load %arg20[%c0_18, %c0_19] : memref<128x1xf32, #tpu.memory_space<vmem>>, vector<128x1xf32>
    %cst_20 = arith.constant dense<0xFF800000> : vector<128xf32>
    %24 = vector.multi_reduction <maximumf>, %22, %cst_20 [1] : vector<128x128xf32> to vector<128xf32>
    %25 = vector.shape_cast %24 : vector<128xf32> to vector<128x1xf32>
    %26 = arith.maximumf %23, %25 : vector<128x1xf32>
    %27 = arith.subf %23, %26 : vector<128x1xf32>
    %28 = math.exp %27 : vector<128x1xf32>
    %29 = vector.broadcast %26 : vector<128x1xf32> to vector<128x128xf32>
    %30 = arith.subf %22, %29 : vector<128x128xf32>
    %31 = math.exp %30 : vector<128x128xf32>
    %c0_21 = arith.constant 0 : index
    %c0_22 = arith.constant 0 : index
    %32 = vector.load %arg21[%c0_21, %c0_22] : memref<128x1xf32, #tpu.memory_space<vmem>>, vector<128x1xf32>
    %33 = arith.mulf %28, %32 : vector<128x1xf32>
    %cst_23 = arith.constant dense<0.000000e+00> : vector<128xf32>
    %34 = vector.multi_reduction <add>, %31, %cst_23 [1] : vector<128x128xf32> to vector<128xf32>
    %35 = vector.shape_cast %34 : vector<128xf32> to vector<128x1xf32>
    %36 = arith.addf %33, %35 : vector<128x1xf32>
    %c0_24 = arith.constant 0 : index
    %c0_25 = arith.constant 0 : index
    %37 = vector.load %arg21[%c0_24, %c0_25] : memref<128x1xf32, #tpu.memory_space<vmem>>, vector<128x1xf32>
    tpu.vector_store %arg21[%c0_24, %c0_25], %36 {strides = array<i32>} : memref<128x1xf32, #tpu.memory_space<vmem>>, vector<128x1xf32>,
    %c0_26 = arith.constant 0 : index
    %c0_27 = arith.constant 0 : index
    %38 = vector.load %arg22[%c0_26, %c0_27] : memref<128x32xf32, #tpu.memory_space<vmem>>, vector<128x32xf32>
    %39 = vector.broadcast %28 : vector<128x1xf32> to vector<128x32xf32>
    %40 = arith.mulf %39, %38 : vector<128x32xf32>
    %41 = arith.truncf %31 : vector<128x128xf32> to vector<128x128xbf16>
    %42 = arith.truncf %19 : vector<128x32xf32> to vector<128x32xbf16>
    %cst_28 = arith.constant dense<0.000000e+00> : vector<128x32xf32>
    %43 = tpu.matmul %41, %42, %cst_28 {dimension_numbers = #tpu.dot_dimension_numbers<[1], [0], [0], [1], [0, 0, 1, 1], [], []>} : vector<128x128xbf16>, vector<128x32xbf16>, vector<128x32xf32> -> vector<128x32xf32>
    %44 = arith.addf %40, %43 : vector<128x32xf32>
    %c0_29 = arith.constant 0 : index
    %c0_30 = arith.constant 0 : index
    %45 = vector.load %arg22[%c0_29, %c0_30] : memref<128x32xf32, #tpu.memory_space<vmem>>, vector<128x32xf32>
    tpu.vector_store %arg22[%c0_29, %c0_30], %44 {strides = array<i32>} : memref<128x32xf32, #tpu.memory_space<vmem>>, vector<128x32xf32>,
    %c0_31 = arith.constant 0 : index
    %c0_32 = arith.constant 0 : index
    %46 = vector.load %arg20[%c0_31, %c0_32] : memref<128x1xf32, #tpu.memory_space<vmem>>, vector<128x1xf32>
    tpu.vector_store %arg20[%c0_31, %c0_32], %26 {strides = array<i32>} : memref<128x1xf32, #tpu.memory_space<vmem>>, vector<128x1xf32>,
    %c1_i32 = arith.constant 1 : i32
    %47 = arith.cmpi eq, %arg2, %c1_i32 : i32
    %48 = arith.extui %47 : i1 to i32
    %c0_i32_33 = arith.constant 0 : i32
    %49 = arith.cmpi ne, %48, %c0_i32_33 : i32
    scf.if %49 {
      %c0_34 = arith.constant 0 : index
      %c0_35 = arith.constant 0 : index
      %50 = vector.load %arg21[%c0_34, %c0_35] : memref<128x1xf32, #tpu.memory_space<vmem>>, vector<128x1xf32>
      %51 = tpu.reciprocal %50 {approx = true} : vector<128x1xf32> -> vector<128x1xf32>
      %c0_36 = arith.constant 0 : index
      %c0_37 = arith.constant 0 : index
      %52 = vector.load %arg22[%c0_36, %c0_37] : memref<128x32xf32, #tpu.memory_space<vmem>>, vector<128x32xf32>
      %53 = vector.broadcast %51 : vector<128x1xf32> to vector<128x32xf32>
      %54 = arith.mulf %52, %53 : vector<128x32xf32>
      %55 = arith.truncf %54 : vector<128x32xf32> to vector<128x32xbf16>
      %c0_38 = arith.constant 0 : index
      %c0_39 = arith.constant 0 : index
      %56 = vector.load %arg12[%c0_38, %c0_39] : memref<32x32xbf16, #tpu.memory_space<vmem>>, vector<32x32xbf16>
      %cst_40 = arith.constant dense<0.000000e+00> : vector<128x32xf32>
      %57 = tpu.matmul %55, %56, %cst_40 {dimension_numbers = #tpu.dot_dimension_numbers<[1], [0], [0], [1], [0, 0, 1, 1], [], []>} : vector<128x32xbf16>, vector<32x32xbf16>, vector<128x32xf32> -> vector<128x32xf32>
      %c0_41 = arith.constant 0 : index
      %c0_42 = arith.constant 0 : index
      %58 = vector.load %arg13[%c0_41, %c0_42] : memref<1x32xf32, #tpu.memory_space<vmem>>, vector<1x32xf32>
      %59 = vector.broadcast %58 : vector<1x32xf32> to vector<128x32xf32>
      %60 = arith.addf %57, %59 : vector<128x32xf32>
      %61 = arith.truncf %60 : vector<128x32xf32> to vector<128x32xbf16>
      %c0_43 = arith.constant 0 : index
      %c0_44 = arith.constant 0 : index
      %62 = vector.load %arg14[%c0_43, %c0_44] : memref<32x256xbf16, #tpu.memory_space<vmem>>, vector<32x256xbf16>
      %cst_45 = arith.constant dense<0.000000e+00> : vector<128x256xf32>
      %63 = tpu.matmul %61, %62, %cst_45 {dimension_numbers = #tpu.dot_dimension_numbers<[1], [0], [0], [1], [0, 0, 1, 1], [], []>} : vector<128x32xbf16>, vector<32x256xbf16>, vector<128x256xf32> -> vector<128x256xf32>
      %c0_46 = arith.constant 0 : index
      %c0_47 = arith.constant 0 : index
      %64 = vector.load %arg24[%c0_46, %c0_47] : memref<128x64xbf16, #tpu.memory_space<vmem>>, vector<128x64xbf16>
      %c0_48 = arith.constant 0 : index
      %c0_49 = arith.constant 0 : index
      %65 = vector.load %arg15[%c0_48, %c0_49] : memref<64x256xbf16, #tpu.memory_space<vmem>>, vector<64x256xbf16>
      %cst_50 = arith.constant dense<0.000000e+00> : vector<128x256xf32>
      %66 = tpu.matmul %64, %65, %cst_50 {dimension_numbers = #tpu.dot_dimension_numbers<[1], [0], [0], [1], [0, 0, 1, 1], [], []>} : vector<128x64xbf16>, vector<64x256xbf16>, vector<128x256xf32> -> vector<128x256xf32>
      %67 = arith.addf %63, %66 : vector<128x256xf32>
      %c0_51 = arith.constant 0 : index
      %c0_52 = arith.constant 0 : index
      %68 = vector.load %arg16[%c0_51, %c0_52] : memref<1x256xf32, #tpu.memory_space<vmem>>, vector<1x256xf32>
      %69 = vector.broadcast %68 : vector<1x256xf32> to vector<128x256xf32>
      %70 = arith.addf %67, %69 : vector<128x256xf32>
      %cst_53 = arith.constant 0.000000e+00 : f32
      %71 = vector.broadcast %cst_53 : f32 to vector<128x256xf32>
      %72 = arith.maximumf %70, %71 : vector<128x256xf32>
      %73 = arith.truncf %72 : vector<128x256xf32> to vector<128x256xbf16>
      %c0_54 = arith.constant 0 : index
      %c0_55 = arith.constant 0 : index
      %74 = vector.load %arg17[%c0_54, %c0_55] : memref<256x64xbf16, #tpu.memory_space<vmem>>, vector<256x64xbf16>
      %cst_56 = arith.constant dense<0.000000e+00> : vector<128x64xf32>
      %75 = tpu.matmul %73, %74, %cst_56 {dimension_numbers = #tpu.dot_dimension_numbers<[1], [0], [0], [1], [0, 0, 1, 1], [], []>} : vector<128x256xbf16>, vector<256x64xbf16>, vector<128x64xf32> -> vector<128x64xf32>
      %c0_57 = arith.constant 0 : index
      %c0_58 = arith.constant 0 : index
      %76 = vector.load %arg18[%c0_57, %c0_58] : memref<1x64xf32, #tpu.memory_space<vmem>>, vector<1x64xf32>
      %77 = vector.broadcast %76 : vector<1x64xf32> to vector<128x64xf32>
      %78 = arith.addf %75, %77 : vector<128x64xf32>
      %c0_59 = arith.constant 0 : index
      %c0_60 = arith.constant 0 : index
      %c0_61 = arith.constant 0 : index
      %79 = vector.load %arg19[%c0_59, %c0_60, %c0_61] : memref<1x128x64xf32, #tpu.memory_space<vmem>>, vector<1x128x64xf32>
      %80 = vector.shape_cast %79 : vector<1x128x64xf32> to vector<128x64xf32>
      %81 = vector.shape_cast %78 : vector<128x64xf32> to vector<1x128x64xf32>
      tpu.vector_store %arg19[%c0_59, %c0_60, %c0_61], %81 {strides = array<i32>} : memref<1x128x64xf32, #tpu.memory_space<vmem>>, vector<1x128x64xf32>,
    } else {
    }
    return
  }
  func.func @transform_0(%arg0: i32, %arg1: i32, %arg2: i32) -> (i32, i32, i32) {
    %c0_i32 = arith.constant 0 : i32
    %c0_i32_0 = arith.constant 0 : i32
    return %arg0, %arg1, %c0_i32 : i32, i32, i32
  }
  func.func @transform_1(%arg0: i32, %arg1: i32, %arg2: i32) -> (i32, i32, i32) {
    %c0_i32 = arith.constant 0 : i32
    %c0_i32_0 = arith.constant 0 : i32
    return %arg0, %arg2, %c0_i32 : i32, i32, i32
  }
  func.func @transform_2(%arg0: i32, %arg1: i32, %arg2: i32) -> (i32, i32, i32) {
    %c0_i32 = arith.constant 0 : i32
    %c0_i32_0 = arith.constant 0 : i32
    %c0_i32_1 = arith.constant 0 : i32
    return %arg0, %c0_i32, %c0_i32_0 : i32, i32, i32
  }
  func.func @transform_3(%arg0: i32, %arg1: i32, %arg2: i32) -> (i32, i32) {
    %c0_i32 = arith.constant 0 : i32
    %c0_i32_0 = arith.constant 0 : i32
    %c0_i32_1 = arith.constant 0 : i32
    return %c0_i32, %c0_i32_0 : i32, i32
  }
  func.func @transform_4(%arg0: i32, %arg1: i32, %arg2: i32) -> (i32, i32) {
    %c0_i32 = arith.constant 0 : i32
    %c0_i32_0 = arith.constant 0 : i32
    %c0_i32_1 = arith.constant 0 : i32
    return %c0_i32, %c0_i32_0 : i32, i32
  }
  func.func @transform_5(%arg0: i32, %arg1: i32, %arg2: i32) -> (i32, i32) {
    %c0_i32 = arith.constant 0 : i32
    %c0_i32_0 = arith.constant 0 : i32
    %c0_i32_1 = arith.constant 0 : i32
    return %c0_i32, %c0_i32_0 : i32, i32
  }
  func.func @transform_6(%arg0: i32, %arg1: i32, %arg2: i32) -> (i32, i32) {
    %c0_i32 = arith.constant 0 : i32
    %c0_i32_0 = arith.constant 0 : i32
    %c0_i32_1 = arith.constant 0 : i32
    return %c0_i32, %c0_i32_0 : i32, i32
  }
  func.func @transform_7(%arg0: i32, %arg1: i32, %arg2: i32) -> (i32, i32) {
    %c0_i32 = arith.constant 0 : i32
    %c0_i32_0 = arith.constant 0 : i32
    %c0_i32_1 = arith.constant 0 : i32
    return %c0_i32, %c0_i32_0 : i32, i32
  }
  func.func @transform_8(%arg0: i32, %arg1: i32, %arg2: i32) -> (i32, i32) {
    %c0_i32 = arith.constant 0 : i32
    %c0_i32_0 = arith.constant 0 : i32
    %c0_i32_1 = arith.constant 0 : i32
    return %c0_i32, %c0_i32_0 : i32, i32
  }
  func.func @transform_9(%arg0: i32, %arg1: i32, %arg2: i32) -> (i32, i32) {
    %c0_i32 = arith.constant 0 : i32
    %c0_i32_0 = arith.constant 0 : i32
    %c0_i32_1 = arith.constant 0 : i32
    return %c0_i32, %c0_i32_0 : i32, i32
  }
  func.func @transform_10(%arg0: i32, %arg1: i32, %arg2: i32) -> (i32, i32) {
    %c0_i32 = arith.constant 0 : i32
    %c0_i32_0 = arith.constant 0 : i32
    %c0_i32_1 = arith.constant 0 : i32
    return %c0_i32, %c0_i32_0 : i32, i32
  }
  func.func @transform_11(%arg0: i32, %arg1: i32, %arg2: i32) -> (i32, i32) {
    %c0_i32 = arith.constant 0 : i32
    %c0_i32_0 = arith.constant 0 : i32
    %c0_i32_1 = arith.constant 0 : i32
    return %c0_i32, %c0_i32_0 : i32, i32
  }
  func.func @transform_12(%arg0: i32, %arg1: i32, %arg2: i32) -> (i32, i32) {
    %c0_i32 = arith.constant 0 : i32
    %c0_i32_0 = arith.constant 0 : i32
    %c0_i32_1 = arith.constant 0 : i32
    return %c0_i32, %c0_i32_0 : i32, i32
  }
  func.func @transform_13(%arg0: i32, %arg1: i32, %arg2: i32) -> (i32, i32) {
    %c0_i32 = arith.constant 0 : i32
    %c0_i32_0 = arith.constant 0 : i32
    %c0_i32_1 = arith.constant 0 : i32
    return %c0_i32, %c0_i32_0 : i32, i32
  }
  func.func @transform_14(%arg0: i32, %arg1: i32, %arg2: i32) -> (i32, i32) {
    %c0_i32 = arith.constant 0 : i32
    %c0_i32_0 = arith.constant 0 : i32
    %c0_i32_1 = arith.constant 0 : i32
    return %c0_i32, %c0_i32_0 : i32, i32
  }
  func.func @transform_15(%arg0: i32, %arg1: i32, %arg2: i32) -> (i32, i32) {
    %c0_i32 = arith.constant 0 : i32
    %c0_i32_0 = arith.constant 0 : i32
    %c0_i32_1 = arith.constant 0 : i32
    return %c0_i32, %c0_i32_0 : i32, i32
  }
  func.func @transform_16(%arg0: i32, %arg1: i32, %arg2: i32) -> (i32, i32, i32) {
    %c0_i32 = arith.constant 0 : i32
    %c0_i32_0 = arith.constant 0 : i32
    return %arg0, %arg1, %c0_i32 : i32, i32, i32
  }
}

</mosaic_0001>

<llo_original>
// kernel: tpu_custom_call.1
$region0: #{tpu_custom_call.1}
  #allocation0 [shape = 'u32[]', space=smem, size = 0x4, offset = 0x4, fixed_abs, tag = 'smem constant byte address 0x4 - core index']
  #allocation1 [shape = 'u32[144,128]{1,0:T(1,128)}', space=vmem, size = 0x12000, scoped, tag = 'internal scratch']
  #allocation2 [shape = 'f32[128,1]{1,0:T(8,128)}', space=vmem, size = 0x10000, scoped, tag = 'scratch operand']
  #allocation3 [shape = 'f32[128,1]{1,0:T(8,128)}', space=vmem, size = 0x10000, scoped, tag = 'scratch operand']
  #allocation4 [shape = 'f32[128,32]{1,0:T(8,128)}', space=vmem, size = 0x10000, scoped, tag = 'scratch operand']
  #allocation5 [shape = 'bf16[128,16]{1,0:T(16,128)(2,1)}', space=vmem, size = 0x8000, scoped, tag = 'scratch operand']
  #allocation6 [shape = 'bf16[128,64]{1,0:T(16,128)(2,1)}', space=vmem, size = 0x8000, scoped, tag = 'scratch operand']
  %s0 = inlined_call_operand.vmem [shape: f32[2,256,64], index: 0, kind: input, shape index: {}]
  %s1 = inlined_call_operand.vmem [shape: f32[2,256,64], index: 1, kind: input, shape index: {}]
  %s2 = inlined_call_operand.vmem [shape: f32[2,1,64], index: 2, kind: input, shape index: {}]
  %s3 = inlined_call_operand.vmem [shape: bf16[64,16], index: 3, kind: input, shape index: {}]
  %s4 = inlined_call_operand.vmem [shape: f32[1,16], index: 4, kind: input, shape index: {}]
  %s5 = inlined_call_operand.vmem [shape: bf16[64,16], index: 5, kind: input, shape index: {}]
  %s6 = inlined_call_operand.vmem [shape: f32[1,16], index: 6, kind: input, shape index: {}]
  %s7 = inlined_call_operand.vmem [shape: bf16[64,32], index: 7, kind: input, shape index: {}]
  %s8 = inlined_call_operand.vmem [shape: f32[1,32], index: 8, kind: input, shape index: {}]
  %s9 = inlined_call_operand.vmem [shape: bf16[32,32], index: 9, kind: input, shape index: {}]
  %s10 = inlined_call_operand.vmem [shape: f32[1,32], index: 10, kind: input, shape index: {}]
  %s11 = inlined_call_operand.vmem [shape: bf16[32,256], index: 11, kind: input, shape index: {}]
  %s12 = inlined_call_operand.vmem [shape: bf16[64,256], index: 12, kind: input, shape index: {}]
  %s13 = inlined_call_operand.vmem [shape: f32[1,256], index: 13, kind: input, shape index: {}]
  %s14 = inlined_call_operand.vmem [shape: bf16[256,64], index: 14, kind: input, shape index: {}]
  %s15 = inlined_call_operand.vmem [shape: f32[1,64], index: 15, kind: input, shape index: {}]
  %s16 = inlined_call_operand.vmem [shape: f32[2,256,64], index: 16, kind: output, shape index: {}]
  %s17 = sld [smem:[#allocation0]]
  $region105: #{tpu_custom_call.1} parent=0
    _
  %s19 = ssub.s32 1, %s17
  %s20 = scalar_select 0, %s19, %s17
  loop: start=0, step=1, limit=10
  $region2: #{tpu_custom_call.1} parent=0 // loop_pre_header
    _
  $region3: #{tpu_custom_call.1} parent=0 // loop_header
    %s22 = sphi 0, %s26
    %p23 = scmp.ge.s32.totalorder %s22, 10
    %s29 = sphi 0, %s48
    %s30 = sphi 0, %s44
    %s31 = sphi 0, %s40
    %s32 = sphi 0, %s29
    %s33 = sphi 0, %s30
    %s34 = sphi 0, %s31
    %s35 = sphi 0, %s32
    %s36 = sphi 0, %s33
    %s37 = sphi 0, %s34
    %s53 = sphi 0, %s55
    %s56 = sphi 0, %s53
    %s57 = sphi 0, %s56
    %s73 = sphi 0, %s57
    %s81 = sphi 0, %s83
    %s84 = sphi 0, %s81
    %s85 = sphi 0, %s84
    %s101 = sphi 0, %s85
    %s107 = sphi 0, %s109
    %s110 = sphi 0, %s107
    %s111 = sphi 0, %s110
    %s127 = sphi 0, %s111
    %s131 = sphi 0, %s131
    %s133 = sphi 0, %s131
    %s134 = sphi 0, %s133
    %s148 = sphi 0, %s134
    %s152 = sphi 0, %s152
    %s154 = sphi 0, %s152
    %s155 = sphi 0, %s154
    %s169 = sphi 0, %s155
    %s173 = sphi 0, %s173
    %s175 = sphi 0, %s173
    %s176 = sphi 0, %s175
    %s190 = sphi 0, %s176
    %s194 = sphi 0, %s194
    %s196 = sphi 0, %s194
    %s197 = sphi 0, %s196
    %s211 = sphi 0, %s197
    %s215 = sphi 0, %s215
    %s217 = sphi 0, %s215
    %s218 = sphi 0, %s217
    %s232 = sphi 0, %s218
    %s236 = sphi 0, %s236
    %s238 = sphi 0, %s236
    %s239 = sphi 0, %s238
    %s253 = sphi 0, %s239
    %s257 = sphi 0, %s257
    %s259 = sphi 0, %s257
    %s260 = sphi 0, %s259
    %s274 = sphi 0, %s260
    %s278 = sphi 0, %s278
    %s280 = sphi 0, %s278
    %s281 = sphi 0, %s280
    %s295 = sphi 0, %s281
    %s299 = sphi 0, %s299
    %s301 = sphi 0, %s299
    %s302 = sphi 0, %s301
    %s316 = sphi 0, %s302
    %s320 = sphi 0, %s320
    %s322 = sphi 0, %s320
    %s323 = sphi 0, %s322
    %s337 = sphi 0, %s323
    %s341 = sphi 0, %s341
    %s343 = sphi 0, %s341
    %s344 = sphi 0, %s343
    %s358 = sphi 0, %s344
    %s362 = sphi 0, %s362
    %s364 = sphi 0, %s362
    %s365 = sphi 0, %s364
    %s379 = sphi 0, %s365
    %s383 = sphi 0, %s383
    %s385 = sphi 0, %s383
    %s386 = sphi 0, %s385
    %s400 = sphi 0, %s386
    %s408 = sphi 0, %s410
    %s411 = sphi 0, %s408
    %s412 = sphi 0, %s411
    %s428 = sphi 0, %s412
  $region4: #{tpu_custom_call.1} parent=0 // loop_header_branch
    %25 = sbr.rel (%p23) target = $region8
  $region5: #{tpu_custom_call.1} parent=0 // loop_body
    %s27 = ssub.s32 %s22, 1
    %s28 = ssub.s32 %s22, 2
    %s38 = sadd.s32 1, %s31
    %p39 = scmp.ge.s32.totalorder %s38, 2
    %s40 = scalar_select %p39, 0, %s38
    %s41 = sadd.s32 1, %s30
    %s42 = scalar_select %p39, %s41, %s30
    %p43 = scmp.ge.s32.totalorder %s42, 2
    %s44 = scalar_select %p43, 0, %s42
    %s45 = sadd.s32 1, %s29
    %s46 = scalar_select %p43, %s45, %s29
    %p47 = scmp.ge.s32.totalorder %s46, 2
    %s48 = scalar_select %p47, 0, %s46
    %s49 = ssub.s32 %s29, %s48
    %s50 = ssub.s32 %s30, %s44
    %s51 = sor.u32 %s49, %s50
    %p52 = scmp.eq.s32.totalorder %s51, 0
    %s54 = sadd.s32 %s53, 1
    %s55 = scalar_select %p52, %s53, %s54
    %p58 = pneg %p52
    %p59 = scmp.eq.s32.totalorder %s22, 7
    %p60 = por %p58, %p59
    %p61 = scmp.ne.s32.totalorder %s53, %s56
    %p62 = scmp.eq.s32.totalorder %s22, 0
    %p63 = por %p61, %p62
    %p64 = scmp.ne.s32.totalorder %s53, %s56
    %p65 = scmp.eq.s32.totalorder %s27, 7
    %p66 = por %p64, %p65
    %p67 = scmp.ne.s32.totalorder %s56, %s57
    %p68 = scmp.eq.s32.totalorder %s27, 0
    %p69 = por %p67, %p68
    %p70 = scmp.ne.s32.totalorder %s56, %s57
    %p71 = scmp.eq.s32.totalorder %s28, 7
    %p72 = por %p70, %p71
    %p74 = scmp.ne.s32.totalorder %s57, %s73
    %p75 = scmp.eq.s32.totalorder %s28, 0
    %p76 = por %p74, %p75
    %s77 = ssub.s32 %s29, %s48
    %s78 = ssub.s32 %s31, %s40
    %s79 = sor.u32 %s77, %s78
    %p80 = scmp.eq.s32.totalorder %s79, 0
    %s82 = sadd.s32 %s81, 1
    %s83 = scalar_select %p80, %s81, %s82
    %p86 = pneg %p80
    %p87 = scmp.eq.s32.totalorder %s22, 7
    %p88 = por %p86, %p87
    %p89 = scmp.ne.s32.totalorder %s81, %s84
    %p90 = scmp.eq.s32.totalorder %s22, 0
    %p91 = por %p89, %p90
    %p92 = scmp.ne.s32.totalorder %s81, %s84
    %p93 = scmp.eq.s32.totalorder %s27, 7
    %p94 = por %p92, %p93
    %p95 = scmp.ne.s32.totalorder %s84, %s85
    %p96 = scmp.eq.s32.totalorder %s27, 0
    %p97 = por %p95, %p96
    %p98 = scmp.ne.s32.totalorder %s84, %s85
    %p99 = scmp.eq.s32.totalorder %s28, 7
    %p100 = por %p98, %p99
    %p102 = scmp.ne.s32.totalorder %s85, %s101
    %p103 = scmp.eq.s32.totalorder %s28, 0
    %p104 = por %p102, %p103
    %s105 = ssub.s32 %s29, %s48
    %p106 = scmp.eq.s32.totalorder %s105, 0
    %s108 = sadd.s32 %s107, 1
    %s109 = scalar_select %p106, %s107, %s108
    %p112 = pneg %p106
    %p113 = scmp.eq.s32.totalorder %s22, 7
    %p114 = por %p112, %p113
    %p115 = scmp.ne.s32.totalorder %s107, %s110
    %p116 = scmp.eq.s32.totalorder %s22, 0
    %p117 = por %p115, %p116
    %p118 = scmp.ne.s32.totalorder %s107, %s110
    %p119 = scmp.eq.s32.totalorder %s27, 7
    %p120 = por %p118, %p119
    %p121 = scmp.ne.s32.totalorder %s110, %s111
    %p122 = scmp.eq.s32.totalorder %s27, 0
    %p123 = por %p121, %p122
    %p124 = scmp.ne.s32.totalorder %s110, %s111
    %p125 = scmp.eq.s32.totalorder %s28, 7
    %p126 = por %p124, %p125
    %p128 = scmp.ne.s32.totalorder %s111, %s127
    %p129 = scmp.eq.s32.totalorder %s28, 0
    %p130 = por %p128, %p129
    %s132 = sadd.s32 %s131, 1
    %p135 = scmp.eq.s32.totalorder %s22, 7
    %p136 = scmp.ne.s32.totalorder %s131, %s133
    %p137 = scmp.eq.s32.totalorder %s22, 0
    %p138 = por %p136, %p137
    %p139 = scmp.ne.s32.totalorder %s131, %s133
    %p140 = scmp.eq.s32.totalorder %s27, 7
    %p141 = por %p139, %p140
    %p142 = scmp.ne.s32.totalorder %s133, %s134
    %p143 = scmp.eq.s32.totalorder %s27, 0
    %p144 = por %p142, %p143
    %p145 = scmp.ne.s32.totalorder %s133, %s134
    %p146 = scmp.eq.s32.totalorder %s28, 7
    %p147 = por %p145, %p146
    %p149 = scmp.ne.s32.totalorder %s134, %s148
    %p150 = scmp.eq.s32.totalorder %s28, 0
    %p151 = por %p149, %p150
    %s153 = sadd.s32 %s152, 1
    %p156 = scmp.eq.s32.totalorder %s22, 7
    %p157 = scmp.ne.s32.totalorder %s152, %s154
    %p158 = scmp.eq.s32.totalorder %s22, 0
    %p159 = por %p157, %p158
    %p160 = scmp.ne.s32.totalorder %s152, %s154
    %p161 = scmp.eq.s32.totalorder %s27, 7
    %p162 = por %p160, %p161
    %p163 = scmp.ne.s32.totalorder %s154, %s155
    %p164 = scmp.eq.s32.totalorder %s27, 0
    %p165 = por %p163, %p164
    %p166 = scmp.ne.s32.totalorder %s154, %s155
    %p167 = scmp.eq.s32.totalorder %s28, 7
    %p168 = por %p166, %p167
    %p170 = scmp.ne.s32.totalorder %s155, %s169
    %p171 = scmp.eq.s32.totalorder %s28, 0
    %p172 = por %p170, %p171
    %s174 = sadd.s32 %s173, 1
    %p177 = scmp.eq.s32.totalorder %s22, 7
    %p178 = scmp.ne.s32.totalorder %s173, %s175
    %p179 = scmp.eq.s32.totalorder %s22, 0
    %p180 = por %p178, %p179
    %p181 = scmp.ne.s32.totalorder %s173, %s175
    %p182 = scmp.eq.s32.totalorder %s27, 7
    %p183 = por %p181, %p182
    %p184 = scmp.ne.s32.totalorder %s175, %s176
    %p185 = scmp.eq.s32.totalorder %s27, 0
    %p186 = por %p184, %p185
    %p187 = scmp.ne.s32.totalorder %s175, %s176
    %p188 = scmp.eq.s32.totalorder %s28, 7
    %p189 = por %p187, %p188
    %p191 = scmp.ne.s32.totalorder %s176, %s190
    %p192 = scmp.eq.s32.totalorder %s28, 0
    %p193 = por %p191, %p192
    %s195 = sadd.s32 %s194, 1
    %p198 = scmp.eq.s32.totalorder %s22, 7
    %p199 = scmp.ne.s32.totalorder %s194, %s196
    %p200 = scmp.eq.s32.totalorder %s22, 0
    %p201 = por %p199, %p200
    %p202 = scmp.ne.s32.totalorder %s194, %s196
    %p203 = scmp.eq.s32.totalorder %s27, 7
    %p204 = por %p202, %p203
    %p205 = scmp.ne.s32.totalorder %s196, %s197
    %p206 = scmp.eq.s32.totalorder %s27, 0
    %p207 = por %p205, %p206
    %p208 = scmp.ne.s32.totalorder %s196, %s197
    %p209 = scmp.eq.s32.totalorder %s28, 7
    %p210 = por %p208, %p209
    %p212 = scmp.ne.s32.totalorder %s197, %s211
    %p213 = scmp.eq.s32.totalorder %s28, 0
    %p214 = por %p212, %p213
    %s216 = sadd.s32 %s215, 1
    %p219 = scmp.eq.s32.totalorder %s22, 7
    %p220 = scmp.ne.s32.totalorder %s215, %s217
    %p221 = scmp.eq.s32.totalorder %s22, 0
    %p222 = por %p220, %p221
    %p223 = scmp.ne.s32.totalorder %s215, %s217
    %p224 = scmp.eq.s32.totalorder %s27, 7
    %p225 = por %p223, %p224
    %p226 = scmp.ne.s32.totalorder %s217, %s218
    %p227 = scmp.eq.s32.totalorder %s27, 0
    %p228 = por %p226, %p227
    %p229 = scmp.ne.s32.totalorder %s217, %s218
    %p230 = scmp.eq.s32.totalorder %s28, 7
    %p231 = por %p229, %p230
    %p233 = scmp.ne.s32.totalorder %s218, %s232
    %p234 = scmp.eq.s32.totalorder %s28, 0
    %p235 = por %p233, %p234
    %s237 = sadd.s32 %s236, 1
    %p240 = scmp.eq.s32.totalorder %s22, 7
    %p241 = scmp.ne.s32.totalorder %s236, %s238
    %p242 = scmp.eq.s32.totalorder %s22, 0
    %p243 = por %p241, %p242
    %p244 = scmp.ne.s32.totalorder %s236, %s238
    %p245 = scmp.eq.s32.totalorder %s27, 7
    %p246 = por %p244, %p245
    %p247 = scmp.ne.s32.totalorder %s238, %s239
    %p248 = scmp.eq.s32.totalorder %s27, 0
    %p249 = por %p247, %p248
    %p250 = scmp.ne.s32.totalorder %s238, %s239
    %p251 = scmp.eq.s32.totalorder %s28, 7
    %p252 = por %p250, %p251
    %p254 = scmp.ne.s32.totalorder %s239, %s253
    %p255 = scmp.eq.s32.totalorder %s28, 0
    %p256 = por %p254, %p255
    %s258 = sadd.s32 %s257, 1
    %p261 = scmp.eq.s32.totalorder %s22, 7
    %p262 = scmp.ne.s32.totalorder %s257, %s259
    %p263 = scmp.eq.s32.totalorder %s22, 0
    %p264 = por %p262, %p263
    %p265 = scmp.ne.s32.totalorder %s257, %s259
    %p266 = scmp.eq.s32.totalorder %s27, 7
    %p267 = por %p265, %p266
    %p268 = scmp.ne.s32.totalorder %s259, %s260
    %p269 = scmp.eq.s32.totalorder %s27, 0
    %p270 = por %p268, %p269
    %p271 = scmp.ne.s32.totalorder %s259, %s260
    %p272 = scmp.eq.s32.totalorder %s28, 7
    %p273 = por %p271, %p272
    %p275 = scmp.ne.s32.totalorder %s260, %s274
    %p276 = scmp.eq.s32.totalorder %s28, 0
    %p277 = por %p275, %p276
    %s279 = sadd.s32 %s278, 1
    %p282 = scmp.eq.s32.totalorder %s22, 7
    %p283 = scmp.ne.s32.totalorder %s278, %s280
    %p284 = scmp.eq.s32.totalorder %s22, 0
    %p285 = por %p283, %p284
    %p286 = scmp.ne.s32.totalorder %s278, %s280
    %p287 = scmp.eq.s32.totalorder %s27, 7
    %p288 = por %p286, %p287
    %p289 = scmp.ne.s32.totalorder %s280, %s281
    %p290 = scmp.eq.s32.totalorder %s27, 0
    %p291 = por %p289, %p290
    %p292 = scmp.ne.s32.totalorder %s280, %s281
    %p293 = scmp.eq.s32.totalorder %s28, 7
    %p294 = por %p292, %p293
    %p296 = scmp.ne.s32.totalorder %s281, %s295
    %p297 = scmp.eq.s32.totalorder %s28, 0
    %p298 = por %p296, %p297
    %s300 = sadd.s32 %s299, 1
    %p303 = scmp.eq.s32.totalorder %s22, 7
    %p304 = scmp.ne.s32.totalorder %s299, %s301
    %p305 = scmp.eq.s32.totalorder %s22, 0
    %p306 = por %p304, %p305
    %p307 = scmp.ne.s32.totalorder %s299, %s301
    %p308 = scmp.eq.s32.totalorder %s27, 7
    %p309 = por %p307, %p308
    %p310 = scmp.ne.s32.totalorder %s301, %s302
    %p311 = scmp.eq.s32.totalorder %s27, 0
    %p312 = por %p310, %p311
    %p313 = scmp.ne.s32.totalorder %s301, %s302
    %p314 = scmp.eq.s32.totalorder %s28, 7
    %p315 = por %p313, %p314
    %p317 = scmp.ne.s32.totalorder %s302, %s316
    %p318 = scmp.eq.s32.totalorder %s28, 0
    %p319 = por %p317, %p318
    %s321 = sadd.s32 %s320, 1
    %p324 = scmp.eq.s32.totalorder %s22, 7
    %p325 = scmp.ne.s32.totalorder %s320, %s322
    %p326 = scmp.eq.s32.totalorder %s22, 0
    %p327 = por %p325, %p326
    %p328 = scmp.ne.s32.totalorder %s320, %s322
    %p329 = scmp.eq.s32.totalorder %s27, 7
    %p330 = por %p328, %p329
    %p331 = scmp.ne.s32.totalorder %s322, %s323
    %p332 = scmp.eq.s32.totalorder %s27, 0
    %p333 = por %p331, %p332
    %p334 = scmp.ne.s32.totalorder %s322, %s323
    %p335 = scmp.eq.s32.totalorder %s28, 7
    %p336 = por %p334, %p335
    %p338 = scmp.ne.s32.totalorder %s323, %s337
    %p339 = scmp.eq.s32.totalorder %s28, 0
    %p340 = por %p338, %p339
    %s342 = sadd.s32 %s341, 1
    %p345 = scmp.eq.s32.totalorder %s22, 7
    %p346 = scmp.ne.s32.totalorder %s341, %s343
    %p347 = scmp.eq.s32.totalorder %s22, 0
    %p348 = por %p346, %p347
    %p349 = scmp.ne.s32.totalorder %s341, %s343
    %p350 = scmp.eq.s32.totalorder %s27, 7
    %p351 = por %p349, %p350
    %p352 = scmp.ne.s32.totalorder %s343, %s344
    %p353 = scmp.eq.s32.totalorder %s27, 0
    %p354 = por %p352, %p353
    %p355 = scmp.ne.s32.totalorder %s343, %s344
    %p356 = scmp.eq.s32.totalorder %s28, 7
    %p357 = por %p355, %p356
    %p359 = scmp.ne.s32.totalorder %s344, %s358
    %p360 = scmp.eq.s32.totalorder %s28, 0
    %p361 = por %p359, %p360
    %s363 = sadd.s32 %s362, 1
    %p366 = scmp.eq.s32.totalorder %s22, 7
    %p367 = scmp.ne.s32.totalorder %s362, %s364
    %p368 = scmp.eq.s32.totalorder %s22, 0
    %p369 = por %p367, %p368
    %p370 = scmp.ne.s32.totalorder %s362, %s364
    %p371 = scmp.eq.s32.totalorder %s27, 7
    %p372 = por %p370, %p371
    %p373 = scmp.ne.s32.totalorder %s364, %s365
    %p374 = scmp.eq.s32.totalorder %s27, 0
    %p375 = por %p373, %p374
    %p376 = scmp.ne.s32.totalorder %s364, %s365
    %p377 = scmp.eq.s32.totalorder %s28, 7
    %p378 = por %p376, %p377
    %p380 = scmp.ne.s32.totalorder %s365, %s379
    %p381 = scmp.eq.s32.totalorder %s28, 0
    %p382 = por %p380, %p381
    %s384 = sadd.s32 %s383, 1
    %p387 = scmp.eq.s32.totalorder %s22, 7
    %p388 = scmp.ne.s32.totalorder %s383, %s385
    %p389 = scmp.eq.s32.totalorder %s22, 0
    %p390 = por %p388, %p389
    %p391 = scmp.ne.s32.totalorder %s383, %s385
    %p392 = scmp.eq.s32.totalorder %s27, 7
    %p393 = por %p391, %p392
    %p394 = scmp.ne.s32.totalorder %s385, %s386
    %p395 = scmp.eq.s32.totalorder %s27, 0
    %p396 = por %p394, %p395
    %p397 = scmp.ne.s32.totalorder %s385, %s386
    %p398 = scmp.eq.s32.totalorder %s28, 7
    %p399 = por %p397, %p398
    %p401 = scmp.ne.s32.totalorder %s386, %s400
    %p402 = scmp.eq.s32.totalorder %s28, 0
    %p403 = por %p401, %p402
    %s404 = ssub.s32 %s29, %s48
    %s405 = ssub.s32 %s30, %s44
    %s406 = sor.u32 %s404, %s405
    %p407 = scmp.eq.s32.totalorder %s406, 0
    %s409 = sadd.s32 %s408, 1
    %s410 = scalar_select %p407, %s408, %s409
    %p413 = pneg %p407
    %p414 = scmp.eq.s32.totalorder %s22, 7
    %p415 = por %p413, %p414
    %p416 = scmp.ne.s32.totalorder %s408, %s411
    %p417 = scmp.eq.s32.totalorder %s22, 0
    %p418 = por %p416, %p417
    %p419 = scmp.ne.s32.totalorder %s408, %s411
    %p420 = scmp.eq.s32.totalorder %s27, 7
    %p421 = por %p419, %p420
    %p422 = scmp.ne.s32.totalorder %s411, %s412
    %p423 = scmp.eq.s32.totalorder %s27, 0
    %p424 = por %p422, %p423
    %p425 = scmp.ne.s32.totalorder %s411, %s412
    %p426 = scmp.eq.s32.totalorder %s28, 7
    %p427 = por %p425, %p426
    %p429 = scmp.ne.s32.totalorder %s412, %s428
    %p430 = scmp.eq.s32.totalorder %s28, 0
    %p431 = por %p429, %p430
    %p432 = scmp.le.s32.totalorder 1, %s22
    %p433 = scmp.lt.s32.totalorder %s22, 9
    %p434 = pnand %p432, %p433
    %p435 = pneg %p434
    // Predicated region
    $region9: #{tpu_custom_call.1} parent=5 // pred_check
      _
    $region10: #{tpu_custom_call.1} parent=5 // pred_check_branch
      %437 = sbr.rel (%p434) target = $region12
    $region11: #{tpu_custom_call.1} parent=5 // pred_region
      %s438 = ssub.s32 %s22, 1
      // Predicated region
      $region13: #{tpu_custom_call.1} parent=11 // pred_check
        %p439 = pneg %p144
      $region14: #{tpu_custom_call.1} parent=11 // pred_check_branch
        %441 = sbr.rel (%p439) target = $region16
      $region15: #{tpu_custom_call.1} parent=11 // pred_region
        _
      $region16: #{tpu_custom_call.1} parent=11 // pred_fallthru
        _
      // Predicated region
      $region17: #{tpu_custom_call.1} parent=11 // pred_check
        %p442 = pneg %p165
      $region18: #{tpu_custom_call.1} parent=11 // pred_check_branch
        %444 = sbr.rel (%p442) target = $region20
      $region19: #{tpu_custom_call.1} parent=11 // pred_region
        _
      $region20: #{tpu_custom_call.1} parent=11 // pred_fallthru
        _
      // Predicated region
      $region21: #{tpu_custom_call.1} parent=11 // pred_check
        %p445 = pneg %p186
      $region22: #{tpu_custom_call.1} parent=11 // pred_check_branch
        %447 = sbr.rel (%p445) target = $region24
      $region23: #{tpu_custom_call.1} parent=11 // pred_region
        _
      $region24: #{tpu_custom_call.1} parent=11 // pred_fallthru
        _
      // Predicated region
      $region25: #{tpu_custom_call.1} parent=11 // pred_check
        %p448 = pneg %p207
      $region26: #{tpu_custom_call.1} parent=11 // pred_check_branch
        %450 = sbr.rel (%p448) target = $region28
      $region27: #{tpu_custom_call.1} parent=11 // pred_region
        _
      $region28: #{tpu_custom_call.1} parent=11 // pred_fallthru
        _
      // Predicated region
      $region29: #{tpu_custom_call.1} parent=11 // pred_check
        %p451 = pneg %p228
      $region30: #{tpu_custom_call.1} parent=11 // pred_check_branch
        %453 = sbr.rel (%p451) target = $region32
      $region31: #{tpu_custom_call.1} parent=11 // pred_region
        _
      $region32: #{tpu_custom_call.1} parent=11 // pred_fallthru
        _
      // Predicated region
      $region33: #{tpu_custom_call.1} parent=11 // pred_check
        %p454 = pneg %p249
      $region34: #{tpu_custom_call.1} parent=11 // pred_check_branch
        %456 = sbr.rel (%p454) target = $region36
      $region35: #{tpu_custom_call.1} parent=11 // pred_region
        _
      $region36: #{tpu_custom_call.1} parent=11 // pred_fallthru
        _
      // Predicated region
      $region37: #{tpu_custom_call.1} parent=11 // pred_check
        %p457 = pneg %p270
      $region38: #{tpu_custom_call.1} parent=11 // pred_check_branch
        %459 = sbr.rel (%p457) target = $region40
      $region39: #{tpu_custom_call.1} parent=11 // pred_region
        _
      $region40: #{tpu_custom_call.1} parent=11 // pred_fallthru
        _
      // Predicated region
      $region41: #{tpu_custom_call.1} parent=11 // pred_check
        %p460 = pneg %p291
      $region42: #{tpu_custom_call.1} parent=11 // pred_check_branch
        %462 = sbr.rel (%p460) target = $region44
      $region43: #{tpu_custom_call.1} parent=11 // pred_region
        _
      $region44: #{tpu_custom_call.1} parent=11 // pred_fallthru
        _
      // Predicated region
      $region45: #{tpu_custom_call.1} parent=11 // pred_check
        %p463 = pneg %p312
      $region46: #{tpu_custom_call.1} parent=11 // pred_check_branch
        %465 = sbr.rel (%p463) target = $region48
      $region47: #{tpu_custom_call.1} parent=11 // pred_region
        _
      $region48: #{tpu_custom_call.1} parent=11 // pred_fallthru
        _
      // Predicated region
      $region49: #{tpu_custom_call.1} parent=11 // pred_check
        %p466 = pneg %p333
      $region50: #{tpu_custom_call.1} parent=11 // pred_check_branch
        %468 = sbr.rel (%p466) target = $region52
      $region51: #{tpu_custom_call.1} parent=11 // pred_region
        _
      $region52: #{tpu_custom_call.1} parent=11 // pred_fallthru
        _
      // Predicated region
      $region53: #{tpu_custom_call.1} parent=11 // pred_check
        %p469 = pneg %p354
      $region54: #{tpu_custom_call.1} parent=11 // pred_check_branch
        %471 = sbr.rel (%p469) target = $region56
      $region55: #{tpu_custom_call.1} parent=11 // pred_region
        _
      $region56: #{tpu_custom_call.1} parent=11 // pred_fallthru
        _
      // Predicated region
      $region57: #{tpu_custom_call.1} parent=11 // pred_check
        %p472 = pneg %p375
      $region58: #{tpu_custom_call.1} parent=11 // pred_check_branch
        %474 = sbr.rel (%p472) target = $region60
      $region59: #{tpu_custom_call.1} parent=11 // pred_region
        _
      $region60: #{tpu_custom_call.1} parent=11 // pred_fallthru
        _
      // Predicated region
      $region61: #{tpu_custom_call.1} parent=11 // pred_check
        %p475 = pneg %p396
      $region62: #{tpu_custom_call.1} parent=11 // pred_check_branch
        %477 = sbr.rel (%p475) target = $region64
      $region63: #{tpu_custom_call.1} parent=11 // pred_region
        _
      $region64: #{tpu_custom_call.1} parent=11 // pred_fallthru
        _
    $region12: #{tpu_custom_call.1} parent=5 // pred_fallthru
      _
    %p478 = scmp.lt.s32.totalorder %s22, 8
    // Predicated region
    $region65: #{tpu_custom_call.1} parent=5 // pred_check
      %p479 = pneg %p478
    $region66: #{tpu_custom_call.1} parent=5 // pred_check_branch
      %481 = sbr.rel (%p479) target = $region68
    $region67: #{tpu_custom_call.1} parent=5 // pred_region
      // Predicated region
      $region69: #{tpu_custom_call.1} parent=67 // pred_check
        %p482 = pneg %p63
      $region70: #{tpu_custom_call.1} parent=67 // pred_check_branch
        %484 = sbr.rel (%p482) target = $region72
      $region71: #{tpu_custom_call.1} parent=67 // pred_region
        %s485 = smul.u32 16, %s30
        %p486 = scmp.lt.s32.totalorder %s29, 1
        %s487 = scalar_select %p486, %s29, 1
        %p488 = scmp.lt.s32.totalorder %s485, 31
        %s489 = scalar_select %p488, %s485, 31
        %s490 = smul.addr %s487, 32
        %s491 = sadd.s32 %s489, %s490
        %s492 = smul.addr %s491, 8
        %s493 = scalar_lea.vmem %s0, %s492
        %s494 = smul.u32 16, %s30
      $region72: #{tpu_custom_call.1} parent=67 // pred_fallthru
        _
      // Predicated region
      $region73: #{tpu_custom_call.1} parent=67 // pred_check
        %p495 = pneg %p91
      $region74: #{tpu_custom_call.1} parent=67 // pred_check_branch
        %497 = sbr.rel (%p495) target = $region76
      $region75: #{tpu_custom_call.1} parent=67 // pred_region
        %s498 = smul.u32 16, %s31
        %p499 = scmp.lt.s32.totalorder %s29, 1
        %s500 = scalar_select %p499, %s29, 1
        %p501 = scmp.lt.s32.totalorder %s498, 31
        %s502 = scalar_select %p501, %s498, 31
        %s503 = smul.addr %s500, 32
        %s504 = sadd.s32 %s502, %s503
        %s505 = smul.addr %s504, 8
        %s506 = scalar_lea.vmem %s1, %s505
        %s507 = smul.u32 16, %s31
      $region76: #{tpu_custom_call.1} parent=67 // pred_fallthru
        _
      // Predicated region
      $region77: #{tpu_custom_call.1} parent=67 // pred_check
        %p508 = pneg %p117
      $region78: #{tpu_custom_call.1} parent=67 // pred_check_branch
        %510 = sbr.rel (%p508) target = $region80
      $region79: #{tpu_custom_call.1} parent=67 // pred_region
        %p511 = scmp.lt.s32.totalorder %s29, 1
        %s512 = scalar_select %p511, %s29, 1
        %s513 = scalar_lea.vmem %s2, %s512
      $region80: #{tpu_custom_call.1} parent=67 // pred_fallthru
        _
    $region68: #{tpu_custom_call.1} parent=5 // pred_fallthru
      _
    %p514 = scmp.le.s32.totalorder 1, %s22
    %p515 = scmp.lt.s32.totalorder %s22, 9
    %p516 = pnand %p514, %p515
    %p517 = pneg %p516
    // Predicated region
    $region81: #{tpu_custom_call.1} parent=5 // pred_check
      _
    $region82: #{tpu_custom_call.1} parent=5 // pred_check_branch
      %519 = sbr.rel (%p516) target = $region84
    $region83: #{tpu_custom_call.1} parent=5 // pred_region
      %s520 = ssub.s32 %s22, 1
      %s521 = smul.u32 16, %s33
      %p522 = scmp.lt.s32.totalorder %s32, 1
      %s523 = scalar_select %p522, %s32, 1
      %p524 = scmp.lt.s32.totalorder %s521, 31
      %s525 = scalar_select %p524, %s521, 31
      %s526 = smul.addr %s523, 32
      %s527 = sadd.s32 %s525, %s526
      %s528 = smul.addr %s527, 8
      %s529 = scalar_lea.vmem %s0, %s528
      %p530 = pneg %p69
      %p531 = pneg %p66
      %s532 = smul.u32 16, %s34
      %p533 = scmp.lt.s32.totalorder %s32, 1
      %s534 = scalar_select %p533, %s32, 1
      %p535 = scmp.lt.s32.totalorder %s532, 31
      %s536 = scalar_select %p535, %s532, 31
      %s537 = smul.addr %s534, 32
      %s538 = sadd.s32 %s536, %s537
      %s539 = smul.addr %s538, 8
      %s540 = scalar_lea.vmem %s1, %s539
      %p541 = pneg %p97
      %p542 = pneg %p94
      %p543 = scmp.lt.s32.totalorder %s32, 1
      %s544 = scalar_select %p543, %s32, 1
      %s545 = scalar_lea.vmem %s2, %s544
      %p546 = pneg %p123
      %p547 = pneg %p120
      %p548 = pneg %p144
      %p549 = pneg %p141
      %p550 = pneg %p165
      %p551 = pneg %p162
      %p552 = pneg %p186
      %p553 = pneg %p183
      %p554 = pneg %p207
      %p555 = pneg %p204
      %p556 = pneg %p228
      %p557 = pneg %p225
      %p558 = pneg %p249
      %p559 = pneg %p246
      %p560 = pneg %p270
      %p561 = pneg %p267
      %p562 = pneg %p291
      %p563 = pneg %p288
      %p564 = pneg %p312
      %p565 = pneg %p309
      %p566 = pneg %p333
      %p567 = pneg %p330
      %p568 = pneg %p354
      %p569 = pneg %p351
      %p570 = pneg %p375
      %p571 = pneg %p372
      %p572 = pneg %p396
      %p573 = pneg %p393
      %p574 = pneg %p424
      %p575 = pneg %p421
      %s576 = smul.u32 16, %s33
      %p577 = scmp.lt.s32.totalorder %s32, 1
      %s578 = scalar_select %p577, %s32, 1
      %p579 = scmp.lt.s32.totalorder %s576, 31
      %s580 = scalar_select %p579, %s576, 31
      %s581 = smul.addr %s578, 32
      %s582 = sadd.s32 %s580, %s581
      %s583 = smul.addr %s582, 8
      %s584 = scalar_lea.vmem %s16, %s583
      %s585 = smul.u32 16, %s33
      %p586 = scmp.lt.s32.totalorder %s32, 1
      %s587 = scalar_select %p586, %s32, 1
      %p588 = scmp.lt.s32.totalorder %s585, 31
      %s589 = scalar_select %p588, %s585, 31
      %s590 = smul.addr %s587, 32
      %s591 = sadd.s32 %s589, %s590
      %s592 = smul.addr %s591, 8
      %s593 = scalar_lea.vmem %s0, %s592
      %s594 = smul.u32 16, %s33
      %s595 = smul.u32 16, %s34
      %p596 = scmp.lt.s32.totalorder %s32, 1
      %s597 = scalar_select %p596, %s32, 1
      %p598 = scmp.lt.s32.totalorder %s595, 31
      %s599 = scalar_select %p598, %s595, 31
      %s600 = smul.addr %s597, 32
      %s601 = sadd.s32 %s599, %s600
      %s602 = smul.addr %s601, 8
      %s603 = scalar_lea.vmem %s1, %s602
      %s604 = smul.u32 16, %s34
      %p605 = scmp.lt.s32.totalorder %s32, 1
      %s606 = scalar_select %p605, %s32, 1
      %s607 = scalar_lea.vmem %s2, %s606
      %s608 = smul.u32 16, %s33
      %p609 = scmp.lt.s32.totalorder %s32, 1
      %s610 = scalar_select %p609, %s32, 1
      %p611 = scmp.lt.s32.totalorder %s608, 31
      %s612 = scalar_select %p611, %s608, 31
      %s613 = smul.addr %s610, 32
      %s614 = sadd.s32 %s612, %s613
      %s615 = smul.addr %s614, 8
      %s616 = scalar_lea.vmem %s16, %s615
      %s617 = smul.u32 16, %s33
      %v619 = vld [vmem:[%s607] sm:$0x1]
      %p620 = scmp.eq.s32.totalorder %s34, 0
      // Predicated region
      $region85: #{tpu_custom_call.1} parent=83 // pred_check
        %p621 = pneg %p620
      $region86: #{tpu_custom_call.1} parent=83 // pred_check_branch
        %623 = sbr.rel (%p621) target = $region88
      $region87: #{tpu_custom_call.1} parent=83 // pred_region
        %vm624 = vcmask 7168
        %625 = vst.msk [vmem:[#allocation2] sm:$0xff] %vm624, -inf
        %626 = vst.msk [vmem:[#allocation2 + $0x8] sm:$0xff] %vm624, -inf
        %627 = vst.msk [vmem:[#allocation2 + $0x10] sm:$0xff] %vm624, -inf
        %628 = vst.msk [vmem:[#allocation2 + $0x18] sm:$0xff] %vm624, -inf
        %629 = vst.msk [vmem:[#allocation2 + $0x20] sm:$0xff] %vm624, -inf
        %630 = vst.msk [vmem:[#allocation2 + $0x28] sm:$0xff] %vm624, -inf
        %631 = vst.msk [vmem:[#allocation2 + $0x30] sm:$0xff] %vm624, -inf
        %632 = vst.msk [vmem:[#allocation2 + $0x38] sm:$0xff] %vm624, -inf
        %633 = vst.msk [vmem:[#allocation2 + $0x40] sm:$0xff] %vm624, -inf
        %634 = vst.msk [vmem:[#allocation2 + $0x48] sm:$0xff] %vm624, -inf
        %635 = vst.msk [vmem:[#allocation2 + $0x50] sm:$0xff] %vm624, -inf
        %636 = vst.msk [vmem:[#allocation2 + $0x58] sm:$0xff] %vm624, -inf
        %637 = vst.msk [vmem:[#allocation2 + $0x60] sm:$0xff] %vm624, -inf
        %638 = vst.msk [vmem:[#allocation2 + $0x68] sm:$0xff] %vm624, -inf
        %639 = vst.msk [vmem:[#allocation2 + $0x70] sm:$0xff] %vm624, -inf
        %640 = vst.msk [vmem:[#allocation2 + $0x78] sm:$0xff] %vm624, -inf
        %641 = vst.msk [vmem:[#allocation3] sm:$0xff] %vm624, 0.0
        %642 = vst.msk [vmem:[#allocation3 + $0x8] sm:$0xff] %vm624, 0.0
        %643 = vst.msk [vmem:[#allocation3 + $0x10] sm:$0xff] %vm624, 0.0
        %644 = vst.msk [vmem:[#allocation3 + $0x18] sm:$0xff] %vm624, 0.0
        %645 = vst.msk [vmem:[#allocation3 + $0x20] sm:$0xff] %vm624, 0.0
        %646 = vst.msk [vmem:[#allocation3 + $0x28] sm:$0xff] %vm624, 0.0
        %647 = vst.msk [vmem:[#allocation3 + $0x30] sm:$0xff] %vm624, 0.0
        %648 = vst.msk [vmem:[#allocation3 + $0x38] sm:$0xff] %vm624, 0.0
        %649 = vst.msk [vmem:[#allocation3 + $0x40] sm:$0xff] %vm624, 0.0
        %650 = vst.msk [vmem:[#allocation3 + $0x48] sm:$0xff] %vm624, 0.0
        %651 = vst.msk [vmem:[#allocation3 + $0x50] sm:$0xff] %vm624, 0.0
        %652 = vst.msk [vmem:[#allocation3 + $0x58] sm:$0xff] %vm624, 0.0
        %653 = vst.msk [vmem:[#allocation3 + $0x60] sm:$0xff] %vm624, 0.0
        %654 = vst.msk [vmem:[#allocation3 + $0x68] sm:$0xff] %vm624, 0.0
        %655 = vst.msk [vmem:[#allocation3 + $0x70] sm:$0xff] %vm624, 0.0
        %656 = vst.msk [vmem:[#allocation3 + $0x78] sm:$0xff] %vm624, 0.0
        %vm657 = vcmask 261120
        %658 = vst.msk [vmem:[#allocation4] sm:$0xff] %vm657, 0.0
        %659 = vst.msk [vmem:[#allocation4 + $0x8] sm:$0xff] %vm657, 0.0
        %660 = vst.msk [vmem:[#allocation4 + $0x10] sm:$0xff] %vm657, 0.0
        %661 = vst.msk [vmem:[#allocation4 + $0x18] sm:$0xff] %vm657, 0.0
        %662 = vst.msk [vmem:[#allocation4 + $0x20] sm:$0xff] %vm657, 0.0
        %663 = vst.msk [vmem:[#allocation4 + $0x28] sm:$0xff] %vm657, 0.0
        %664 = vst.msk [vmem:[#allocation4 + $0x30] sm:$0xff] %vm657, 0.0
        %665 = vst.msk [vmem:[#allocation4 + $0x38] sm:$0xff] %vm657, 0.0
        %666 = vst.msk [vmem:[#allocation4 + $0x40] sm:$0xff] %vm657, 0.0
        %667 = vst.msk [vmem:[#allocation4 + $0x48] sm:$0xff] %vm657, 0.0
        %668 = vst.msk [vmem:[#allocation4 + $0x50] sm:$0xff] %vm657, 0.0
        %669 = vst.msk [vmem:[#allocation4 + $0x58] sm:$0xff] %vm657, 0.0
        %670 = vst.msk [vmem:[#allocation4 + $0x60] sm:$0xff] %vm657, 0.0
        %671 = vst.msk [vmem:[#allocation4 + $0x68] sm:$0xff] %vm657, 0.0
        %672 = vst.msk [vmem:[#allocation4 + $0x70] sm:$0xff] %vm657, 0.0
        %673 = vst.msk [vmem:[#allocation4 + $0x78] sm:$0xff] %vm657, 0.0
        %v674 = vld [vmem:[%s593] sm:$0xff]
        %v675 = vld [vmem:[%s593 + $0x8] sm:$0xff]
        %v676 = vld [vmem:[%s593 + $0x10] sm:$0xff]
        %v677 = vld [vmem:[%s593 + $0x18] sm:$0xff]
        %v678 = vld [vmem:[%s593 + $0x20] sm:$0xff]
        %v679 = vld [vmem:[%s593 + $0x28] sm:$0xff]
        %v680 = vld [vmem:[%s593 + $0x30] sm:$0xff]
        %v681 = vld [vmem:[%s593 + $0x38] sm:$0xff]
        %v682 = vld [vmem:[%s593 + $0x40] sm:$0xff]
        %v683 = vld [vmem:[%s593 + $0x48] sm:$0xff]
        %v684 = vld [vmem:[%s593 + $0x50] sm:$0xff]
        %v685 = vld [vmem:[%s593 + $0x58] sm:$0xff]
        %v686 = vld [vmem:[%s593 + $0x60] sm:$0xff]
        %v687 = vld [vmem:[%s593 + $0x68] sm:$0xff]
        %v688 = vld [vmem:[%s593 + $0x70] sm:$0xff]
        %v689 = vld [vmem:[%s593 + $0x78] sm:$0xff]
        %v691 = vlaneseq
        %v692 = vshrl.u32 %v691, 7
        %v693 = vsub.s32 0, %v692
        %v694 = vrot.slane %v619, %v693
        %v696 = vmul.f32 %v674, %v694
        %v697 = vmul.f32 %v675, %v694
        %v698 = vmul.f32 %v676, %v694
        %v699 = vmul.f32 %v677, %v694
        %v700 = vmul.f32 %v678, %v694
        %v701 = vmul.f32 %v679, %v694
        %v702 = vmul.f32 %v680, %v694
        %v703 = vmul.f32 %v681, %v694
        %v704 = vmul.f32 %v682, %v694
        %v705 = vmul.f32 %v683, %v694
        %v706 = vmul.f32 %v684, %v694
        %v707 = vmul.f32 %v685, %v694
        %v708 = vmul.f32 %v686, %v694
        %v709 = vmul.f32 %v687, %v694
        %v710 = vmul.f32 %v688, %v694
        %v711 = vmul.f32 %v689, %v694
        %v712 = vpack.c.bf16 %v697, %v696
        %v713 = vpack.c.bf16 %v699, %v698
        %v714 = vpack.c.bf16 %v701, %v700
        %v715 = vpack.c.bf16 %v703, %v702
        %v716 = vpack.c.bf16 %v705, %v704
        %v717 = vpack.c.bf16 %v707, %v706
        %v718 = vpack.c.bf16 %v709, %v708
        %v719 = vpack.c.bf16 %v711, %v710
        %vm720 = vcmask 523264
        %721 = vst.msk [vmem:[#allocation6] sm:$0xff] %vm720, %v712
        %722 = vst.msk [vmem:[#allocation6 + $0x8] sm:$0xff] %vm720, %v713
        %723 = vst.msk [vmem:[#allocation6 + $0x10] sm:$0xff] %vm720, %v714
        %724 = vst.msk [vmem:[#allocation6 + $0x18] sm:$0xff] %vm720, %v715
        %725 = vst.msk [vmem:[#allocation6 + $0x20] sm:$0xff] %vm720, %v716
        %726 = vst.msk [vmem:[#allocation6 + $0x28] sm:$0xff] %vm720, %v717
        %727 = vst.msk [vmem:[#allocation6 + $0x30] sm:$0xff] %vm720, %v718
        %728 = vst.msk [vmem:[#allocation6 + $0x38] sm:$0xff] %vm720, %v719
        %v729 = vld [vmem:[%s3] sm:$0xf]
        %v730 = vld [vmem:[%s3 + $0x4] sm:$0xf]
        %v731 = vld [vmem:[%s3 + $0x8] sm:$0xf]
        %v732 = vld [vmem:[%s3 + $0xc] sm:$0xf]
        %v733 = vld [vmem:[%s3 + $0x10] sm:$0xf]
        %v734 = vld [vmem:[%s3 + $0x14] sm:$0xf]
        %v735 = vld [vmem:[%s3 + $0x18] sm:$0xf]
        %v736 = vld [vmem:[%s3 + $0x1c] sm:$0xf]
        %v737 = vld [vmem:[%s4] sm:$0x1]
        %v739 = vlaneseq
        %v740 = vshrl.u32 %v739, 7
        %v741 = vsub.s32 0, %v740
        %v742 = vrot.slane %v737, %v741
        %v752 = vunpack.c.l.b16 %v729
        %v753 = vunpack.c.l.b16 %v730
        %v754 = vunpack.c.l.b16 %v731
        %v755 = vunpack.c.l.b16 %v732
        %v756 = vunpack.c.l.b16 %v733
        %v757 = vunpack.c.l.b16 %v734
        %v758 = vunpack.c.l.b16 %v735
        %v759 = vunpack.c.l.b16 %v736
        %v760 = vpack.c.b16 %v753, %v752
        %v761 = vpack.c.b16 %v755, %v754
        %v762 = vpack.c.b16 %v757, %v756
        %v763 = vpack.c.b16 %v759, %v758
        %v769 = vsel %vm720, %v712, 0
        %v772 = vsel %vm720, %v713, 0
        %v775 = vsel %vm720, %v714, 0
        %v778 = vsel %vm720, %v715, 0
        %v781 = vsel %vm720, %v716, 0
        %v784 = vsel %vm720, %v717, 0
        %v787 = vsel %vm720, %v718, 0
        %v790 = vsel %vm720, %v719, 0
        %792 = vmatprep.subr.bf16.mxu0 0
        %793 = vmatpush1.bf16.msra.mxu0 %v760
        %794 = vmatprep.subr.bf16.mxu0 0
        %795 = vmatpush1.bf16.msra.mxu0 %v761
        %796 = vmatprep.subr.bf16.mxu0 0
        %797 = vmatpush1.bf16.msra.mxu0 %v762
        %798 = vmatprep.subr.bf16.mxu0 0
        %799 = vmatpush1.bf16.msra.mxu0 %v763
        %800 = vmatprep.subr.bf16.mxu0 0
        %801 = vmatpush1.bf16.msra.mxu0 0
        %802 = vmatprep.subr.bf16.mxu0 0
        %803 = vmatpush1.bf16.msra.mxu0 0
        %804 = vmatprep.subr.bf16.mxu0 0
        %805 = vmatpush1.bf16.msra.mxu0 0
        %806 = vmatprep.subr.bf16.mxu0 0
        %807 = vmatpush1.bf16.msra.mxu0 0
        %808 = vmatprep.subr.bf16.mxu0 0
        %809 = vmatpush1.bf16.msra.mxu0 0
        %810 = vmatprep.subr.bf16.mxu0 0
        %811 = vmatpush1.bf16.msra.mxu0 0
        %812 = vmatprep.subr.bf16.mxu0 0
        %813 = vmatpush1.bf16.msra.mxu0 0
        %814 = vmatprep.subr.bf16.mxu0 0
        %815 = vmatpush1.bf16.msra.mxu0 0
        %816 = vmatprep.subr.bf16.mxu0 0
        %817 = vmatpush1.bf16.msra.mxu0 0
        %818 = vmatprep.subr.bf16.mxu0 0
        %819 = vmatpush1.bf16.msra.mxu0 0
        %820 = vmatprep.subr.bf16.mxu0 0
        %821 = vmatpush1.bf16.msra.mxu0 0
        %822 = vmatprep.subr.bf16.mxu0 0
        %823 = vmatpush1.bf16.msra.mxu0 0
        %824 = vmatprep.mubr.bf16.mxu0 0
        %825 = vmatmul.mubr.bf16.gmra.mrb[0].mxu0 %v769
        %v826 = vpop.f32.mrb[0].mxu0
        %v827 = vadd.f32 %v742, %v826
        %v828 = vpop.f32.mrb[0].mxu0
        %v829 = vpop.f32.mrb[0].mxu0
        %v830 = vadd.f32 %v742, %v829
        %v831 = vpop.f32.mrb[0].mxu0
        %832 = vmatprep.mubr.bf16.mxu0 0
        %833 = vmatmul.mubr.bf16.gmra.mrb[0].mxu0 %v772
        %v834 = vpop.f32.mrb[0].mxu0
        %v835 = vadd.f32 %v742, %v834
        %v836 = vpop.f32.mrb[0].mxu0
        %v837 = vpop.f32.mrb[0].mxu0
        %v838 = vadd.f32 %v742, %v837
        %v839 = vpop.f32.mrb[0].mxu0
        %840 = vmatprep.mubr.bf16.mxu0 0
        %841 = vmatmul.mubr.bf16.gmra.mrb[0].mxu0 %v775
        %v842 = vpop.f32.mrb[0].mxu0
        %v843 = vadd.f32 %v742, %v842
        %v844 = vpop.f32.mrb[0].mxu0
        %v845 = vpop.f32.mrb[0].mxu0
        %v846 = vadd.f32 %v742, %v845
        %v847 = vpop.f32.mrb[0].mxu0
        %848 = vmatprep.mubr.bf16.mxu0 0
        %849 = vmatmul.mubr.bf16.gmra.mrb[0].mxu0 %v778
        %v850 = vpop.f32.mrb[0].mxu0
        %v851 = vadd.f32 %v742, %v850
        %v852 = vpop.f32.mrb[0].mxu0
        %v853 = vpop.f32.mrb[0].mxu0
        %v854 = vadd.f32 %v742, %v853
        %v855 = vpop.f32.mrb[0].mxu0
        %856 = vmatprep.mubr.bf16.mxu0 0
        %857 = vmatmul.mubr.bf16.gmra.mrb[0].mxu0 %v781
        %v858 = vpop.f32.mrb[0].mxu0
        %v859 = vadd.f32 %v742, %v858
        %v860 = vpop.f32.mrb[0].mxu0
        %v861 = vpop.f32.mrb[0].mxu0
        %v862 = vadd.f32 %v742, %v861
        %v863 = vpop.f32.mrb[0].mxu0
        %864 = vmatprep.mubr.bf16.mxu0 0
        %865 = vmatmul.mubr.bf16.gmra.mrb[0].mxu0 %v784
        %v866 = vpop.f32.mrb[0].mxu0
        %v867 = vadd.f32 %v742, %v866
        %v868 = vpop.f32.mrb[0].mxu0
        %v869 = vpop.f32.mrb[0].mxu0
        %v870 = vadd.f32 %v742, %v869
        %v871 = vpop.f32.mrb[0].mxu0
        %872 = vmatprep.mubr.bf16.mxu0 0
        %873 = vmatmul.mubr.bf16.gmra.mrb[0].mxu0 %v787
        %v874 = vpop.f32.mrb[0].mxu0
        %v875 = vadd.f32 %v742, %v874
        %v876 = vpop.f32.mrb[0].mxu0
        %v877 = vpop.f32.mrb[0].mxu0
        %v878 = vadd.f32 %v742, %v877
        %v879 = vpop.f32.mrb[0].mxu0
        %880 = vmatprep.mubr.bf16.mxu0 0
        %881 = vmatmul.mubr.bf16.gmra.mrb[0].mxu0 %v790
        %v882 = vpop.f32.mrb[0].mxu0
        %v883 = vadd.f32 %v742, %v882
        %v884 = vpop.f32.mrb[0].mxu0
        %v885 = vpop.f32.mrb[0].mxu0
        %v886 = vadd.f32 %v742, %v885
        %v887 = vpop.f32.mrb[0].mxu0
        %888 = vdwg.mxu0
        %v889 = vmul.f32 %v827, 0.25
        %v890 = vmul.f32 %v830, 0.25
        %v891 = vmul.f32 %v835, 0.25
        %v892 = vmul.f32 %v838, 0.25
        %v893 = vmul.f32 %v843, 0.25
        %v894 = vmul.f32 %v846, 0.25
        %v895 = vmul.f32 %v851, 0.25
        %v896 = vmul.f32 %v854, 0.25
        %v897 = vmul.f32 %v859, 0.25
        %v898 = vmul.f32 %v862, 0.25
        %v899 = vmul.f32 %v867, 0.25
        %v900 = vmul.f32 %v870, 0.25
        %v901 = vmul.f32 %v875, 0.25
        %v902 = vmul.f32 %v878, 0.25
        %v903 = vmul.f32 %v883, 0.25
        %v904 = vmul.f32 %v886, 0.25
        %v905 = vpack.c.bf16 %v890, %v889
        %v906 = vpack.c.bf16 %v892, %v891
        %v907 = vpack.c.bf16 %v894, %v893
        %v908 = vpack.c.bf16 %v896, %v895
        %v909 = vpack.c.bf16 %v898, %v897
        %v910 = vpack.c.bf16 %v900, %v899
        %v911 = vpack.c.bf16 %v902, %v901
        %v912 = vpack.c.bf16 %v904, %v903
        %vm913 = vcmask 130048
        %914 = vst.msk [vmem:[#allocation5] sm:$0xff] %vm913, %v905
        %915 = vst.msk [vmem:[#allocation5 + $0x8] sm:$0xff] %vm913, %v906
        %916 = vst.msk [vmem:[#allocation5 + $0x10] sm:$0xff] %vm913, %v907
        %917 = vst.msk [vmem:[#allocation5 + $0x18] sm:$0xff] %vm913, %v908
        %918 = vst.msk [vmem:[#allocation5 + $0x20] sm:$0xff] %vm913, %v909
        %919 = vst.msk [vmem:[#allocation5 + $0x28] sm:$0xff] %vm913, %v910
        %920 = vst.msk [vmem:[#allocation5 + $0x30] sm:$0xff] %vm913, %v911
        %921 = vst.msk [vmem:[#allocation5 + $0x38] sm:$0xff] %vm913, %v912
      $region88: #{tpu_custom_call.1} parent=83 // pred_fallthru
        _
      %v922 = vld [vmem:[%s603] sm:$0xff]
      %v923 = vld [vmem:[%s603 + $0x8] sm:$0xff]
      %v924 = vld [vmem:[%s603 + $0x10] sm:$0xff]
      %v925 = vld [vmem:[%s603 + $0x18] sm:$0xff]
      %v926 = vld [vmem:[%s603 + $0x20] sm:$0xff]
      %v927 = vld [vmem:[%s603 + $0x28] sm:$0xff]
      %v928 = vld [vmem:[%s603 + $0x30] sm:$0xff]
      %v929 = vld [vmem:[%s603 + $0x38] sm:$0xff]
      %v930 = vld [vmem:[%s603 + $0x40] sm:$0xff]
      %v931 = vld [vmem:[%s603 + $0x48] sm:$0xff]
      %v932 = vld [vmem:[%s603 + $0x50] sm:$0xff]
      %v933 = vld [vmem:[%s603 + $0x58] sm:$0xff]
      %v934 = vld [vmem:[%s603 + $0x60] sm:$0xff]
      %v935 = vld [vmem:[%s603 + $0x68] sm:$0xff]
      %v936 = vld [vmem:[%s603 + $0x70] sm:$0xff]
      %v937 = vld [vmem:[%s603 + $0x78] sm:$0xff]
      %v939 = vlaneseq
      %v940 = vshrl.u32 %v939, 7
      %v941 = vsub.s32 0, %v940
      %v942 = vrot.slane %v619, %v941
      %v944 = vmul.f32 %v922, %v942
      %v945 = vmul.f32 %v923, %v942
      %v946 = vmul.f32 %v924, %v942
      %v947 = vmul.f32 %v925, %v942
      %v948 = vmul.f32 %v926, %v942
      %v949 = vmul.f32 %v927, %v942
      %v950 = vmul.f32 %v928, %v942
      %v951 = vmul.f32 %v929, %v942
      %v952 = vmul.f32 %v930, %v942
      %v953 = vmul.f32 %v931, %v942
      %v954 = vmul.f32 %v932, %v942
      %v955 = vmul.f32 %v933, %v942
      %v956 = vmul.f32 %v934, %v942
      %v957 = vmul.f32 %v935, %v942
      %v958 = vmul.f32 %v936, %v942
      %v959 = vmul.f32 %v937, %v942
      %v960 = vpack.c.bf16 %v945, %v944
      %v961 = vpack.c.bf16 %v947, %v946
      %v962 = vpack.c.bf16 %v949, %v948
      %v963 = vpack.c.bf16 %v951, %v950
      %v964 = vpack.c.bf16 %v953, %v952
      %v965 = vpack.c.bf16 %v955, %v954
      %v966 = vpack.c.bf16 %v957, %v956
      %v967 = vpack.c.bf16 %v959, %v958
      %v968 = vld [vmem:[%s5] sm:$0xf]
      %v969 = vld [vmem:[%s5 + $0x4] sm:$0xf]
      %v970 = vld [vmem:[%s5 + $0x8] sm:$0xf]
      %v971 = vld [vmem:[%s5 + $0xc] sm:$0xf]
      %v972 = vld [vmem:[%s5 + $0x10] sm:$0xf]
      %v973 = vld [vmem:[%s5 + $0x14] sm:$0xf]
      %v974 = vld [vmem:[%s5 + $0x18] sm:$0xf]
      %v975 = vld [vmem:[%s5 + $0x1c] sm:$0xf]
      %v976 = vld [vmem:[%s6] sm:$0x1]
      %v978 = vlaneseq
      %v979 = vshrl.u32 %v978, 7
      %v980 = vsub.s32 0, %v979
      %v981 = vrot.slane %v976, %v980
      %v991 = vunpack.c.l.b16 %v968
      %v992 = vunpack.c.l.b16 %v969
      %v993 = vunpack.c.l.b16 %v970
      %v994 = vunpack.c.l.b16 %v971
      %v995 = vunpack.c.l.b16 %v972
      %v996 = vunpack.c.l.b16 %v973
      %v997 = vunpack.c.l.b16 %v974
      %v998 = vunpack.c.l.b16 %v975
      %v999 = vpack.c.b16 %v992, %v991
      %v1000 = vpack.c.b16 %v994, %v993
      %v1001 = vpack.c.b16 %v996, %v995
      %v1002 = vpack.c.b16 %v998, %v997
      %vm1007 = vcmask 523264
      %v1009 = vsel %vm1007, %v960, 0
      %v1012 = vsel %vm1007, %v961, 0
      %v1015 = vsel %vm1007, %v962, 0
      %v1018 = vsel %vm1007, %v963, 0
      %v1021 = vsel %vm1007, %v964, 0
      %v1024 = vsel %vm1007, %v965, 0
      %v1027 = vsel %vm1007, %v966, 0
      %v1030 = vsel %vm1007, %v967, 0
      %1032 = vmatprep.subr.bf16.mxu0 0
      %1033 = vmatpush1.bf16.msra.mxu0 %v999
      %1034 = vmatprep.subr.bf16.mxu0 0
      %1035 = vmatpush1.bf16.msra.mxu0 %v1000
      %1036 = vmatprep.subr.bf16.mxu0 0
      %1037 = vmatpush1.bf16.msra.mxu0 %v1001
      %1038 = vmatprep.subr.bf16.mxu0 0
      %1039 = vmatpush1.bf16.msra.mxu0 %v1002
      %1040 = vmatprep.subr.bf16.mxu0 0
      %1041 = vmatpush1.bf16.msra.mxu0 0
      %1042 = vmatprep.subr.bf16.mxu0 0
      %1043 = vmatpush1.bf16.msra.mxu0 0
      %1044 = vmatprep.subr.bf16.mxu0 0
      %1045 = vmatpush1.bf16.msra.mxu0 0
      %1046 = vmatprep.subr.bf16.mxu0 0
      %1047 = vmatpush1.bf16.msra.mxu0 0
      %1048 = vmatprep.subr.bf16.mxu0 0
      %1049 = vmatpush1.bf16.msra.mxu0 0
      %1050 = vmatprep.subr.bf16.mxu0 0
      %1051 = vmatpush1.bf16.msra.mxu0 0
      %1052 = vmatprep.subr.bf16.mxu0 0
      %1053 = vmatpush1.bf16.msra.mxu0 0
      %1054 = vmatprep.subr.bf16.mxu0 0
      %1055 = vmatpush1.bf16.msra.mxu0 0
      %1056 = vmatprep.subr.bf16.mxu0 0
      %1057 = vmatpush1.bf16.msra.mxu0 0
      %1058 = vmatprep.subr.bf16.mxu0 0
      %1059 = vmatpush1.bf16.msra.mxu0 0
      %1060 = vmatprep.subr.bf16.mxu0 0
      %1061 = vmatpush1.bf16.msra.mxu0 0
      %1062 = vmatprep.subr.bf16.mxu0 0
      %1063 = vmatpush1.bf16.msra.mxu0 0
      %1064 = vmatprep.mubr.bf16.mxu0 0
      %1065 = vmatmul.mubr.bf16.gmra.mrb[0].mxu0 %v1009
      %v1066 = vpop.f32.mrb[0].mxu0
      %v1067 = vadd.f32 %v981, %v1066
      %v1068 = vpop.f32.mrb[0].mxu0
      %v1069 = vpop.f32.mrb[0].mxu0
      %v1070 = vadd.f32 %v981, %v1069
      %v1071 = vpop.f32.mrb[0].mxu0
      %1072 = vmatprep.mubr.bf16.mxu0 0
      %1073 = vmatmul.mubr.bf16.gmra.mrb[0].mxu0 %v1012
      %v1074 = vpop.f32.mrb[0].mxu0
      %v1075 = vadd.f32 %v981, %v1074
      %v1076 = vpop.f32.mrb[0].mxu0
      %v1077 = vpop.f32.mrb[0].mxu0
      %v1078 = vadd.f32 %v981, %v1077
      %v1079 = vpop.f32.mrb[0].mxu0
      %1080 = vmatprep.mubr.bf16.mxu0 0
      %1081 = vmatmul.mubr.bf16.gmra.mrb[0].mxu0 %v1015
      %v1082 = vpop.f32.mrb[0].mxu0
      %v1083 = vadd.f32 %v981, %v1082
      %v1084 = vpop.f32.mrb[0].mxu0
      %v1085 = vpop.f32.mrb[0].mxu0
      %v1086 = vadd.f32 %v981, %v1085
      %v1087 = vpop.f32.mrb[0].mxu0
      %1088 = vmatprep.mubr.bf16.mxu0 0
      %1089 = vmatmul.mubr.bf16.gmra.mrb[0].mxu0 %v1018
      %v1090 = vpop.f32.mrb[0].mxu0
      %v1091 = vadd.f32 %v981, %v1090
      %v1092 = vpop.f32.mrb[0].mxu0
      %v1093 = vpop.f32.mrb[0].mxu0
      %v1094 = vadd.f32 %v981, %v1093
      %v1095 = vpop.f32.mrb[0].mxu0
      %1096 = vmatprep.mubr.bf16.mxu0 0
      %1097 = vmatmul.mubr.bf16.gmra.mrb[0].mxu0 %v1021
      %v1098 = vpop.f32.mrb[0].mxu0
      %v1099 = vadd.f32 %v981, %v1098
      %v1100 = vpop.f32.mrb[0].mxu0
      %v1101 = vpop.f32.mrb[0].mxu0
      %v1102 = vadd.f32 %v981, %v1101
      %v1103 = vpop.f32.mrb[0].mxu0
      %1104 = vmatprep.mubr.bf16.mxu0 0
      %1105 = vmatmul.mubr.bf16.gmra.mrb[0].mxu0 %v1024
      %v1106 = vpop.f32.mrb[0].mxu0
      %v1107 = vadd.f32 %v981, %v1106
      %v1108 = vpop.f32.mrb[0].mxu0
      %v1109 = vpop.f32.mrb[0].mxu0
      %v1110 = vadd.f32 %v981, %v1109
      %v1111 = vpop.f32.mrb[0].mxu0
      %1112 = vmatprep.mubr.bf16.mxu0 0
      %1113 = vmatmul.mubr.bf16.gmra.mrb[0].mxu0 %v1027
      %v1114 = vpop.f32.mrb[0].mxu0
      %v1115 = vadd.f32 %v981, %v1114
      %v1116 = vpop.f32.mrb[0].mxu0
      %v1117 = vpop.f32.mrb[0].mxu0
      %v1118 = vadd.f32 %v981, %v1117
      %v1119 = vpop.f32.mrb[0].mxu0
      %1120 = vmatprep.mubr.bf16.mxu0 0
      %1121 = vmatmul.mubr.bf16.gmra.mrb[0].mxu0 %v1030
      %v1122 = vpop.f32.mrb[0].mxu0
      %v1123 = vadd.f32 %v981, %v1122
      %v1124 = vpop.f32.mrb[0].mxu0
      %v1125 = vpop.f32.mrb[0].mxu0
      %v1126 = vadd.f32 %v981, %v1125
      %v1127 = vpop.f32.mrb[0].mxu0
      %1128 = vdwg.mxu0
      %v1129 = vld [vmem:[%s7] sm:$0xf]
      %v1130 = vld [vmem:[%s7 + $0x4] sm:$0xf]
      %v1131 = vld [vmem:[%s7 + $0x8] sm:$0xf]
      %v1132 = vld [vmem:[%s7 + $0xc] sm:$0xf]
      %v1133 = vld [vmem:[%s7 + $0x10] sm:$0xf]
      %v1134 = vld [vmem:[%s7 + $0x14] sm:$0xf]
      %v1135 = vld [vmem:[%s7 + $0x18] sm:$0xf]
      %v1136 = vld [vmem:[%s7 + $0x1c] sm:$0xf]
      %v1137 = vld [vmem:[%s8] sm:$0x1]
      %v1139 = vlaneseq
      %v1140 = vshrl.u32 %v1139, 7
      %v1141 = vsub.s32 0, %v1140
      %v1142 = vrot.slane %v1137, %v1141
      %v1152 = vunpack.c.l.b16 %v1129
      %v1153 = vunpack.c.l.b16 %v1130
      %v1154 = vunpack.c.l.b16 %v1131
      %v1155 = vunpack.c.l.b16 %v1132
      %v1156 = vunpack.c.l.b16 %v1133
      %v1157 = vunpack.c.l.b16 %v1134
      %v1158 = vunpack.c.l.b16 %v1135
      %v1159 = vunpack.c.l.b16 %v1136
      %v1160 = vpack.c.b16 %v1153, %v1152
      %v1161 = vpack.c.b16 %v1155, %v1154
      %v1162 = vpack.c.b16 %v1157, %v1156
      %v1163 = vpack.c.b16 %v1159, %v1158
      %1168 = vmatprep.subr.bf16.mxu0 0
      %1169 = vmatpush1.bf16.msra.mxu0 %v1160
      %1170 = vmatprep.subr.bf16.mxu0 0
      %1171 = vmatpush1.bf16.msra.mxu0 %v1161
      %1172 = vmatprep.subr.bf16.mxu0 0
      %1173 = vmatpush1.bf16.msra.mxu0 %v1162
      %1174 = vmatprep.subr.bf16.mxu0 0
      %1175 = vmatpush1.bf16.msra.mxu0 %v1163
      %1176 = vmatprep.subr.bf16.mxu0 0
      %1177 = vmatpush1.bf16.msra.mxu0 0
      %1178 = vmatprep.subr.bf16.mxu0 0
      %1179 = vmatpush1.bf16.msra.mxu0 0
      %1180 = vmatprep.subr.bf16.mxu0 0
      %1181 = vmatpush1.bf16.msra.mxu0 0
      %1182 = vmatprep.subr.bf16.mxu0 0
      %1183 = vmatpush1.bf16.msra.mxu0 0
      %1184 = vmatprep.subr.bf16.mxu0 0
      %1185 = vmatpush1.bf16.msra.mxu0 0
      %1186 = vmatprep.subr.bf16.mxu0 0
      %1187 = vmatpush1.bf16.msra.mxu0 0
      %1188 = vmatprep.subr.bf16.mxu0 0
      %1189 = vmatpush1.bf16.msra.mxu0 0
      %1190 = vmatprep.subr.bf16.mxu0 0
      %1191 = vmatpush1.bf16.msra.mxu0 0
      %1192 = vmatprep.subr.bf16.mxu0 0
      %1193 = vmatpush1.bf16.msra.mxu0 0
      %1194 = vmatprep.subr.bf16.mxu0 0
      %1195 = vmatpush1.bf16.msra.mxu0 0
      %1196 = vmatprep.subr.bf16.mxu0 0
      %1197 = vmatpush1.bf16.msra.mxu0 0
      %1198 = vmatprep.subr.bf16.mxu0 0
      %1199 = vmatpush1.bf16.msra.mxu0 0
      %1200 = vmatprep.mubr.bf16.mxu0 0
      %1201 = vmatmul.mubr.bf16.gmra.mrb[0].mxu0 %v1009
      %v1202 = vpop.f32.mrb[0].mxu0
      %v1203 = vadd.f32 %v1142, %v1202
      %v1204 = vpop.f32.mrb[0].mxu0
      %v1205 = vpop.f32.mrb[0].mxu0
      %v1206 = vadd.f32 %v1142, %v1205
      %v1207 = vpop.f32.mrb[0].mxu0
      %1208 = vmatprep.mubr.bf16.mxu0 0
      %1209 = vmatmul.mubr.bf16.gmra.mrb[0].mxu0 %v1012
      %v1210 = vpop.f32.mrb[0].mxu0
      %v1211 = vadd.f32 %v1142, %v1210
      %v1212 = vpop.f32.mrb[0].mxu0
      %v1213 = vpop.f32.mrb[0].mxu0
      %v1214 = vadd.f32 %v1142, %v1213
      %v1215 = vpop.f32.mrb[0].mxu0
      %1216 = vmatprep.mubr.bf16.mxu0 0
      %1217 = vmatmul.mubr.bf16.gmra.mrb[0].mxu0 %v1015
      %v1218 = vpop.f32.mrb[0].mxu0
      %v1219 = vadd.f32 %v1142, %v1218
      %v1220 = vpop.f32.mrb[0].mxu0
      %v1221 = vpop.f32.mrb[0].mxu0
      %v1222 = vadd.f32 %v1142, %v1221
      %v1223 = vpop.f32.mrb[0].mxu0
      %1224 = vmatprep.mubr.bf16.mxu0 0
      %1225 = vmatmul.mubr.bf16.gmra.mrb[0].mxu0 %v1018
      %v1226 = vpop.f32.mrb[0].mxu0
      %v1227 = vadd.f32 %v1142, %v1226
      %v1228 = vpop.f32.mrb[0].mxu0
      %v1229 = vpop.f32.mrb[0].mxu0
      %v1230 = vadd.f32 %v1142, %v1229
      %v1231 = vpop.f32.mrb[0].mxu0
      %1232 = vmatprep.mubr.bf16.mxu0 0
      %1233 = vmatmul.mubr.bf16.gmra.mrb[0].mxu0 %v1021
      %v1234 = vpop.f32.mrb[0].mxu0
      %v1235 = vadd.f32 %v1142, %v1234
      %v1236 = vpop.f32.mrb[0].mxu0
      %v1237 = vpop.f32.mrb[0].mxu0
      %v1238 = vadd.f32 %v1142, %v1237
      %v1239 = vpop.f32.mrb[0].mxu0
      %1240 = vmatprep.mubr.bf16.mxu0 0
      %1241 = vmatmul.mubr.bf16.gmra.mrb[0].mxu0 %v1024
      %v1242 = vpop.f32.mrb[0].mxu0
      %v1243 = vadd.f32 %v1142, %v1242
      %v1244 = vpop.f32.mrb[0].mxu0
      %v1245 = vpop.f32.mrb[0].mxu0
      %v1246 = vadd.f32 %v1142, %v1245
      %v1247 = vpop.f32.mrb[0].mxu0
      %1248 = vmatprep.mubr.bf16.mxu0 0
      %1249 = vmatmul.mubr.bf16.gmra.mrb[0].mxu0 %v1027
      %v1250 = vpop.f32.mrb[0].mxu0
      %v1251 = vadd.f32 %v1142, %v1250
      %v1252 = vpop.f32.mrb[0].mxu0
      %v1253 = vpop.f32.mrb[0].mxu0
      %v1254 = vadd.f32 %v1142, %v1253
      %v1255 = vpop.f32.mrb[0].mxu0
      %1256 = vmatprep.mubr.bf16.mxu0 0
      %1257 = vmatmul.mubr.bf16.gmra.mrb[0].mxu0 %v1030
      %v1258 = vpop.f32.mrb[0].mxu0
      %v1259 = vadd.f32 %v1142, %v1258
      %v1260 = vpop.f32.mrb[0].mxu0
      %v1261 = vpop.f32.mrb[0].mxu0
      %v1262 = vadd.f32 %v1142, %v1261
      %v1263 = vpop.f32.mrb[0].mxu0
      %1264 = vdwg.mxu0
      %v1265 = vld [vmem:[#allocation5] sm:$0xff]
      %v1266 = vld [vmem:[#allocation5 + $0x8] sm:$0xff]
      %v1267 = vld [vmem:[#allocation5 + $0x10] sm:$0xff]
      %v1268 = vld [vmem:[#allocation5 + $0x18] sm:$0xff]
      %v1269 = vld [vmem:[#allocation5 + $0x20] sm:$0xff]
      %v1270 = vld [vmem:[#allocation5 + $0x28] sm:$0xff]
      %v1271 = vld [vmem:[#allocation5 + $0x30] sm:$0xff]
      %v1272 = vld [vmem:[#allocation5 + $0x38] sm:$0xff]
      %v1273 = vpack.c.bf16 %v1070, %v1067
      %v1274 = vpack.c.bf16 %v1078, %v1075
      %v1275 = vpack.c.bf16 %v1086, %v1083
      %v1276 = vpack.c.bf16 %v1094, %v1091
      %v1277 = vpack.c.bf16 %v1102, %v1099
      %v1278 = vpack.c.bf16 %v1110, %v1107
      %v1279 = vpack.c.bf16 %v1118, %v1115
      %v1280 = vpack.c.bf16 %v1126, %v1123
      %vm1281 = vcmask 130048
      %v1283 = vsel %vm1281, %v1265, 0
      %v1286 = vsel %vm1281, %v1266, 0
      %v1289 = vsel %vm1281, %v1267, 0
      %v1292 = vsel %vm1281, %v1268, 0
      %v1295 = vsel %vm1281, %v1269, 0
      %v1298 = vsel %vm1281, %v1270, 0
      %v1301 = vsel %vm1281, %v1271, 0
      %v1304 = vsel %vm1281, %v1272, 0
      %v1307 = vsel %vm1281, %v1273, 0
      %v1310 = vsel %vm1281, %v1274, 0
      %v1313 = vsel %vm1281, %v1275, 0
      %v1316 = vsel %vm1281, %v1276, 0
      %v1319 = vsel %vm1281, %v1277, 0
      %v1322 = vsel %vm1281, %v1278, 0
      %v1325 = vsel %vm1281, %v1279, 0
      %v1328 = vsel %vm1281, %v1280, 0
      %1330 = vmatprep.subr.bf16.mxu0 0
      %1331 = vmatpush1.bf16.xpose.msra.mxu0 %v1307
      %1332 = vmatprep.subr.bf16.mxu0 0
      %1333 = vmatpush1.bf16.xpose.msra.mxu0 %v1310
      %1334 = vmatprep.subr.bf16.mxu0 0
      %1335 = vmatpush1.bf16.xpose.msra.mxu0 %v1313
      %1336 = vmatprep.subr.bf16.mxu0 0
      %1337 = vmatpush1.bf16.xpose.msra.mxu0 %v1316
      %1338 = vmatprep.subr.bf16.mxu0 0
      %1339 = vmatpush1.bf16.xpose.msra.mxu0 %v1319
      %1340 = vmatprep.subr.bf16.mxu0 0
      %1341 = vmatpush1.bf16.xpose.msra.mxu0 %v1322
      %1342 = vmatprep.subr.bf16.mxu0 0
      %1343 = vmatpush1.bf16.xpose.msra.mxu0 %v1325
      %1344 = vmatprep.subr.bf16.mxu0 0
      %1345 = vmatpush1.bf16.xpose.msra.mxu0 %v1328
      %1346 = vmatprep.subr.bf16.mxu0 0
      %1347 = vmatpush1.bf16.xpose.msra.mxu0 0
      %1348 = vmatprep.subr.bf16.mxu0 0
      %1349 = vmatpush1.bf16.xpose.msra.mxu0 0
      %1350 = vmatprep.subr.bf16.mxu0 0
      %1351 = vmatpush1.bf16.xpose.msra.mxu0 0
      %1352 = vmatprep.subr.bf16.mxu0 0
      %1353 = vmatpush1.bf16.xpose.msra.mxu0 0
      %1354 = vmatprep.subr.bf16.mxu0 0
      %1355 = vmatpush1.bf16.xpose.msra.mxu0 0
      %1356 = vmatprep.subr.bf16.mxu0 0
      %1357 = vmatpush1.bf16.xpose.msra.mxu0 0
      %1358 = vmatprep.subr.bf16.mxu0 0
      %1359 = vmatpush1.bf16.xpose.msra.mxu0 0
      %1360 = vmatprep.subr.bf16.mxu0 0
      %1361 = vmatpush1.bf16.xpose.msra.mxu0 0
      %1362 = vmatprep.mubr.bf16.mxu0 0
      %1363 = vmatmul.mubr.bf16.gmra.mrb[0].mxu0 %v1283
      %v1364 = vpop.f32.mrb[0].mxu0
      %v1365 = vadd.f32 0.0, %v1364
      %v1366 = vpop.f32.mrb[0].mxu0
      %v1367 = vpop.f32.mrb[0].mxu0
      %v1368 = vadd.f32 0.0, %v1367
      %v1369 = vpop.f32.mrb[0].mxu0
      %1370 = vmatprep.mubr.bf16.mxu0 0
      %1371 = vmatmul.mubr.bf16.gmra.mrb[0].mxu0 %v1286
      %v1372 = vpop.f32.mrb[0].mxu0
      %v1373 = vadd.f32 0.0, %v1372
      %v1374 = vpop.f32.mrb[0].mxu0
      %v1375 = vpop.f32.mrb[0].mxu0
      %v1376 = vadd.f32 0.0, %v1375
      %v1377 = vpop.f32.mrb[0].mxu0
      %1378 = vmatprep.mubr.bf16.mxu0 0
      %1379 = vmatmul.mubr.bf16.gmra.mrb[0].mxu0 %v1289
      %v1380 = vpop.f32.mrb[0].mxu0
      %v1381 = vadd.f32 0.0, %v1380
      %v1382 = vpop.f32.mrb[0].mxu0
      %v1383 = vpop.f32.mrb[0].mxu0
      %v1384 = vadd.f32 0.0, %v1383
      %v1385 = vpop.f32.mrb[0].mxu0
      %1386 = vmatprep.mubr.bf16.mxu0 0
      %1387 = vmatmul.mubr.bf16.gmra.mrb[0].mxu0 %v1292
      %v1388 = vpop.f32.mrb[0].mxu0
      %v1389 = vadd.f32 0.0, %v1388
      %v1390 = vpop.f32.mrb[0].mxu0
      %v1391 = vpop.f32.mrb[0].mxu0
      %v1392 = vadd.f32 0.0, %v1391
      %v1393 = vpop.f32.mrb[0].mxu0
      %1394 = vmatprep.mubr.bf16.mxu0 0
      %1395 = vmatmul.mubr.bf16.gmra.mrb[0].mxu0 %v1295
      %v1396 = vpop.f32.mrb[0].mxu0
      %v1397 = vadd.f32 0.0, %v1396
      %v1398 = vpop.f32.mrb[0].mxu0
      %v1399 = vpop.f32.mrb[0].mxu0
      %v1400 = vadd.f32 0.0, %v1399
      %v1401 = vpop.f32.mrb[0].mxu0
      %1402 = vmatprep.mubr.bf16.mxu0 0
      %1403 = vmatmul.mubr.bf16.gmra.mrb[0].mxu0 %v1298
      %v1404 = vpop.f32.mrb[0].mxu0
      %v1405 = vadd.f32 0.0, %v1404
      %v1406 = vpop.f32.mrb[0].mxu0
      %v1407 = vpop.f32.mrb[0].mxu0
      %v1408 = vadd.f32 0.0, %v1407
      %v1409 = vpop.f32.mrb[0].mxu0
      %1410 = vmatprep.mubr.bf16.mxu0 0
      %1411 = vmatmul.mubr.bf16.gmra.mrb[0].mxu0 %v1301
      %v1412 = vpop.f32.mrb[0].mxu0
      %v1413 = vadd.f32 0.0, %v1412
      %v1414 = vpop.f32.mrb[0].mxu0
      %v1415 = vpop.f32.mrb[0].mxu0
      %v1416 = vadd.f32 0.0, %v1415
      %v1417 = vpop.f32.mrb[0].mxu0
      %1418 = vmatprep.mubr.bf16.mxu0 0
      %1419 = vmatmul.mubr.bf16.gmra.mrb[0].mxu0 %v1304
      %v1420 = vpop.f32.mrb[0].mxu0
      %v1421 = vadd.f32 0.0, %v1420
      %v1422 = vpop.f32.mrb[0].mxu0
      %v1423 = vpop.f32.mrb[0].mxu0
      %v1424 = vadd.f32 0.0, %v1423
      %v1425 = vpop.f32.mrb[0].mxu0
      %1426 = vdwg.mxu0
      %v1427 = vld [vmem:[#allocation2] sm:$0xff]
      %v1428 = vld [vmem:[#allocation2 + $0x8] sm:$0xff]
      %v1429 = vld [vmem:[#allocation2 + $0x10] sm:$0xff]
      %v1430 = vld [vmem:[#allocation2 + $0x18] sm:$0xff]
      %v1431 = vld [vmem:[#allocation2 + $0x20] sm:$0xff]
      %v1432 = vld [vmem:[#allocation2 + $0x28] sm:$0xff]
      %v1433 = vld [vmem:[#allocation2 + $0x30] sm:$0xff]
      %v1434 = vld [vmem:[#allocation2 + $0x38] sm:$0xff]
      %v1435 = vld [vmem:[#allocation2 + $0x40] sm:$0xff]
      %v1436 = vld [vmem:[#allocation2 + $0x48] sm:$0xff]
      %v1437 = vld [vmem:[#allocation2 + $0x50] sm:$0xff]
      %v1438 = vld [vmem:[#allocation2 + $0x58] sm:$0xff]
      %v1439 = vld [vmem:[#allocation2 + $0x60] sm:$0xff]
      %v1440 = vld [vmem:[#allocation2 + $0x68] sm:$0xff]
      %v1441 = vld [vmem:[#allocation2 + $0x70] sm:$0xff]
      %v1442 = vld [vmem:[#allocation2 + $0x78] sm:$0xff]
      %1443 = vmax.xlane.f32.xlu0 %v1365
      %v1444 = vpop.xlane.xlu0 %1443
      %1445 = vmax.xlane.f32.xlu0 %v1368
      %v1446 = vpop.xlane.xlu0 %1445
      %1447 = vmax.xlane.f32.xlu0 %v1373
      %v1448 = vpop.xlane.xlu0 %1447
      %1449 = vmax.xlane.f32.xlu0 %v1376
      %v1450 = vpop.xlane.xlu0 %1449
      %1451 = vmax.xlane.f32.xlu0 %v1381
      %v1452 = vpop.xlane.xlu0 %1451
      %1453 = vmax.xlane.f32.xlu0 %v1384
      %v1454 = vpop.xlane.xlu0 %1453
      %1455 = vmax.xlane.f32.xlu0 %v1389
      %v1456 = vpop.xlane.xlu0 %1455
      %1457 = vmax.xlane.f32.xlu0 %v1392
      %v1458 = vpop.xlane.xlu0 %1457
      %1459 = vmax.xlane.f32.xlu0 %v1397
      %v1460 = vpop.xlane.xlu0 %1459
      %1461 = vmax.xlane.f32.xlu0 %v1400
      %v1462 = vpop.xlane.xlu0 %1461
      %1463 = vmax.xlane.f32.xlu0 %v1405
      %v1464 = vpop.xlane.xlu0 %1463
      %1465 = vmax.xlane.f32.xlu0 %v1408
      %v1466 = vpop.xlane.xlu0 %1465
      %1467 = vmax.xlane.f32.xlu0 %v1413
      %v1468 = vpop.xlane.xlu0 %1467
      %1469 = vmax.xlane.f32.xlu0 %v1416
      %v1470 = vpop.xlane.xlu0 %1469
      %1471 = vmax.xlane.f32.xlu0 %v1421
      %v1472 = vpop.xlane.xlu0 %1471
      %1473 = vmax.xlane.f32.xlu0 %v1424
      %v1474 = vpop.xlane.xlu0 %1473
      %v1475 = vmax.f32 %v1427, %v1444
      %v1476 = vmax.f32 %v1428, %v1446
      %v1477 = vmax.f32 %v1429, %v1448
      %v1478 = vmax.f32 %v1430, %v1450
      %v1479 = vmax.f32 %v1431, %v1452
      %v1480 = vmax.f32 %v1432, %v1454
      %v1481 = vmax.f32 %v1433, %v1456
      %v1482 = vmax.f32 %v1434, %v1458
      %v1483 = vmax.f32 %v1435, %v1460
      %v1484 = vmax.f32 %v1436, %v1462
      %v1485 = vmax.f32 %v1437, %v1464
      %v1486 = vmax.f32 %v1438, %v1466
      %v1487 = vmax.f32 %v1439, %v1468
      %v1488 = vmax.f32 %v1440, %v1470
      %v1489 = vmax.f32 %v1441, %v1472
      %v1490 = vmax.f32 %v1442, %v1474
      %v1491 = vsub.f32 %v1427, %v1475
      %v1492 = vsub.f32 %v1428, %v1476
      %v1493 = vsub.f32 %v1429, %v1477
      %v1494 = vsub.f32 %v1430, %v1478
      %v1495 = vsub.f32 %v1431, %v1479
      %v1496 = vsub.f32 %v1432, %v1480
      %v1497 = vsub.f32 %v1433, %v1481
      %v1498 = vsub.f32 %v1434, %v1482
      %v1499 = vsub.f32 %v1435, %v1483
      %v1500 = vsub.f32 %v1436, %v1484
      %v1501 = vsub.f32 %v1437, %v1485
      %v1502 = vsub.f32 %v1438, %v1486
      %v1503 = vsub.f32 %v1439, %v1487
      %v1504 = vsub.f32 %v1440, %v1488
      %v1505 = vsub.f32 %v1441, %v1489
      %v1506 = vsub.f32 %v1442, %v1490
      %v1507 = vmul.f32 %v1491, 1.442695
      %v1508 = vpow.pop %v1507
      %v1509 = vmul.f32 %v1492, 1.442695
      %v1510 = vpow.pop %v1509
      %v1511 = vmul.f32 %v1493, 1.442695
      %v1512 = vpow.pop %v1511
      %v1513 = vmul.f32 %v1494, 1.442695
      %v1514 = vpow.pop %v1513
      %v1515 = vmul.f32 %v1495, 1.442695
      %v1516 = vpow.pop %v1515
      %v1517 = vmul.f32 %v1496, 1.442695
      %v1518 = vpow.pop %v1517
      %v1519 = vmul.f32 %v1497, 1.442695
      %v1520 = vpow.pop %v1519
      %v1521 = vmul.f32 %v1498, 1.442695
      %v1522 = vpow.pop %v1521
      %v1523 = vmul.f32 %v1499, 1.442695
      %v1524 = vpow.pop %v1523
      %v1525 = vmul.f32 %v1500, 1.442695
      %v1526 = vpow.pop %v1525
      %v1527 = vmul.f32 %v1501, 1.442695
      %v1528 = vpow.pop %v1527
      %v1529 = vmul.f32 %v1502, 1.442695
      %v1530 = vpow.pop %v1529
      %v1531 = vmul.f32 %v1503, 1.442695
      %v1532 = vpow.pop %v1531
      %v1533 = vmul.f32 %v1504, 1.442695
      %v1534 = vpow.pop %v1533
      %v1535 = vmul.f32 %v1505, 1.442695
      %v1536 = vpow.pop %v1535
      %v1537 = vmul.f32 %v1506, 1.442695
      %v1538 = vpow.pop %v1537
      %1540 = vset.pattern.permute.xlu0 0
      %1541 = vperm.xlu0 %1540, %v1475
      %v1542 = vpop.permute.xlu0 %1541
      %1545 = vset.pattern.permute.xlu0 0
      %1546 = vperm.xlu0 %1545, %v1476
      %v1547 = vpop.permute.xlu0 %1546
      %1550 = vset.pattern.permute.xlu0 0
      %1551 = vperm.xlu0 %1550, %v1477
      %v1552 = vpop.permute.xlu0 %1551
      %1555 = vset.pattern.permute.xlu0 0
      %1556 = vperm.xlu0 %1555, %v1478
      %v1557 = vpop.permute.xlu0 %1556
      %1560 = vset.pattern.permute.xlu0 0
      %1561 = vperm.xlu0 %1560, %v1479
      %v1562 = vpop.permute.xlu0 %1561
      %1565 = vset.pattern.permute.xlu0 0
      %1566 = vperm.xlu0 %1565, %v1480
      %v1567 = vpop.permute.xlu0 %1566
      %1570 = vset.pattern.permute.xlu0 0
      %1571 = vperm.xlu0 %1570, %v1481
      %v1572 = vpop.permute.xlu0 %1571
      %1575 = vset.pattern.permute.xlu0 0
      %1576 = vperm.xlu0 %1575, %v1482
      %v1577 = vpop.permute.xlu0 %1576
      %1580 = vset.pattern.permute.xlu0 0
      %1581 = vperm.xlu0 %1580, %v1483
      %v1582 = vpop.permute.xlu0 %1581
      %1585 = vset.pattern.permute.xlu0 0
      %1586 = vperm.xlu0 %1585, %v1484
      %v1587 = vpop.permute.xlu0 %1586
      %1590 = vset.pattern.permute.xlu0 0
      %1591 = vperm.xlu0 %1590, %v1485
      %v1592 = vpop.permute.xlu0 %1591
      %1595 = vset.pattern.permute.xlu0 0
      %1596 = vperm.xlu0 %1595, %v1486
      %v1597 = vpop.permute.xlu0 %1596
      %1600 = vset.pattern.permute.xlu0 0
      %1601 = vperm.xlu0 %1600, %v1487
      %v1602 = vpop.permute.xlu0 %1601
      %1605 = vset.pattern.permute.xlu0 0
      %1606 = vperm.xlu0 %1605, %v1488
      %v1607 = vpop.permute.xlu0 %1606
      %1610 = vset.pattern.permute.xlu0 0
      %1611 = vperm.xlu0 %1610, %v1489
      %v1612 = vpop.permute.xlu0 %1611
      %1615 = vset.pattern.permute.xlu0 0
      %1616 = vperm.xlu0 %1615, %v1490
      %v1617 = vpop.permute.xlu0 %1616
      %v1619 = vsub.f32 %v1365, %v1542
      %v1620 = vsub.f32 %v1368, %v1547
      %v1621 = vsub.f32 %v1373, %v1552
      %v1622 = vsub.f32 %v1376, %v1557
      %v1623 = vsub.f32 %v1381, %v1562
      %v1624 = vsub.f32 %v1384, %v1567
      %v1625 = vsub.f32 %v1389, %v1572
      %v1626 = vsub.f32 %v1392, %v1577
      %v1627 = vsub.f32 %v1397, %v1582
      %v1628 = vsub.f32 %v1400, %v1587
      %v1629 = vsub.f32 %v1405, %v1592
      %v1630 = vsub.f32 %v1408, %v1597
      %v1631 = vsub.f32 %v1413, %v1602
      %v1632 = vsub.f32 %v1416, %v1607
      %v1633 = vsub.f32 %v1421, %v1612
      %v1634 = vsub.f32 %v1424, %v1617
      %v1635 = vmul.f32 %v1619, 1.442695
      %v1636 = vpow.pop %v1635
      %v1637 = vmul.f32 %v1620, 1.442695
      %v1638 = vpow.pop %v1637
      %v1639 = vmul.f32 %v1621, 1.442695
      %v1640 = vpow.pop %v1639
      %v1641 = vmul.f32 %v1622, 1.442695
      %v1642 = vpow.pop %v1641
      %v1643 = vmul.f32 %v1623, 1.442695
      %v1644 = vpow.pop %v1643
      %v1645 = vmul.f32 %v1624, 1.442695
      %v1646 = vpow.pop %v1645
      %v1647 = vmul.f32 %v1625, 1.442695
      %v1648 = vpow.pop %v1647
      %v1649 = vmul.f32 %v1626, 1.442695
      %v1650 = vpow.pop %v1649
      %v1651 = vmul.f32 %v1627, 1.442695
      %v1652 = vpow.pop %v1651
      %v1653 = vmul.f32 %v1628, 1.442695
      %v1654 = vpow.pop %v1653
      %v1655 = vmul.f32 %v1629, 1.442695
      %v1656 = vpow.pop %v1655
      %v1657 = vmul.f32 %v1630, 1.442695
      %v1658 = vpow.pop %v1657
      %v1659 = vmul.f32 %v1631, 1.442695
      %v1660 = vpow.pop %v1659
      %v1661 = vmul.f32 %v1632, 1.442695
      %v1662 = vpow.pop %v1661
      %v1663 = vmul.f32 %v1633, 1.442695
      %v1664 = vpow.pop %v1663
      %v1665 = vmul.f32 %v1634, 1.442695
      %v1666 = vpow.pop %v1665
      %v1667 = vld [vmem:[#allocation3] sm:$0xff]
      %v1668 = vld [vmem:[#allocation3 + $0x8] sm:$0xff]
      %v1669 = vld [vmem:[#allocation3 + $0x10] sm:$0xff]
      %v1670 = vld [vmem:[#allocation3 + $0x18] sm:$0xff]
      %v1671 = vld [vmem:[#allocation3 + $0x20] sm:$0xff]
      %v1672 = vld [vmem:[#allocation3 + $0x28] sm:$0xff]
      %v1673 = vld [vmem:[#allocation3 + $0x30] sm:$0xff]
      %v1674 = vld [vmem:[#allocation3 + $0x38] sm:$0xff]
      %v1675 = vld [vmem:[#allocation3 + $0x40] sm:$0xff]
      %v1676 = vld [vmem:[#allocation3 + $0x48] sm:$0xff]
      %v1677 = vld [vmem:[#allocation3 + $0x50] sm:$0xff]
      %v1678 = vld [vmem:[#allocation3 + $0x58] sm:$0xff]
      %v1679 = vld [vmem:[#allocation3 + $0x60] sm:$0xff]
      %v1680 = vld [vmem:[#allocation3 + $0x68] sm:$0xff]
      %v1681 = vld [vmem:[#allocation3 + $0x70] sm:$0xff]
      %v1682 = vld [vmem:[#allocation3 + $0x78] sm:$0xff]
      %v1683 = vmul.f32 %v1508, %v1667
      %v1684 = vmul.f32 %v1510, %v1668
      %v1685 = vmul.f32 %v1512, %v1669
      %v1686 = vmul.f32 %v1514, %v1670
      %v1687 = vmul.f32 %v1516, %v1671
      %v1688 = vmul.f32 %v1518, %v1672
      %v1689 = vmul.f32 %v1520, %v1673
      %v1690 = vmul.f32 %v1522, %v1674
      %v1691 = vmul.f32 %v1524, %v1675
      %v1692 = vmul.f32 %v1526, %v1676
      %v1693 = vmul.f32 %v1528, %v1677
      %v1694 = vmul.f32 %v1530, %v1678
      %v1695 = vmul.f32 %v1532, %v1679
      %v1696 = vmul.f32 %v1534, %v1680
      %v1697 = vmul.f32 %v1536, %v1681
      %v1698 = vmul.f32 %v1538, %v1682
      %1699 = vadd.xlane.f32.xlu0 %v1636
      %v1700 = vpop.xlane.xlu0 %1699
      %1701 = vadd.xlane.f32.xlu0 %v1638
      %v1702 = vpop.xlane.xlu0 %1701
      %1703 = vadd.xlane.f32.xlu0 %v1640
      %v1704 = vpop.xlane.xlu0 %1703
      %1705 = vadd.xlane.f32.xlu0 %v1642
      %v1706 = vpop.xlane.xlu0 %1705
      %1707 = vadd.xlane.f32.xlu0 %v1644
      %v1708 = vpop.xlane.xlu0 %1707
      %1709 = vadd.xlane.f32.xlu0 %v1646
      %v1710 = vpop.xlane.xlu0 %1709
      %1711 = vadd.xlane.f32.xlu0 %v1648
      %v1712 = vpop.xlane.xlu0 %1711
      %1713 = vadd.xlane.f32.xlu0 %v1650
      %v1714 = vpop.xlane.xlu0 %1713
      %1715 = vadd.xlane.f32.xlu0 %v1652
      %v1716 = vpop.xlane.xlu0 %1715
      %1717 = vadd.xlane.f32.xlu0 %v1654
      %v1718 = vpop.xlane.xlu0 %1717
      %1719 = vadd.xlane.f32.xlu0 %v1656
      %v1720 = vpop.xlane.xlu0 %1719
      %1721 = vadd.xlane.f32.xlu0 %v1658
      %v1722 = vpop.xlane.xlu0 %1721
      %1723 = vadd.xlane.f32.xlu0 %v1660
      %v1724 = vpop.xlane.xlu0 %1723
      %1725 = vadd.xlane.f32.xlu0 %v1662
      %v1726 = vpop.xlane.xlu0 %1725
      %1727 = vadd.xlane.f32.xlu0 %v1664
      %v1728 = vpop.xlane.xlu0 %1727
      %1729 = vadd.xlane.f32.xlu0 %v1666
      %v1730 = vpop.xlane.xlu0 %1729
      %v1731 = vadd.f32 %v1683, %v1700
      %v1732 = vadd.f32 %v1684, %v1702
      %v1733 = vadd.f32 %v1685, %v1704
      %v1734 = vadd.f32 %v1686, %v1706
      %v1735 = vadd.f32 %v1687, %v1708
      %v1736 = vadd.f32 %v1688, %v1710
      %v1737 = vadd.f32 %v1689, %v1712
      %v1738 = vadd.f32 %v1690, %v1714
      %v1739 = vadd.f32 %v1691, %v1716
      %v1740 = vadd.f32 %v1692, %v1718
      %v1741 = vadd.f32 %v1693, %v1720
      %v1742 = vadd.f32 %v1694, %v1722
      %v1743 = vadd.f32 %v1695, %v1724
      %v1744 = vadd.f32 %v1696, %v1726
      %v1745 = vadd.f32 %v1697, %v1728
      %v1746 = vadd.f32 %v1698, %v1730
      %vm1747 = vcmask 7168
      %1748 = vst.msk [vmem:[#allocation3] sm:$0xff] %vm1747, %v1731
      %1749 = vst.msk [vmem:[#allocation3 + $0x8] sm:$0xff] %vm1747, %v1732
      %1750 = vst.msk [vmem:[#allocation3 + $0x10] sm:$0xff] %vm1747, %v1733
      %1751 = vst.msk [vmem:[#allocation3 + $0x18] sm:$0xff] %vm1747, %v1734
      %1752 = vst.msk [vmem:[#allocation3 + $0x20] sm:$0xff] %vm1747, %v1735
      %1753 = vst.msk [vmem:[#allocation3 + $0x28] sm:$0xff] %vm1747, %v1736
      %1754 = vst.msk [vmem:[#allocation3 + $0x30] sm:$0xff] %vm1747, %v1737
      %1755 = vst.msk [vmem:[#allocation3 + $0x38] sm:$0xff] %vm1747, %v1738
      %1756 = vst.msk [vmem:[#allocation3 + $0x40] sm:$0xff] %vm1747, %v1739
      %1757 = vst.msk [vmem:[#allocation3 + $0x48] sm:$0xff] %vm1747, %v1740
      %1758 = vst.msk [vmem:[#allocation3 + $0x50] sm:$0xff] %vm1747, %v1741
      %1759 = vst.msk [vmem:[#allocation3 + $0x58] sm:$0xff] %vm1747, %v1742
      %1760 = vst.msk [vmem:[#allocation3 + $0x60] sm:$0xff] %vm1747, %v1743
      %1761 = vst.msk [vmem:[#allocation3 + $0x68] sm:$0xff] %vm1747, %v1744
      %1762 = vst.msk [vmem:[#allocation3 + $0x70] sm:$0xff] %vm1747, %v1745
      %1763 = vst.msk [vmem:[#allocation3 + $0x78] sm:$0xff] %vm1747, %v1746
      %v1764 = vld [vmem:[#allocation4] sm:$0xff]
      %v1765 = vld [vmem:[#allocation4 + $0x8] sm:$0xff]
      %v1766 = vld [vmem:[#allocation4 + $0x10] sm:$0xff]
      %v1767 = vld [vmem:[#allocation4 + $0x18] sm:$0xff]
      %v1768 = vld [vmem:[#allocation4 + $0x20] sm:$0xff]
      %v1769 = vld [vmem:[#allocation4 + $0x28] sm:$0xff]
      %v1770 = vld [vmem:[#allocation4 + $0x30] sm:$0xff]
      %v1771 = vld [vmem:[#allocation4 + $0x38] sm:$0xff]
      %v1772 = vld [vmem:[#allocation4 + $0x40] sm:$0xff]
      %v1773 = vld [vmem:[#allocation4 + $0x48] sm:$0xff]
      %v1774 = vld [vmem:[#allocation4 + $0x50] sm:$0xff]
      %v1775 = vld [vmem:[#allocation4 + $0x58] sm:$0xff]
      %v1776 = vld [vmem:[#allocation4 + $0x60] sm:$0xff]
      %v1777 = vld [vmem:[#allocation4 + $0x68] sm:$0xff]
      %v1778 = vld [vmem:[#allocation4 + $0x70] sm:$0xff]
      %v1779 = vld [vmem:[#allocation4 + $0x78] sm:$0xff]
      %1781 = vset.pattern.permute.xlu0 0
      %1782 = vperm.xlu0 %1781, %v1508
      %v1783 = vpop.permute.xlu0 %1782
      %1786 = vset.pattern.permute.xlu0 0
      %1787 = vperm.xlu0 %1786, %v1510
      %v1788 = vpop.permute.xlu0 %1787
      %1791 = vset.pattern.permute.xlu0 0
      %1792 = vperm.xlu0 %1791, %v1512
      %v1793 = vpop.permute.xlu0 %1792
      %1796 = vset.pattern.permute.xlu0 0
      %1797 = vperm.xlu0 %1796, %v1514
      %v1798 = vpop.permute.xlu0 %1797
      %1801 = vset.pattern.permute.xlu0 0
      %1802 = vperm.xlu0 %1801, %v1516
      %v1803 = vpop.permute.xlu0 %1802
      %1806 = vset.pattern.permute.xlu0 0
      %1807 = vperm.xlu0 %1806, %v1518
      %v1808 = vpop.permute.xlu0 %1807
      %1811 = vset.pattern.permute.xlu0 0
      %1812 = vperm.xlu0 %1811, %v1520
      %v1813 = vpop.permute.xlu0 %1812
      %1816 = vset.pattern.permute.xlu0 0
      %1817 = vperm.xlu0 %1816, %v1522
      %v1818 = vpop.permute.xlu0 %1817
      %1821 = vset.pattern.permute.xlu0 0
      %1822 = vperm.xlu0 %1821, %v1524
      %v1823 = vpop.permute.xlu0 %1822
      %1826 = vset.pattern.permute.xlu0 0
      %1827 = vperm.xlu0 %1826, %v1526
      %v1828 = vpop.permute.xlu0 %1827
      %1831 = vset.pattern.permute.xlu0 0
      %1832 = vperm.xlu0 %1831, %v1528
      %v1833 = vpop.permute.xlu0 %1832
      %1836 = vset.pattern.permute.xlu0 0
      %1837 = vperm.xlu0 %1836, %v1530
      %v1838 = vpop.permute.xlu0 %1837
      %1841 = vset.pattern.permute.xlu0 0
      %1842 = vperm.xlu0 %1841, %v1532
      %v1843 = vpop.permute.xlu0 %1842
      %1846 = vset.pattern.permute.xlu0 0
      %1847 = vperm.xlu0 %1846, %v1534
      %v1848 = vpop.permute.xlu0 %1847
      %1851 = vset.pattern.permute.xlu0 0
      %1852 = vperm.xlu0 %1851, %v1536
      %v1853 = vpop.permute.xlu0 %1852
      %1856 = vset.pattern.permute.xlu0 0
      %1857 = vperm.xlu0 %1856, %v1538
      %v1858 = vpop.permute.xlu0 %1857
      %v1860 = vmul.f32 %v1783, %v1764
      %v1861 = vmul.f32 %v1788, %v1765
      %v1862 = vmul.f32 %v1793, %v1766
      %v1863 = vmul.f32 %v1798, %v1767
      %v1864 = vmul.f32 %v1803, %v1768
      %v1865 = vmul.f32 %v1808, %v1769
      %v1866 = vmul.f32 %v1813, %v1770
      %v1867 = vmul.f32 %v1818, %v1771
      %v1868 = vmul.f32 %v1823, %v1772
      %v1869 = vmul.f32 %v1828, %v1773
      %v1870 = vmul.f32 %v1833, %v1774
      %v1871 = vmul.f32 %v1838, %v1775
      %v1872 = vmul.f32 %v1843, %v1776
      %v1873 = vmul.f32 %v1848, %v1777
      %v1874 = vmul.f32 %v1853, %v1778
      %v1875 = vmul.f32 %v1858, %v1779
      %v1876 = vpack.c.bf16 %v1638, %v1636
      %v1877 = vpack.c.bf16 %v1642, %v1640
      %v1878 = vpack.c.bf16 %v1646, %v1644
      %v1879 = vpack.c.bf16 %v1650, %v1648
      %v1880 = vpack.c.bf16 %v1654, %v1652
      %v1881 = vpack.c.bf16 %v1658, %v1656
      %v1882 = vpack.c.bf16 %v1662, %v1660
      %v1883 = vpack.c.bf16 %v1666, %v1664
      %v1884 = vpack.c.bf16 %v1206, %v1203
      %v1885 = vpack.c.bf16 %v1214, %v1211
      %v1886 = vpack.c.bf16 %v1222, %v1219
      %v1887 = vpack.c.bf16 %v1230, %v1227
      %v1888 = vpack.c.bf16 %v1238, %v1235
      %v1889 = vpack.c.bf16 %v1246, %v1243
      %v1890 = vpack.c.bf16 %v1254, %v1251
      %v1891 = vpack.c.bf16 %v1262, %v1259
      %1892 = vmatprep.subr.bf16.mxu0 0
      %1893 = vmatpush1.bf16.msra.mxu0 %v1884
      %1894 = vmatprep.subr.bf16.mxu0 0
      %1895 = vmatpush1.bf16.msra.mxu0 %v1885
      %1896 = vmatprep.subr.bf16.mxu0 0
      %1897 = vmatpush1.bf16.msra.mxu0 %v1886
      %1898 = vmatprep.subr.bf16.mxu0 0
      %1899 = vmatpush1.bf16.msra.mxu0 %v1887
      %1900 = vmatprep.subr.bf16.mxu0 0
      %1901 = vmatpush1.bf16.msra.mxu0 %v1888
      %1902 = vmatprep.subr.bf16.mxu0 0
      %1903 = vmatpush1.bf16.msra.mxu0 %v1889
      %1904 = vmatprep.subr.bf16.mxu0 0
      %1905 = vmatpush1.bf16.msra.mxu0 %v1890
      %1906 = vmatprep.subr.bf16.mxu0 0
      %1907 = vmatpush1.bf16.msra.mxu0 %v1891
      %1908 = vmatprep.subr.bf16.mxu0 0
      %1909 = vmatpush1.bf16.msra.mxu0 0
      %1910 = vmatprep.subr.bf16.mxu0 0
      %1911 = vmatpush1.bf16.msra.mxu0 0
      %1912 = vmatprep.subr.bf16.mxu0 0
      %1913 = vmatpush1.bf16.msra.mxu0 0
      %1914 = vmatprep.subr.bf16.mxu0 0
      %1915 = vmatpush1.bf16.msra.mxu0 0
      %1916 = vmatprep.subr.bf16.mxu0 0
      %1917 = vmatpush1.bf16.msra.mxu0 0
      %1918 = vmatprep.subr.bf16.mxu0 0
      %1919 = vmatpush1.bf16.msra.mxu0 0
      %1920 = vmatprep.subr.bf16.mxu0 0
      %1921 = vmatpush1.bf16.msra.mxu0 0
      %1922 = vmatprep.subr.bf16.mxu0 0
      %1923 = vmatpush1.bf16.msra.mxu0 0
      %1924 = vmatprep.mubr.bf16.mxu0 0
      %1925 = vmatmul.mubr.bf16.gmra.mrb[0].mxu0 %v1876
      %v1926 = vpop.f32.mrb[0].mxu0
      %v1927 = vadd.f32 0.0, %v1926
      %v1928 = vpop.f32.mrb[0].mxu0
      %v1929 = vpop.f32.mrb[0].mxu0
      %v1930 = vadd.f32 0.0, %v1929
      %v1931 = vpop.f32.mrb[0].mxu0
      %1932 = vmatprep.mubr.bf16.mxu0 0
      %1933 = vmatmul.mubr.bf16.gmra.mrb[0].mxu0 %v1877
      %v1934 = vpop.f32.mrb[0].mxu0
      %v1935 = vadd.f32 0.0, %v1934
      %v1936 = vpop.f32.mrb[0].mxu0
      %v1937 = vpop.f32.mrb[0].mxu0
      %v1938 = vadd.f32 0.0, %v1937
      %v1939 = vpop.f32.mrb[0].mxu0
      %1940 = vmatprep.mubr.bf16.mxu0 0
      %1941 = vmatmul.mubr.bf16.gmra.mrb[0].mxu0 %v1878
      %v1942 = vpop.f32.mrb[0].mxu0
      %v1943 = vadd.f32 0.0, %v1942
      %v1944 = vpop.f32.mrb[0].mxu0
      %v1945 = vpop.f32.mrb[0].mxu0
      %v1946 = vadd.f32 0.0, %v1945
      %v1947 = vpop.f32.mrb[0].mxu0
      %1948 = vmatprep.mubr.bf16.mxu0 0
      %1949 = vmatmul.mubr.bf16.gmra.mrb[0].mxu0 %v1879
      %v1950 = vpop.f32.mrb[0].mxu0
      %v1951 = vadd.f32 0.0, %v1950
      %v1952 = vpop.f32.mrb[0].mxu0
      %v1953 = vpop.f32.mrb[0].mxu0
      %v1954 = vadd.f32 0.0, %v1953
      %v1955 = vpop.f32.mrb[0].mxu0
      %1956 = vmatprep.mubr.bf16.mxu0 0
      %1957 = vmatmul.mubr.bf16.gmra.mrb[0].mxu0 %v1880
      %v1958 = vpop.f32.mrb[0].mxu0
      %v1959 = vadd.f32 0.0, %v1958
      %v1960 = vpop.f32.mrb[0].mxu0
      %v1961 = vpop.f32.mrb[0].mxu0
      %v1962 = vadd.f32 0.0, %v1961
      %v1963 = vpop.f32.mrb[0].mxu0
      %1964 = vmatprep.mubr.bf16.mxu0 0
      %1965 = vmatmul.mubr.bf16.gmra.mrb[0].mxu0 %v1881
      %v1966 = vpop.f32.mrb[0].mxu0
      %v1967 = vadd.f32 0.0, %v1966
      %v1968 = vpop.f32.mrb[0].mxu0
      %v1969 = vpop.f32.mrb[0].mxu0
      %v1970 = vadd.f32 0.0, %v1969
      %v1971 = vpop.f32.mrb[0].mxu0
      %1972 = vmatprep.mubr.bf16.mxu0 0
      %1973 = vmatmul.mubr.bf16.gmra.mrb[0].mxu0 %v1882
      %v1974 = vpop.f32.mrb[0].mxu0
      %v1975 = vadd.f32 0.0, %v1974
      %v1976 = vpop.f32.mrb[0].mxu0
      %v1977 = vpop.f32.mrb[0].mxu0
      %v1978 = vadd.f32 0.0, %v1977
      %v1979 = vpop.f32.mrb[0].mxu0
      %1980 = vmatprep.mubr.bf16.mxu0 0
      %1981 = vmatmul.mubr.bf16.gmra.mrb[0].mxu0 %v1883
      %v1982 = vpop.f32.mrb[0].mxu0
      %v1983 = vadd.f32 0.0, %v1982
      %v1984 = vpop.f32.mrb[0].mxu0
      %v1985 = vpop.f32.mrb[0].mxu0
      %v1986 = vadd.f32 0.0, %v1985
      %v1987 = vpop.f32.mrb[0].mxu0
      %1988 = vdwg.mxu0
      %v1989 = vadd.f32 %v1860, %v1927
      %v1990 = vadd.f32 %v1861, %v1930
      %v1991 = vadd.f32 %v1862, %v1935
      %v1992 = vadd.f32 %v1863, %v1938
      %v1993 = vadd.f32 %v1864, %v1943
      %v1994 = vadd.f32 %v1865, %v1946
      %v1995 = vadd.f32 %v1866, %v1951
      %v1996 = vadd.f32 %v1867, %v1954
      %v1997 = vadd.f32 %v1868, %v1959
      %v1998 = vadd.f32 %v1869, %v1962
      %v1999 = vadd.f32 %v1870, %v1967
      %v2000 = vadd.f32 %v1871, %v1970
      %v2001 = vadd.f32 %v1872, %v1975
      %v2002 = vadd.f32 %v1873, %v1978
      %v2003 = vadd.f32 %v1874, %v1983
      %v2004 = vadd.f32 %v1875, %v1986
      %vm2005 = vcmask 261120
      %2006 = vst.msk [vmem:[#allocation4] sm:$0xff] %vm2005, %v1989
      %2007 = vst.msk [vmem:[#allocation4 + $0x8] sm:$0xff] %vm2005, %v1990
      %2008 = vst.msk [vmem:[#allocation4 + $0x10] sm:$0xff] %vm2005, %v1991
      %2009 = vst.msk [vmem:[#allocation4 + $0x18] sm:$0xff] %vm2005, %v1992
      %2010 = vst.msk [vmem:[#allocation4 + $0x20] sm:$0xff] %vm2005, %v1993
      %2011 = vst.msk [vmem:[#allocation4 + $0x28] sm:$0xff] %vm2005, %v1994
      %2012 = vst.msk [vmem:[#allocation4 + $0x30] sm:$0xff] %vm2005, %v1995
      %2013 = vst.msk [vmem:[#allocation4 + $0x38] sm:$0xff] %vm2005, %v1996
      %2014 = vst.msk [vmem:[#allocation4 + $0x40] sm:$0xff] %vm2005, %v1997
      %2015 = vst.msk [vmem:[#allocation4 + $0x48] sm:$0xff] %vm2005, %v1998
      %2016 = vst.msk [vmem:[#allocation4 + $0x50] sm:$0xff] %vm2005, %v1999
      %2017 = vst.msk [vmem:[#allocation4 + $0x58] sm:$0xff] %vm2005, %v2000
      %2018 = vst.msk [vmem:[#allocation4 + $0x60] sm:$0xff] %vm2005, %v2001
      %2019 = vst.msk [vmem:[#allocation4 + $0x68] sm:$0xff] %vm2005, %v2002
      %2020 = vst.msk [vmem:[#allocation4 + $0x70] sm:$0xff] %vm2005, %v2003
      %2021 = vst.msk [vmem:[#allocation4 + $0x78] sm:$0xff] %vm2005, %v2004
      %2022 = vst.msk [vmem:[#allocation2] sm:$0xff] %vm1747, %v1475
      %2023 = vst.msk [vmem:[#allocation2 + $0x8] sm:$0xff] %vm1747, %v1476
      %2024 = vst.msk [vmem:[#allocation2 + $0x10] sm:$0xff] %vm1747, %v1477
      %2025 = vst.msk [vmem:[#allocation2 + $0x18] sm:$0xff] %vm1747, %v1478
      %2026 = vst.msk [vmem:[#allocation2 + $0x20] sm:$0xff] %vm1747, %v1479
      %2027 = vst.msk [vmem:[#allocation2 + $0x28] sm:$0xff] %vm1747, %v1480
      %2028 = vst.msk [vmem:[#allocation2 + $0x30] sm:$0xff] %vm1747, %v1481
      %2029 = vst.msk [vmem:[#allocation2 + $0x38] sm:$0xff] %vm1747, %v1482
      %2030 = vst.msk [vmem:[#allocation2 + $0x40] sm:$0xff] %vm1747, %v1483
      %2031 = vst.msk [vmem:[#allocation2 + $0x48] sm:$0xff] %vm1747, %v1484
      %2032 = vst.msk [vmem:[#allocation2 + $0x50] sm:$0xff] %vm1747, %v1485
      %2033 = vst.msk [vmem:[#allocation2 + $0x58] sm:$0xff] %vm1747, %v1486
      %2034 = vst.msk [vmem:[#allocation2 + $0x60] sm:$0xff] %vm1747, %v1487
      %2035 = vst.msk [vmem:[#allocation2 + $0x68] sm:$0xff] %vm1747, %v1488
      %2036 = vst.msk [vmem:[#allocation2 + $0x70] sm:$0xff] %vm1747, %v1489
      %2037 = vst.msk [vmem:[#allocation2 + $0x78] sm:$0xff] %vm1747, %v1490
      %p2038 = scmp.eq.s32.totalorder %s34, 1
      // Predicated region
      $region89: #{tpu_custom_call.1} parent=83 // pred_check
        %p2039 = pneg %p2038
      $region90: #{tpu_custom_call.1} parent=83 // pred_check_branch
        %2041 = sbr.rel (%p2039) target = $region92
      $region91: #{tpu_custom_call.1} parent=83 // pred_region
        %v2042 = vld [vmem:[#allocation3] sm:$0xff]
        %v2043 = vld [vmem:[#allocation3 + $0x8] sm:$0xff]
        %v2044 = vld [vmem:[#allocation3 + $0x10] sm:$0xff]
        %v2045 = vld [vmem:[#allocation3 + $0x18] sm:$0xff]
        %v2046 = vld [vmem:[#allocation3 + $0x20] sm:$0xff]
        %v2047 = vld [vmem:[#allocation3 + $0x28] sm:$0xff]
        %v2048 = vld [vmem:[#allocation3 + $0x30] sm:$0xff]
        %v2049 = vld [vmem:[#allocation3 + $0x38] sm:$0xff]
        %v2050 = vld [vmem:[#allocation3 + $0x40] sm:$0xff]
        %v2051 = vld [vmem:[#allocation3 + $0x48] sm:$0xff]
        %v2052 = vld [vmem:[#allocation3 + $0x50] sm:$0xff]
        %v2053 = vld [vmem:[#allocation3 + $0x58] sm:$0xff]
        %v2054 = vld [vmem:[#allocation3 + $0x60] sm:$0xff]
        %v2055 = vld [vmem:[#allocation3 + $0x68] sm:$0xff]
        %v2056 = vld [vmem:[#allocation3 + $0x70] sm:$0xff]
        %v2057 = vld [vmem:[#allocation3 + $0x78] sm:$0xff]
        %v2058 = vrcp.pop %v2042
        %v2059 = vrcp.pop %v2043
        %v2060 = vrcp.pop %v2044
        %v2061 = vrcp.pop %v2045
        %v2062 = vrcp.pop %v2046
        %v2063 = vrcp.pop %v2047
        %v2064 = vrcp.pop %v2048
        %v2065 = vrcp.pop %v2049
        %v2066 = vrcp.pop %v2050
        %v2067 = vrcp.pop %v2051
        %v2068 = vrcp.pop %v2052
        %v2069 = vrcp.pop %v2053
        %v2070 = vrcp.pop %v2054
        %v2071 = vrcp.pop %v2055
        %v2072 = vrcp.pop %v2056
        %v2073 = vrcp.pop %v2057
        %v2074 = vld [vmem:[#allocation4] sm:$0xff]
        %v2075 = vld [vmem:[#allocation4 + $0x8] sm:$0xff]
        %v2076 = vld [vmem:[#allocation4 + $0x10] sm:$0xff]
        %v2077 = vld [vmem:[#allocation4 + $0x18] sm:$0xff]
        %v2078 = vld [vmem:[#allocation4 + $0x20] sm:$0xff]
        %v2079 = vld [vmem:[#allocation4 + $0x28] sm:$0xff]
        %v2080 = vld [vmem:[#allocation4 + $0x30] sm:$0xff]
        %v2081 = vld [vmem:[#allocation4 + $0x38] sm:$0xff]
        %v2082 = vld [vmem:[#allocation4 + $0x40] sm:$0xff]
        %v2083 = vld [vmem:[#allocation4 + $0x48] sm:$0xff]
        %v2084 = vld [vmem:[#allocation4 + $0x50] sm:$0xff]
        %v2085 = vld [vmem:[#allocation4 + $0x58] sm:$0xff]
        %v2086 = vld [vmem:[#allocation4 + $0x60] sm:$0xff]
        %v2087 = vld [vmem:[#allocation4 + $0x68] sm:$0xff]
        %v2088 = vld [vmem:[#allocation4 + $0x70] sm:$0xff]
        %v2089 = vld [vmem:[#allocation4 + $0x78] sm:$0xff]
        %2091 = vset.pattern.permute.xlu0 0
        %2092 = vperm.xlu0 %2091, %v2058
        %v2093 = vpop.permute.xlu0 %2092
        %2096 = vset.pattern.permute.xlu0 0
        %2097 = vperm.xlu0 %2096, %v2059
        %v2098 = vpop.permute.xlu0 %2097
        %2101 = vset.pattern.permute.xlu0 0
        %2102 = vperm.xlu0 %2101, %v2060
        %v2103 = vpop.permute.xlu0 %2102
        %2106 = vset.pattern.permute.xlu0 0
        %2107 = vperm.xlu0 %2106, %v2061
        %v2108 = vpop.permute.xlu0 %2107
        %2111 = vset.pattern.permute.xlu0 0
        %2112 = vperm.xlu0 %2111, %v2062
        %v2113 = vpop.permute.xlu0 %2112
        %2116 = vset.pattern.permute.xlu0 0
        %2117 = vperm.xlu0 %2116, %v2063
        %v2118 = vpop.permute.xlu0 %2117
        %2121 = vset.pattern.permute.xlu0 0
        %2122 = vperm.xlu0 %2121, %v2064
        %v2123 = vpop.permute.xlu0 %2122
        %2126 = vset.pattern.permute.xlu0 0
        %2127 = vperm.xlu0 %2126, %v2065
        %v2128 = vpop.permute.xlu0 %2127
        %2131 = vset.pattern.permute.xlu0 0
        %2132 = vperm.xlu0 %2131, %v2066
        %v2133 = vpop.permute.xlu0 %2132
        %2136 = vset.pattern.permute.xlu0 0
        %2137 = vperm.xlu0 %2136, %v2067
        %v2138 = vpop.permute.xlu0 %2137
        %2141 = vset.pattern.permute.xlu0 0
        %2142 = vperm.xlu0 %2141, %v2068
        %v2143 = vpop.permute.xlu0 %2142
        %2146 = vset.pattern.permute.xlu0 0
        %2147 = vperm.xlu0 %2146, %v2069
        %v2148 = vpop.permute.xlu0 %2147
        %2151 = vset.pattern.permute.xlu0 0
        %2152 = vperm.xlu0 %2151, %v2070
        %v2153 = vpop.permute.xlu0 %2152
        %2156 = vset.pattern.permute.xlu0 0
        %2157 = vperm.xlu0 %2156, %v2071
        %v2158 = vpop.permute.xlu0 %2157
        %2161 = vset.pattern.permute.xlu0 0
        %2162 = vperm.xlu0 %2161, %v2072
        %v2163 = vpop.permute.xlu0 %2162
        %2166 = vset.pattern.permute.xlu0 0
        %2167 = vperm.xlu0 %2166, %v2073
        %v2168 = vpop.permute.xlu0 %2167
        %v2170 = vmul.f32 %v2074, %v2093
        %v2171 = vmul.f32 %v2075, %v2098
        %v2172 = vmul.f32 %v2076, %v2103
        %v2173 = vmul.f32 %v2077, %v2108
        %v2174 = vmul.f32 %v2078, %v2113
        %v2175 = vmul.f32 %v2079, %v2118
        %v2176 = vmul.f32 %v2080, %v2123
        %v2177 = vmul.f32 %v2081, %v2128
        %v2178 = vmul.f32 %v2082, %v2133
        %v2179 = vmul.f32 %v2083, %v2138
        %v2180 = vmul.f32 %v2084, %v2143
        %v2181 = vmul.f32 %v2085, %v2148
        %v2182 = vmul.f32 %v2086, %v2153
        %v2183 = vmul.f32 %v2087, %v2158
        %v2184 = vmul.f32 %v2088, %v2163
        %v2185 = vmul.f32 %v2089, %v2168
        %v2186 = vpack.c.bf16 %v2171, %v2170
        %v2187 = vpack.c.bf16 %v2173, %v2172
        %v2188 = vpack.c.bf16 %v2175, %v2174
        %v2189 = vpack.c.bf16 %v2177, %v2176
        %v2190 = vpack.c.bf16 %v2179, %v2178
        %v2191 = vpack.c.bf16 %v2181, %v2180
        %v2192 = vpack.c.bf16 %v2183, %v2182
        %v2193 = vpack.c.bf16 %v2185, %v2184
        %v2194 = vld [vmem:[%s9] sm:$0xf]
        %v2195 = vld [vmem:[%s9 + $0x4] sm:$0xf]
        %v2196 = vld [vmem:[%s9 + $0x8] sm:$0xf]
        %v2197 = vld [vmem:[%s9 + $0xc] sm:$0xf]
        %v2198 = vld [vmem:[%s10] sm:$0x1]
        %v2200 = vlaneseq
        %v2201 = vshrl.u32 %v2200, 7
        %v2202 = vsub.s32 0, %v2201
        %v2203 = vrot.slane %v2198, %v2202
        %v2209 = vunpack.c.l.b16 %v2194
        %v2210 = vunpack.c.l.b16 %v2195
        %v2211 = vunpack.c.l.b16 %v2196
        %v2212 = vunpack.c.l.b16 %v2197
        %v2213 = vpack.c.b16 %v2210, %v2209
        %v2214 = vpack.c.b16 %v2212, %v2211
        %v2218 = vsel %vm2005, %v2186, 0
        %v2221 = vsel %vm2005, %v2187, 0
        %v2224 = vsel %vm2005, %v2188, 0
        %v2227 = vsel %vm2005, %v2189, 0
        %v2230 = vsel %vm2005, %v2190, 0
        %v2233 = vsel %vm2005, %v2191, 0
        %v2236 = vsel %vm2005, %v2192, 0
        %v2239 = vsel %vm2005, %v2193, 0
        %2241 = vmatprep.subr.bf16.mxu0 0
        %2242 = vmatpush1.bf16.msra.mxu0 %v2213
        %2243 = vmatprep.subr.bf16.mxu0 0
        %2244 = vmatpush1.bf16.msra.mxu0 %v2214
        %2245 = vmatprep.subr.bf16.mxu0 0
        %2246 = vmatpush1.bf16.msra.mxu0 0
        %2247 = vmatprep.subr.bf16.mxu0 0
        %2248 = vmatpush1.bf16.msra.mxu0 0
        %2249 = vmatprep.subr.bf16.mxu0 0
        %2250 = vmatpush1.bf16.msra.mxu0 0
        %2251 = vmatprep.subr.bf16.mxu0 0
        %2252 = vmatpush1.bf16.msra.mxu0 0
        %2253 = vmatprep.subr.bf16.mxu0 0
        %2254 = vmatpush1.bf16.msra.mxu0 0
        %2255 = vmatprep.subr.bf16.mxu0 0
        %2256 = vmatpush1.bf16.msra.mxu0 0
        %2257 = vmatprep.subr.bf16.mxu0 0
        %2258 = vmatpush1.bf16.msra.mxu0 0
        %2259 = vmatprep.subr.bf16.mxu0 0
        %2260 = vmatpush1.bf16.msra.mxu0 0
        %2261 = vmatprep.subr.bf16.mxu0 0
        %2262 = vmatpush1.bf16.msra.mxu0 0
        %2263 = vmatprep.subr.bf16.mxu0 0
        %2264 = vmatpush1.bf16.msra.mxu0 0
        %2265 = vmatprep.subr.bf16.mxu0 0
        %2266 = vmatpush1.bf16.msra.mxu0 0
        %2267 = vmatprep.subr.bf16.mxu0 0
        %2268 = vmatpush1.bf16.msra.mxu0 0
        %2269 = vmatprep.subr.bf16.mxu0 0
        %2270 = vmatpush1.bf16.msra.mxu0 0
        %2271 = vmatprep.subr.bf16.mxu0 0
        %2272 = vmatpush1.bf16.msra.mxu0 0
        %2273 = vmatprep.mubr.bf16.mxu0 0
        %2274 = vmatmul.mubr.bf16.gmra.mrb[0].mxu0 %v2218
        %v2275 = vpop.f32.mrb[0].mxu0
        %v2276 = vadd.f32 %v2203, %v2275
        %v2277 = vpop.f32.mrb[0].mxu0
        %v2278 = vpop.f32.mrb[0].mxu0
        %v2279 = vadd.f32 %v2203, %v2278
        %v2280 = vpop.f32.mrb[0].mxu0
        %2281 = vmatprep.mubr.bf16.mxu0 0
        %2282 = vmatmul.mubr.bf16.gmra.mrb[0].mxu0 %v2221
        %v2283 = vpop.f32.mrb[0].mxu0
        %v2284 = vadd.f32 %v2203, %v2283
        %v2285 = vpop.f32.mrb[0].mxu0
        %v2286 = vpop.f32.mrb[0].mxu0
        %v2287 = vadd.f32 %v2203, %v2286
        %v2288 = vpop.f32.mrb[0].mxu0
        %2289 = vmatprep.mubr.bf16.mxu0 0
        %2290 = vmatmul.mubr.bf16.gmra.mrb[0].mxu0 %v2224
        %v2291 = vpop.f32.mrb[0].mxu0
        %v2292 = vadd.f32 %v2203, %v2291
        %v2293 = vpop.f32.mrb[0].mxu0
        %v2294 = vpop.f32.mrb[0].mxu0
        %v2295 = vadd.f32 %v2203, %v2294
        %v2296 = vpop.f32.mrb[0].mxu0
        %2297 = vmatprep.mubr.bf16.mxu0 0
        %2298 = vmatmul.mubr.bf16.gmra.mrb[0].mxu0 %v2227
        %v2299 = vpop.f32.mrb[0].mxu0
        %v2300 = vadd.f32 %v2203, %v2299
        %v2301 = vpop.f32.mrb[0].mxu0
        %v2302 = vpop.f32.mrb[0].mxu0
        %v2303 = vadd.f32 %v2203, %v2302
        %v2304 = vpop.f32.mrb[0].mxu0
        %2305 = vmatprep.mubr.bf16.mxu0 0
        %2306 = vmatmul.mubr.bf16.gmra.mrb[0].mxu0 %v2230
        %v2307 = vpop.f32.mrb[0].mxu0
        %v2308 = vadd.f32 %v2203, %v2307
        %v2309 = vpop.f32.mrb[0].mxu0
        %v2310 = vpop.f32.mrb[0].mxu0
        %v2311 = vadd.f32 %v2203, %v2310
        %v2312 = vpop.f32.mrb[0].mxu0
        %2313 = vmatprep.mubr.bf16.mxu0 0
        %2314 = vmatmul.mubr.bf16.gmra.mrb[0].mxu0 %v2233
        %v2315 = vpop.f32.mrb[0].mxu0
        %v2316 = vadd.f32 %v2203, %v2315
        %v2317 = vpop.f32.mrb[0].mxu0
        %v2318 = vpop.f32.mrb[0].mxu0
        %v2319 = vadd.f32 %v2203, %v2318
        %v2320 = vpop.f32.mrb[0].mxu0
        %2321 = vmatprep.mubr.bf16.mxu0 0
        %2322 = vmatmul.mubr.bf16.gmra.mrb[0].mxu0 %v2236
        %v2323 = vpop.f32.mrb[0].mxu0
        %v2324 = vadd.f32 %v2203, %v2323
        %v2325 = vpop.f32.mrb[0].mxu0
        %v2326 = vpop.f32.mrb[0].mxu0
        %v2327 = vadd.f32 %v2203, %v2326
        %v2328 = vpop.f32.mrb[0].mxu0
        %2329 = vmatprep.mubr.bf16.mxu0 0
        %2330 = vmatmul.mubr.bf16.gmra.mrb[0].mxu0 %v2239
        %v2331 = vpop.f32.mrb[0].mxu0
        %v2332 = vadd.f32 %v2203, %v2331
        %v2333 = vpop.f32.mrb[0].mxu0
        %v2334 = vpop.f32.mrb[0].mxu0
        %v2335 = vadd.f32 %v2203, %v2334
        %v2336 = vpop.f32.mrb[0].mxu0
        %2337 = vdwg.mxu0
        %v2338 = vpack.c.bf16 %v2279, %v2276
        %v2339 = vpack.c.bf16 %v2287, %v2284
        %v2340 = vpack.c.bf16 %v2295, %v2292
        %v2341 = vpack.c.bf16 %v2303, %v2300
        %v2342 = vpack.c.bf16 %v2311, %v2308
        %v2343 = vpack.c.bf16 %v2319, %v2316
        %v2344 = vpack.c.bf16 %v2327, %v2324
        %v2345 = vpack.c.bf16 %v2335, %v2332
        %v2346 = vld [vmem:[%s11] sm:$0xff]
        %v2347 = vld [vmem:[%s11 + $0x8] sm:$0xff]
        %v2348 = vld [vmem:[%s11 + $0x10] sm:$0xff]
        %v2349 = vld [vmem:[%s11 + $0x18] sm:$0xff]
        %v2350 = vld [vmem:[#allocation6] sm:$0xff]
        %v2351 = vld [vmem:[#allocation6 + $0x8] sm:$0xff]
        %v2352 = vld [vmem:[#allocation6 + $0x10] sm:$0xff]
        %v2353 = vld [vmem:[#allocation6 + $0x18] sm:$0xff]
        %v2354 = vld [vmem:[#allocation6 + $0x20] sm:$0xff]
        %v2355 = vld [vmem:[#allocation6 + $0x28] sm:$0xff]
        %v2356 = vld [vmem:[#allocation6 + $0x30] sm:$0xff]
        %v2357 = vld [vmem:[#allocation6 + $0x38] sm:$0xff]
        %v2358 = vld [vmem:[%s12] sm:$0xff]
        %v2359 = vld [vmem:[%s12 + $0x8] sm:$0xff]
        %v2360 = vld [vmem:[%s12 + $0x10] sm:$0xff]
        %v2361 = vld [vmem:[%s12 + $0x18] sm:$0xff]
        %v2362 = vld [vmem:[%s12 + $0x20] sm:$0xff]
        %v2363 = vld [vmem:[%s12 + $0x28] sm:$0xff]
        %v2364 = vld [vmem:[%s12 + $0x30] sm:$0xff]
        %v2365 = vld [vmem:[%s12 + $0x38] sm:$0xff]
        %v2374 = vunpack.c.l.b16 %v2358
        %v2375 = vunpack.c.h.b16 %v2358
        %v2376 = vunpack.c.l.b16 %v2359
        %v2377 = vunpack.c.h.b16 %v2359
        %v2378 = vunpack.c.l.b16 %v2360
        %v2379 = vunpack.c.h.b16 %v2360
        %v2380 = vunpack.c.l.b16 %v2361
        %v2381 = vunpack.c.h.b16 %v2361
        %v2382 = vunpack.c.l.b16 %v2362
        %v2383 = vunpack.c.h.b16 %v2362
        %v2384 = vunpack.c.l.b16 %v2363
        %v2385 = vunpack.c.h.b16 %v2363
        %v2386 = vunpack.c.l.b16 %v2364
        %v2387 = vunpack.c.h.b16 %v2364
        %v2388 = vunpack.c.l.b16 %v2365
        %v2389 = vunpack.c.h.b16 %v2365
        %v2390 = vpack.c.b16 %v2376, %v2374
        %v2391 = vpack.c.b16 %v2377, %v2375
        %v2392 = vpack.c.b16 %v2380, %v2378
        %v2393 = vpack.c.b16 %v2381, %v2379
        %v2394 = vpack.c.b16 %v2384, %v2382
        %v2395 = vpack.c.b16 %v2385, %v2383
        %v2396 = vpack.c.b16 %v2388, %v2386
        %v2397 = vpack.c.b16 %v2389, %v2387
        %v2407 = vsel %vm1007, %v2350, 0
        %v2410 = vsel %vm1007, %v2351, 0
        %v2413 = vsel %vm1007, %v2352, 0
        %v2416 = vsel %vm1007, %v2353, 0
        %v2419 = vsel %vm1007, %v2354, 0
        %v2422 = vsel %vm1007, %v2355, 0
        %v2425 = vsel %vm1007, %v2356, 0
        %v2428 = vsel %vm1007, %v2357, 0
        %2430 = vmatprep.subr.bf16.mxu0 %v2391
        %2431 = vmatpush1.bf16.msra.mxu0 %v2390
        %2432 = vmatprep.subr.bf16.mxu0 %v2393
        %2433 = vmatpush1.bf16.msra.mxu0 %v2392
        %2434 = vmatprep.subr.bf16.mxu0 %v2395
        %2435 = vmatpush1.bf16.msra.mxu0 %v2394
        %2436 = vmatprep.subr.bf16.mxu0 %v2397
        %2437 = vmatpush1.bf16.msra.mxu0 %v2396
        %2438 = vmatprep.subr.bf16.mxu0 0
        %2439 = vmatpush1.bf16.msra.mxu0 0
        %2440 = vmatprep.subr.bf16.mxu0 0
        %2441 = vmatpush1.bf16.msra.mxu0 0
        %2442 = vmatprep.subr.bf16.mxu0 0
        %2443 = vmatpush1.bf16.msra.mxu0 0
        %2444 = vmatprep.subr.bf16.mxu0 0
        %2445 = vmatpush1.bf16.msra.mxu0 0
        %2446 = vmatprep.subr.bf16.mxu0 0
        %2447 = vmatpush1.bf16.msra.mxu0 0
        %2448 = vmatprep.subr.bf16.mxu0 0
        %2449 = vmatpush1.bf16.msra.mxu0 0
        %2450 = vmatprep.subr.bf16.mxu0 0
        %2451 = vmatpush1.bf16.msra.mxu0 0
        %2452 = vmatprep.subr.bf16.mxu0 0
        %2453 = vmatpush1.bf16.msra.mxu0 0
        %2454 = vmatprep.subr.bf16.mxu0 0
        %2455 = vmatpush1.bf16.msra.mxu0 0
        %2456 = vmatprep.subr.bf16.mxu0 0
        %2457 = vmatpush1.bf16.msra.mxu0 0
        %2458 = vmatprep.subr.bf16.mxu0 0
        %2459 = vmatpush1.bf16.msra.mxu0 0
        %2460 = vmatprep.subr.bf16.mxu0 0
        %2461 = vmatpush1.bf16.msra.mxu0 0
        %2462 = vmatprep.mubr.bf16.mxu0 0
        %2463 = vmatmul.mubr.bf16.gmra.mrb[0].mxu0 %v2407
        %v2464 = vpop.f32.mrb[0].mxu0
        %v2465 = vadd.f32 0.0, %v2464
        %v2466 = vpop.f32.mrb[0].mxu0
        %v2467 = vadd.f32 0.0, %v2466
        %v2468 = vpop.f32.mrb[0].mxu0
        %v2469 = vadd.f32 0.0, %v2468
        %v2470 = vpop.f32.mrb[0].mxu0
        %v2471 = vadd.f32 0.0, %v2470
        %2472 = vmatprep.mubr.bf16.mxu0 0
        %2473 = vmatmul.mubr.bf16.gmra.mrb[0].mxu0 %v2410
        %v2474 = vpop.f32.mrb[0].mxu0
        %v2475 = vadd.f32 0.0, %v2474
        %v2476 = vpop.f32.mrb[0].mxu0
        %v2477 = vadd.f32 0.0, %v2476
        %v2478 = vpop.f32.mrb[0].mxu0
        %v2479 = vadd.f32 0.0, %v2478
        %v2480 = vpop.f32.mrb[0].mxu0
        %v2481 = vadd.f32 0.0, %v2480
        %2482 = vmatprep.mubr.bf16.mxu0 0
        %2483 = vmatmul.mubr.bf16.gmra.mrb[0].mxu0 %v2413
        %v2484 = vpop.f32.mrb[0].mxu0
        %v2485 = vadd.f32 0.0, %v2484
        %v2486 = vpop.f32.mrb[0].mxu0
        %v2487 = vadd.f32 0.0, %v2486
        %v2488 = vpop.f32.mrb[0].mxu0
        %v2489 = vadd.f32 0.0, %v2488
        %v2490 = vpop.f32.mrb[0].mxu0
        %v2491 = vadd.f32 0.0, %v2490
        %2492 = vmatprep.mubr.bf16.mxu0 0
        %2493 = vmatmul.mubr.bf16.gmra.mrb[0].mxu0 %v2416
        %v2494 = vpop.f32.mrb[0].mxu0
        %v2495 = vadd.f32 0.0, %v2494
        %v2496 = vpop.f32.mrb[0].mxu0
        %v2497 = vadd.f32 0.0, %v2496
        %v2498 = vpop.f32.mrb[0].mxu0
        %v2499 = vadd.f32 0.0, %v2498
        %v2500 = vpop.f32.mrb[0].mxu0
        %v2501 = vadd.f32 0.0, %v2500
        %2502 = vmatprep.mubr.bf16.mxu0 0
        %2503 = vmatmul.mubr.bf16.gmra.mrb[0].mxu0 %v2419
        %v2504 = vpop.f32.mrb[0].mxu0
        %v2505 = vadd.f32 0.0, %v2504
        %v2506 = vpop.f32.mrb[0].mxu0
        %v2507 = vadd.f32 0.0, %v2506
        %v2508 = vpop.f32.mrb[0].mxu0
        %v2509 = vadd.f32 0.0, %v2508
        %v2510 = vpop.f32.mrb[0].mxu0
        %v2511 = vadd.f32 0.0, %v2510
        %2512 = vmatprep.mubr.bf16.mxu0 0
        %2513 = vmatmul.mubr.bf16.gmra.mrb[0].mxu0 %v2422
        %v2514 = vpop.f32.mrb[0].mxu0
        %v2515 = vadd.f32 0.0, %v2514
        %v2516 = vpop.f32.mrb[0].mxu0
        %v2517 = vadd.f32 0.0, %v2516
        %v2518 = vpop.f32.mrb[0].mxu0
        %v2519 = vadd.f32 0.0, %v2518
        %v2520 = vpop.f32.mrb[0].mxu0
        %v2521 = vadd.f32 0.0, %v2520
        %2522 = vmatprep.mubr.bf16.mxu0 0
        %2523 = vmatmul.mubr.bf16.gmra.mrb[0].mxu0 %v2425
        %v2524 = vpop.f32.mrb[0].mxu0
        %v2525 = vadd.f32 0.0, %v2524
        %v2526 = vpop.f32.mrb[0].mxu0
        %v2527 = vadd.f32 0.0, %v2526
        %v2528 = vpop.f32.mrb[0].mxu0
        %v2529 = vadd.f32 0.0, %v2528
        %v2530 = vpop.f32.mrb[0].mxu0
        %v2531 = vadd.f32 0.0, %v2530
        %2532 = vmatprep.mubr.bf16.mxu0 0
        %2533 = vmatmul.mubr.bf16.gmra.mrb[0].mxu0 %v2428
        %v2534 = vpop.f32.mrb[0].mxu0
        %v2535 = vadd.f32 0.0, %v2534
        %v2536 = vpop.f32.mrb[0].mxu0
        %v2537 = vadd.f32 0.0, %v2536
        %v2538 = vpop.f32.mrb[0].mxu0
        %v2539 = vadd.f32 0.0, %v2538
        %v2540 = vpop.f32.mrb[0].mxu0
        %v2541 = vadd.f32 0.0, %v2540
        %2542 = vdwg.mxu0
        %v2547 = vunpack.c.l.b16 %v2346
        %v2548 = vunpack.c.h.b16 %v2346
        %v2549 = vunpack.c.l.b16 %v2347
        %v2550 = vunpack.c.h.b16 %v2347
        %v2551 = vunpack.c.l.b16 %v2348
        %v2552 = vunpack.c.h.b16 %v2348
        %v2553 = vunpack.c.l.b16 %v2349
        %v2554 = vunpack.c.h.b16 %v2349
        %v2555 = vpack.c.b16 %v2549, %v2547
        %v2556 = vpack.c.b16 %v2550, %v2548
        %v2557 = vpack.c.b16 %v2553, %v2551
        %v2558 = vpack.c.b16 %v2554, %v2552
        %v2564 = vsel %vm2005, %v2338, 0
        %v2567 = vsel %vm2005, %v2339, 0
        %v2570 = vsel %vm2005, %v2340, 0
        %v2573 = vsel %vm2005, %v2341, 0
        %v2576 = vsel %vm2005, %v2342, 0
        %v2579 = vsel %vm2005, %v2343, 0
        %v2582 = vsel %vm2005, %v2344, 0
        %v2585 = vsel %vm2005, %v2345, 0
        %2587 = vmatprep.subr.bf16.mxu0 %v2556
        %2588 = vmatpush1.bf16.msra.mxu0 %v2555
        %2589 = vmatprep.subr.bf16.mxu0 %v2558
        %2590 = vmatpush1.bf16.msra.mxu0 %v2557
        %2591 = vmatprep.subr.bf16.mxu0 0
        %2592 = vmatpush1.bf16.msra.mxu0 0
        %2593 = vmatprep.subr.bf16.mxu0 0
        %2594 = vmatpush1.bf16.msra.mxu0 0
        %2595 = vmatprep.subr.bf16.mxu0 0
        %2596 = vmatpush1.bf16.msra.mxu0 0
        %2597 = vmatprep.subr.bf16.mxu0 0
        %2598 = vmatpush1.bf16.msra.mxu0 0
        %2599 = vmatprep.subr.bf16.mxu0 0
        %2600 = vmatpush1.bf16.msra.mxu0 0
        %2601 = vmatprep.subr.bf16.mxu0 0
        %2602 = vmatpush1.bf16.msra.mxu0 0
        %2603 = vmatprep.subr.bf16.mxu0 0
        %2604 = vmatpush1.bf16.msra.mxu0 0
        %2605 = vmatprep.subr.bf16.mxu0 0
        %2606 = vmatpush1.bf16.msra.mxu0 0
        %2607 = vmatprep.subr.bf16.mxu0 0
        %2608 = vmatpush1.bf16.msra.mxu0 0
        %2609 = vmatprep.subr.bf16.mxu0 0
        %2610 = vmatpush1.bf16.msra.mxu0 0
        %2611 = vmatprep.subr.bf16.mxu0 0
        %2612 = vmatpush1.bf16.msra.mxu0 0
        %2613 = vmatprep.subr.bf16.mxu0 0
        %2614 = vmatpush1.bf16.msra.mxu0 0
        %2615 = vmatprep.subr.bf16.mxu0 0
        %2616 = vmatpush1.bf16.msra.mxu0 0
        %2617 = vmatprep.subr.bf16.mxu0 0
        %2618 = vmatpush1.bf16.msra.mxu0 0
        %2619 = vmatprep.mubr.bf16.mxu0 0
        %2620 = vmatmul.mubr.bf16.gmra.mrb[0].mxu0 %v2564
        %v2621 = vpop.f32.mrb[0].mxu0
        %v2622 = vadd.f32 %v2465, %v2621
        %v2623 = vpop.f32.mrb[0].mxu0
        %v2624 = vadd.f32 %v2467, %v2623
        %v2625 = vpop.f32.mrb[0].mxu0
        %v2626 = vadd.f32 %v2469, %v2625
        %v2627 = vpop.f32.mrb[0].mxu0
        %v2628 = vadd.f32 %v2471, %v2627
        %2629 = vmatprep.mubr.bf16.mxu0 0
        %2630 = vmatmul.mubr.bf16.gmra.mrb[0].mxu0 %v2567
        %v2631 = vpop.f32.mrb[0].mxu0
        %v2632 = vadd.f32 %v2475, %v2631
        %v2633 = vpop.f32.mrb[0].mxu0
        %v2634 = vadd.f32 %v2477, %v2633
        %v2635 = vpop.f32.mrb[0].mxu0
        %v2636 = vadd.f32 %v2479, %v2635
        %v2637 = vpop.f32.mrb[0].mxu0
        %v2638 = vadd.f32 %v2481, %v2637
        %2639 = vmatprep.mubr.bf16.mxu0 0
        %2640 = vmatmul.mubr.bf16.gmra.mrb[0].mxu0 %v2570
        %v2641 = vpop.f32.mrb[0].mxu0
        %v2642 = vadd.f32 %v2485, %v2641
        %v2643 = vpop.f32.mrb[0].mxu0
        %v2644 = vadd.f32 %v2487, %v2643
        %v2645 = vpop.f32.mrb[0].mxu0
        %v2646 = vadd.f32 %v2489, %v2645
        %v2647 = vpop.f32.mrb[0].mxu0
        %v2648 = vadd.f32 %v2491, %v2647
        %2649 = vmatprep.mubr.bf16.mxu0 0
        %2650 = vmatmul.mubr.bf16.gmra.mrb[0].mxu0 %v2573
        %v2651 = vpop.f32.mrb[0].mxu0
        %v2652 = vadd.f32 %v2495, %v2651
        %v2653 = vpop.f32.mrb[0].mxu0
        %v2654 = vadd.f32 %v2497, %v2653
        %v2655 = vpop.f32.mrb[0].mxu0
        %v2656 = vadd.f32 %v2499, %v2655
        %v2657 = vpop.f32.mrb[0].mxu0
        %v2658 = vadd.f32 %v2501, %v2657
        %2659 = vmatprep.mubr.bf16.mxu0 0
        %2660 = vmatmul.mubr.bf16.gmra.mrb[0].mxu0 %v2576
        %v2661 = vpop.f32.mrb[0].mxu0
        %v2662 = vadd.f32 %v2505, %v2661
        %v2663 = vpop.f32.mrb[0].mxu0
        %v2664 = vadd.f32 %v2507, %v2663
        %v2665 = vpop.f32.mrb[0].mxu0
        %v2666 = vadd.f32 %v2509, %v2665
        %v2667 = vpop.f32.mrb[0].mxu0
        %v2668 = vadd.f32 %v2511, %v2667
        %2669 = vmatprep.mubr.bf16.mxu0 0
        %2670 = vmatmul.mubr.bf16.gmra.mrb[0].mxu0 %v2579
        %v2671 = vpop.f32.mrb[0].mxu0
        %v2672 = vadd.f32 %v2515, %v2671
        %v2673 = vpop.f32.mrb[0].mxu0
        %v2674 = vadd.f32 %v2517, %v2673
        %v2675 = vpop.f32.mrb[0].mxu0
        %v2676 = vadd.f32 %v2519, %v2675
        %v2677 = vpop.f32.mrb[0].mxu0
        %v2678 = vadd.f32 %v2521, %v2677
        %2679 = vmatprep.mubr.bf16.mxu0 0
        %2680 = vmatmul.mubr.bf16.gmra.mrb[0].mxu0 %v2582
        %v2681 = vpop.f32.mrb[0].mxu0
        %v2682 = vadd.f32 %v2525, %v2681
        %v2683 = vpop.f32.mrb[0].mxu0
        %v2684 = vadd.f32 %v2527, %v2683
        %v2685 = vpop.f32.mrb[0].mxu0
        %v2686 = vadd.f32 %v2529, %v2685
        %v2687 = vpop.f32.mrb[0].mxu0
        %v2688 = vadd.f32 %v2531, %v2687
        %2689 = vmatprep.mubr.bf16.mxu0 0
        %2690 = vmatmul.mubr.bf16.gmra.mrb[0].mxu0 %v2585
        %v2691 = vpop.f32.mrb[0].mxu0
        %v2692 = vadd.f32 %v2535, %v2691
        %v2693 = vpop.f32.mrb[0].mxu0
        %v2694 = vadd.f32 %v2537, %v2693
        %v2695 = vpop.f32.mrb[0].mxu0
        %v2696 = vadd.f32 %v2539, %v2695
        %v2697 = vpop.f32.mrb[0].mxu0
        %v2698 = vadd.f32 %v2541, %v2697
        %2699 = vdwg.mxu0
        %v2700 = vld [vmem:[%s13] sm:$0x3]
        %v2702 = vlaneseq
        %v2703 = vshrl.u32 %v2702, 7
        %v2704 = vsub.s32 0, %v2703
        %v2705 = vrot.slane %v2700, %v2704
        %v2706 = vlaneseq
        %v2707 = vshrl.u32 %v2706, 7
        %v2708 = vsub.s32 1, %v2707
        %v2709 = vrot.slane %v2700, %v2708
        %v2712 = vadd.f32 %v2622, %v2705
        %v2713 = vadd.f32 %v2624, %v2709
        %v2714 = vadd.f32 %v2626, %v2705
        %v2715 = vadd.f32 %v2628, %v2709
        %v2716 = vadd.f32 %v2632, %v2705
        %v2717 = vadd.f32 %v2634, %v2709
        %v2718 = vadd.f32 %v2636, %v2705
        %v2719 = vadd.f32 %v2638, %v2709
        %v2720 = vadd.f32 %v2642, %v2705
        %v2721 = vadd.f32 %v2644, %v2709
        %v2722 = vadd.f32 %v2646, %v2705
        %v2723 = vadd.f32 %v2648, %v2709
        %v2724 = vadd.f32 %v2652, %v2705
        %v2725 = vadd.f32 %v2654, %v2709
        %v2726 = vadd.f32 %v2656, %v2705
        %v2727 = vadd.f32 %v2658, %v2709
        %v2728 = vadd.f32 %v2662, %v2705
        %v2729 = vadd.f32 %v2664, %v2709
        %v2730 = vadd.f32 %v2666, %v2705
        %v2731 = vadd.f32 %v2668, %v2709
        %v2732 = vadd.f32 %v2672, %v2705
        %v2733 = vadd.f32 %v2674, %v2709
        %v2734 = vadd.f32 %v2676, %v2705
        %v2735 = vadd.f32 %v2678, %v2709
        %v2736 = vadd.f32 %v2682, %v2705
        %v2737 = vadd.f32 %v2684, %v2709
        %v2738 = vadd.f32 %v2686, %v2705
        %v2739 = vadd.f32 %v2688, %v2709
        %v2740 = vadd.f32 %v2692, %v2705
        %v2741 = vadd.f32 %v2694, %v2709
        %v2742 = vadd.f32 %v2696, %v2705
        %v2743 = vadd.f32 %v2698, %v2709
        %v2744 = vmax.f32 %v2712, 0.0
        %v2745 = vmax.f32 %v2713, 0.0
        %v2746 = vmax.f32 %v2714, 0.0
        %v2747 = vmax.f32 %v2715, 0.0
        %v2748 = vmax.f32 %v2716, 0.0
        %v2749 = vmax.f32 %v2717, 0.0
        %v2750 = vmax.f32 %v2718, 0.0
        %v2751 = vmax.f32 %v2719, 0.0
        %v2752 = vmax.f32 %v2720, 0.0
        %v2753 = vmax.f32 %v2721, 0.0
        %v2754 = vmax.f32 %v2722, 0.0
        %v2755 = vmax.f32 %v2723, 0.0
        %v2756 = vmax.f32 %v2724, 0.0
        %v2757 = vmax.f32 %v2725, 0.0
        %v2758 = vmax.f32 %v2726, 0.0
        %v2759 = vmax.f32 %v2727, 0.0
        %v2760 = vmax.f32 %v2728, 0.0
        %v2761 = vmax.f32 %v2729, 0.0
        %v2762 = vmax.f32 %v2730, 0.0
        %v2763 = vmax.f32 %v2731, 0.0
        %v2764 = vmax.f32 %v2732, 0.0
        %v2765 = vmax.f32 %v2733, 0.0
        %v2766 = vmax.f32 %v2734, 0.0
        %v2767 = vmax.f32 %v2735, 0.0
        %v2768 = vmax.f32 %v2736, 0.0
        %v2769 = vmax.f32 %v2737, 0.0
        %v2770 = vmax.f32 %v2738, 0.0
        %v2771 = vmax.f32 %v2739, 0.0
        %v2772 = vmax.f32 %v2740, 0.0
        %v2773 = vmax.f32 %v2741, 0.0
        %v2774 = vmax.f32 %v2742, 0.0
        %v2775 = vmax.f32 %v2743, 0.0
        %v2776 = vpack.c.bf16 %v2746, %v2744
        %v2777 = vpack.c.bf16 %v2747, %v2745
        %v2778 = vpack.c.bf16 %v2750, %v2748
        %v2779 = vpack.c.bf16 %v2751, %v2749
        %v2780 = vpack.c.bf16 %v2754, %v2752
        %v2781 = vpack.c.bf16 %v2755, %v2753
        %v2782 = vpack.c.bf16 %v2758, %v2756
        %v2783 = vpack.c.bf16 %v2759, %v2757
        %v2784 = vpack.c.bf16 %v2762, %v2760
        %v2785 = vpack.c.bf16 %v2763, %v2761
        %v2786 = vpack.c.bf16 %v2766, %v2764
        %v2787 = vpack.c.bf16 %v2767, %v2765
        %v2788 = vpack.c.bf16 %v2770, %v2768
        %v2789 = vpack.c.bf16 %v2771, %v2769
        %v2790 = vpack.c.bf16 %v2774, %v2772
        %v2791 = vpack.c.bf16 %v2775, %v2773
        %v2792 = vld [vmem:[%s14] sm:$0xf]
        %v2793 = vld [vmem:[%s14 + $0x4] sm:$0xf]
        %v2794 = vld [vmem:[%s14 + $0x8] sm:$0xf]
        %v2795 = vld [vmem:[%s14 + $0xc] sm:$0xf]
        %v2796 = vld [vmem:[%s14 + $0x10] sm:$0xf]
        %v2797 = vld [vmem:[%s14 + $0x14] sm:$0xf]
        %v2798 = vld [vmem:[%s14 + $0x18] sm:$0xf]
        %v2799 = vld [vmem:[%s14 + $0x1c] sm:$0xf]
        %v2800 = vld [vmem:[%s14 + $0x20] sm:$0xf]
        %v2801 = vld [vmem:[%s14 + $0x24] sm:$0xf]
        %v2802 = vld [vmem:[%s14 + $0x28] sm:$0xf]
        %v2803 = vld [vmem:[%s14 + $0x2c] sm:$0xf]
        %v2804 = vld [vmem:[%s14 + $0x30] sm:$0xf]
        %v2805 = vld [vmem:[%s14 + $0x34] sm:$0xf]
        %v2806 = vld [vmem:[%s14 + $0x38] sm:$0xf]
        %v2807 = vld [vmem:[%s14 + $0x3c] sm:$0xf]
        %v2808 = vld [vmem:[%s14 + $0x40] sm:$0xf]
        %v2809 = vld [vmem:[%s14 + $0x44] sm:$0xf]
        %v2810 = vld [vmem:[%s14 + $0x48] sm:$0xf]
        %v2811 = vld [vmem:[%s14 + $0x4c] sm:$0xf]
        %v2812 = vld [vmem:[%s14 + $0x50] sm:$0xf]
        %v2813 = vld [vmem:[%s14 + $0x54] sm:$0xf]
        %v2814 = vld [vmem:[%s14 + $0x58] sm:$0xf]
        %v2815 = vld [vmem:[%s14 + $0x5c] sm:$0xf]
        %v2816 = vld [vmem:[%s14 + $0x60] sm:$0xf]
        %v2817 = vld [vmem:[%s14 + $0x64] sm:$0xf]
        %v2818 = vld [vmem:[%s14 + $0x68] sm:$0xf]
        %v2819 = vld [vmem:[%s14 + $0x6c] sm:$0xf]
        %v2820 = vld [vmem:[%s14 + $0x70] sm:$0xf]
        %v2821 = vld [vmem:[%s14 + $0x74] sm:$0xf]
        %v2822 = vld [vmem:[%s14 + $0x78] sm:$0xf]
        %v2823 = vld [vmem:[%s14 + $0x7c] sm:$0xf]
        %v2824 = vld [vmem:[%s15] sm:$0x1]
        %v2826 = vlaneseq
        %v2827 = vshrl.u32 %v2826, 7
        %v2828 = vsub.s32 0, %v2827
        %v2829 = vrot.slane %v2824, %v2828
        %v2863 = vunpack.c.l.b16 %v2792
        %v2864 = vunpack.c.l.b16 %v2793
        %v2865 = vunpack.c.l.b16 %v2794
        %v2866 = vunpack.c.l.b16 %v2795
        %v2867 = vunpack.c.l.b16 %v2796
        %v2868 = vunpack.c.l.b16 %v2797
        %v2869 = vunpack.c.l.b16 %v2798
        %v2870 = vunpack.c.l.b16 %v2799
        %v2871 = vunpack.c.l.b16 %v2800
        %v2872 = vunpack.c.l.b16 %v2801
        %v2873 = vunpack.c.l.b16 %v2802
        %v2874 = vunpack.c.l.b16 %v2803
        %v2875 = vunpack.c.l.b16 %v2804
        %v2876 = vunpack.c.l.b16 %v2805
        %v2877 = vunpack.c.l.b16 %v2806
        %v2878 = vunpack.c.l.b16 %v2807
        %v2879 = vunpack.c.l.b16 %v2808
        %v2880 = vunpack.c.l.b16 %v2809
        %v2881 = vunpack.c.l.b16 %v2810
        %v2882 = vunpack.c.l.b16 %v2811
        %v2883 = vunpack.c.l.b16 %v2812
        %v2884 = vunpack.c.l.b16 %v2813
        %v2885 = vunpack.c.l.b16 %v2814
        %v2886 = vunpack.c.l.b16 %v2815
        %v2887 = vunpack.c.l.b16 %v2816
        %v2888 = vunpack.c.l.b16 %v2817
        %v2889 = vunpack.c.l.b16 %v2818
        %v2890 = vunpack.c.l.b16 %v2819
        %v2891 = vunpack.c.l.b16 %v2820
        %v2892 = vunpack.c.l.b16 %v2821
        %v2893 = vunpack.c.l.b16 %v2822
        %v2894 = vunpack.c.l.b16 %v2823
        %v2895 = vpack.c.b16 %v2864, %v2863
        %v2896 = vpack.c.b16 %v2866, %v2865
        %v2897 = vpack.c.b16 %v2868, %v2867
        %v2898 = vpack.c.b16 %v2870, %v2869
        %v2899 = vpack.c.b16 %v2872, %v2871
        %v2900 = vpack.c.b16 %v2874, %v2873
        %v2901 = vpack.c.b16 %v2876, %v2875
        %v2902 = vpack.c.b16 %v2878, %v2877
        %v2903 = vpack.c.b16 %v2880, %v2879
        %v2904 = vpack.c.b16 %v2882, %v2881
        %v2905 = vpack.c.b16 %v2884, %v2883
        %v2906 = vpack.c.b16 %v2886, %v2885
        %v2907 = vpack.c.b16 %v2888, %v2887
        %v2908 = vpack.c.b16 %v2890, %v2889
        %v2909 = vpack.c.b16 %v2892, %v2891
        %v2910 = vpack.c.b16 %v2894, %v2893
        %2927 = vmatprep.subr.bf16.mxu0 0
        %2928 = vmatpush1.bf16.msra.mxu0 %v2895
        %2929 = vmatprep.subr.bf16.mxu0 0
        %2930 = vmatpush1.bf16.msra.mxu0 %v2896
        %2931 = vmatprep.subr.bf16.mxu0 0
        %2932 = vmatpush1.bf16.msra.mxu0 %v2897
        %2933 = vmatprep.subr.bf16.mxu0 0
        %2934 = vmatpush1.bf16.msra.mxu0 %v2898
        %2935 = vmatprep.subr.bf16.mxu0 0
        %2936 = vmatpush1.bf16.msra.mxu0 %v2899
        %2937 = vmatprep.subr.bf16.mxu0 0
        %2938 = vmatpush1.bf16.msra.mxu0 %v2900
        %2939 = vmatprep.subr.bf16.mxu0 0
        %2940 = vmatpush1.bf16.msra.mxu0 %v2901
        %2941 = vmatprep.subr.bf16.mxu0 0
        %2942 = vmatpush1.bf16.msra.mxu0 %v2902
        %2943 = vmatprep.subr.bf16.mxu0 0
        %2944 = vmatpush1.bf16.msra.mxu0 %v2903
        %2945 = vmatprep.subr.bf16.mxu0 0
        %2946 = vmatpush1.bf16.msra.mxu0 %v2904
        %2947 = vmatprep.subr.bf16.mxu0 0
        %2948 = vmatpush1.bf16.msra.mxu0 %v2905
        %2949 = vmatprep.subr.bf16.mxu0 0
        %2950 = vmatpush1.bf16.msra.mxu0 %v2906
        %2951 = vmatprep.subr.bf16.mxu0 0
        %2952 = vmatpush1.bf16.msra.mxu0 %v2907
        %2953 = vmatprep.subr.bf16.mxu0 0
        %2954 = vmatpush1.bf16.msra.mxu0 %v2908
        %2955 = vmatprep.subr.bf16.mxu0 0
        %2956 = vmatpush1.bf16.msra.mxu0 %v2909
        %2957 = vmatprep.subr.bf16.mxu0 0
        %2958 = vmatpush1.bf16.msra.mxu0 %v2910
        %2959 = vmatprep.mubr.bf16.mxu0 %v2777
        %2960 = vmatmul.mubr.bf16.gmra.mrb[0].mxu0 %v2776
        %v2961 = vpop.f32.mrb[0].mxu0
        %v2962 = vadd.f32 %v2829, %v2961
        %v2963 = vpop.f32.mrb[0].mxu0
        %v2964 = vpop.f32.mrb[0].mxu0
        %v2965 = vadd.f32 %v2829, %v2964
        %v2966 = vpop.f32.mrb[0].mxu0
        %2967 = vmatprep.mubr.bf16.mxu0 %v2779
        %2968 = vmatmul.mubr.bf16.gmra.mrb[0].mxu0 %v2778
        %v2969 = vpop.f32.mrb[0].mxu0
        %v2970 = vadd.f32 %v2829, %v2969
        %v2971 = vpop.f32.mrb[0].mxu0
        %v2972 = vpop.f32.mrb[0].mxu0
        %v2973 = vadd.f32 %v2829, %v2972
        %v2974 = vpop.f32.mrb[0].mxu0
        %2975 = vmatprep.mubr.bf16.mxu0 %v2781
        %2976 = vmatmul.mubr.bf16.gmra.mrb[0].mxu0 %v2780
        %v2977 = vpop.f32.mrb[0].mxu0
        %v2978 = vadd.f32 %v2829, %v2977
        %v2979 = vpop.f32.mrb[0].mxu0
        %v2980 = vpop.f32.mrb[0].mxu0
        %v2981 = vadd.f32 %v2829, %v2980
        %v2982 = vpop.f32.mrb[0].mxu0
        %2983 = vmatprep.mubr.bf16.mxu0 %v2783
        %2984 = vmatmul.mubr.bf16.gmra.mrb[0].mxu0 %v2782
        %v2985 = vpop.f32.mrb[0].mxu0
        %v2986 = vadd.f32 %v2829, %v2985
        %v2987 = vpop.f32.mrb[0].mxu0
        %v2988 = vpop.f32.mrb[0].mxu0
        %v2989 = vadd.f32 %v2829, %v2988
        %v2990 = vpop.f32.mrb[0].mxu0
        %2991 = vmatprep.mubr.bf16.mxu0 %v2785
        %2992 = vmatmul.mubr.bf16.gmra.mrb[0].mxu0 %v2784
        %v2993 = vpop.f32.mrb[0].mxu0
        %v2994 = vadd.f32 %v2829, %v2993
        %v2995 = vpop.f32.mrb[0].mxu0
        %v2996 = vpop.f32.mrb[0].mxu0
        %v2997 = vadd.f32 %v2829, %v2996
        %v2998 = vpop.f32.mrb[0].mxu0
        %2999 = vmatprep.mubr.bf16.mxu0 %v2787
        %3000 = vmatmul.mubr.bf16.gmra.mrb[0].mxu0 %v2786
        %v3001 = vpop.f32.mrb[0].mxu0
        %v3002 = vadd.f32 %v2829, %v3001
        %v3003 = vpop.f32.mrb[0].mxu0
        %v3004 = vpop.f32.mrb[0].mxu0
        %v3005 = vadd.f32 %v2829, %v3004
        %v3006 = vpop.f32.mrb[0].mxu0
        %3007 = vmatprep.mubr.bf16.mxu0 %v2789
        %3008 = vmatmul.mubr.bf16.gmra.mrb[0].mxu0 %v2788
        %v3009 = vpop.f32.mrb[0].mxu0
        %v3010 = vadd.f32 %v2829, %v3009
        %v3011 = vpop.f32.mrb[0].mxu0
        %v3012 = vpop.f32.mrb[0].mxu0
        %v3013 = vadd.f32 %v2829, %v3012
        %v3014 = vpop.f32.mrb[0].mxu0
        %3015 = vmatprep.mubr.bf16.mxu0 %v2791
        %3016 = vmatmul.mubr.bf16.gmra.mrb[0].mxu0 %v2790
        %v3017 = vpop.f32.mrb[0].mxu0
        %v3018 = vadd.f32 %v2829, %v3017
        %v3019 = vpop.f32.mrb[0].mxu0
        %v3020 = vpop.f32.mrb[0].mxu0
        %v3021 = vadd.f32 %v2829, %v3020
        %v3022 = vpop.f32.mrb[0].mxu0
        %3023 = vdwg.mxu0
        %3024 = vst.msk [vmem:[%s616] sm:$0xff] %vm1007, %v2962
        %3025 = vst.msk [vmem:[%s616 + $0x8] sm:$0xff] %vm1007, %v2965
        %3026 = vst.msk [vmem:[%s616 + $0x10] sm:$0xff] %vm1007, %v2970
        %3027 = vst.msk [vmem:[%s616 + $0x18] sm:$0xff] %vm1007, %v2973
        %3028 = vst.msk [vmem:[%s616 + $0x20] sm:$0xff] %vm1007, %v2978
        %3029 = vst.msk [vmem:[%s616 + $0x28] sm:$0xff] %vm1007, %v2981
        %3030 = vst.msk [vmem:[%s616 + $0x30] sm:$0xff] %vm1007, %v2986
        %3031 = vst.msk [vmem:[%s616 + $0x38] sm:$0xff] %vm1007, %v2989
        %3032 = vst.msk [vmem:[%s616 + $0x40] sm:$0xff] %vm1007, %v2994
        %3033 = vst.msk [vmem:[%s616 + $0x48] sm:$0xff] %vm1007, %v2997
        %3034 = vst.msk [vmem:[%s616 + $0x50] sm:$0xff] %vm1007, %v3002
        %3035 = vst.msk [vmem:[%s616 + $0x58] sm:$0xff] %vm1007, %v3005
        %3036 = vst.msk [vmem:[%s616 + $0x60] sm:$0xff] %vm1007, %v3010
        %3037 = vst.msk [vmem:[%s616 + $0x68] sm:$0xff] %vm1007, %v3013
        %3038 = vst.msk [vmem:[%s616 + $0x70] sm:$0xff] %vm1007, %v3018
        %3039 = vst.msk [vmem:[%s616 + $0x78] sm:$0xff] %vm1007, %v3021
      $region92: #{tpu_custom_call.1} parent=83 // pred_fallthru
        _
      %s3040 = smul.u32 16, %s33
      %p3041 = scmp.lt.s32.totalorder %s32, 1
      %s3042 = scalar_select %p3041, %s32, 1
      %p3043 = scmp.lt.s32.totalorder %s3040, 31
      %s3044 = scalar_select %p3043, %s3040, 31
      %s3045 = smul.addr %s3042, 32
      %s3046 = sadd.s32 %s3044, %s3045
      %s3047 = smul.addr %s3046, 8
      %s3048 = scalar_lea.vmem %s16, %s3047
      // Predicated region
      $region93: #{tpu_custom_call.1} parent=83 // pred_check
        %p3049 = pneg %p421
      $region94: #{tpu_custom_call.1} parent=83 // pred_check_branch
        %3051 = sbr.rel (%p3049) target = $region96
      $region95: #{tpu_custom_call.1} parent=83 // pred_region
        %s3052 = smul.u32 16, %s33
      $region96: #{tpu_custom_call.1} parent=83 // pred_fallthru
        _
    $region84: #{tpu_custom_call.1} parent=5 // pred_fallthru
      _
    %p3053 = scmp.le.s32.totalorder 2, %s22
    // Predicated region
    $region97: #{tpu_custom_call.1} parent=5 // pred_check
      %p3054 = pneg %p3053
    $region98: #{tpu_custom_call.1} parent=5 // pred_check_branch
      %3056 = sbr.rel (%p3054) target = $region100
    $region99: #{tpu_custom_call.1} parent=5 // pred_region
      %s3057 = ssub.s32 %s22, 2
      // Predicated region
      $region101: #{tpu_custom_call.1} parent=99 // pred_check
        %p3058 = pneg %p427
      $region102: #{tpu_custom_call.1} parent=99 // pred_check_branch
        %3060 = sbr.rel (%p3058) target = $region104
      $region103: #{tpu_custom_call.1} parent=99 // pred_region
        %s3061 = smul.u32 16, %s36
        %p3062 = scmp.lt.s32.totalorder %s35, 1
        %s3063 = scalar_select %p3062, %s35, 1
        %p3064 = scmp.lt.s32.totalorder %s3061, 31
        %s3065 = scalar_select %p3064, %s3061, 31
        %s3066 = smul.addr %s3063, 32
        %s3067 = sadd.s32 %s3065, %s3066
        %s3068 = smul.addr %s3067, 8
        %s3069 = scalar_lea.vmem %s16, %s3068
      $region104: #{tpu_custom_call.1} parent=99 // pred_fallthru
        _
    $region100: #{tpu_custom_call.1} parent=5 // pred_fallthru
      _
  $region6: #{tpu_custom_call.1} parent=0 // loop_footer
    %s26 = sadd.s32 1, %s22
  $region7: #{tpu_custom_call.1} parent=0 // loop_footer_branch
    %21 = sbr.rel target = $region3
  $region8: #{tpu_custom_call.1} parent=0 // loop_exit
    _

</llo_original>
